<compile_context>
chip_gen: v5e
topology: v5e:2x2
jax: 0.10.0
libtpu: 0.0.40
codegen_flags: <defaults>
</compile_context>

<pallas_src>
import math
import jax
import jax.numpy as jnp
from jax.experimental import pallas as pl
from jax.experimental.pallas import tpu as pltpu

EPS = 1e-6
MAX_TAU = 20
NUM_FILTERS = 16
BN_EPS = 1e-5


# ----------------------------------------------------------------------------
# Single fused kernel: DFT -> GCC-PHAT -> layer_1 -> iDFT(41 lags) -> layer_2
#                      -> BN -> LeakyReLU -> Linear -> softmax
# ----------------------------------------------------------------------------
def _net_kernel(x1_ref, x2_ref, x3_ref, cr_ref, ci_ref, inv_ref,
                w1_ref, s1_ref, w2_ref, s2_ref,
                w3_ref, s3_ref, w4_ref, s4_ref,
                bnsc_ref, bnsh_ref, whs_ref, hmask_ref, sred_ref, lb_ref,
                o_ref):
    B, S, L = x1_ref.shape
    F = cr_ref.shape[1]                     # n//2 + 1 frequency bins
    LAGS = inv_ref.shape[1]                 # 2*MAX_TAU + 1 lag columns
    P = 3                                   # mic pairs (1,2), (1,3), (2,3)
    NS = P * B                              # independent "samples" through layer_1
    CO = w1_ref.shape[0]                    # 16 filters

    def leaky(v):
        return jnp.where(v > 0, v, 0.2 * v)

    def mm(a, b):
        return jnp.dot(a, b, preferred_element_type=jnp.float32)

    def im2col(x, k):
        # x: (Ci, Lc) -> (k*Ci, Lc); "same" zero padding, rows ordered (tap, channel).
        ci_, lc = x.shape
        p_l = (k - 1) // 2
        p_r = (k - 1) - p_l
        xp = jnp.concatenate(
            [jnp.zeros((ci_, p_l), x.dtype), x, jnp.zeros((ci_, p_r), x.dtype)], axis=1)
        return jnp.concatenate([xp[:, t:t + lc] for t in range(k)], axis=0)

    # ---- forward rDFT (zero padded to n = 2L) as two matmuls over all mics/batches ----
    x1 = x1_ref[...]
    x2 = x2_ref[...]
    x3 = x3_ref[...]
    x_all = jnp.concatenate([x1[b] for b in range(B)] + [x2[b] for b in range(B)]
                            + [x3[b] for b in range(B)], axis=0)         # (3*B*S, L)
    xr = mm(x_all, cr_ref[...])                                           # (3*B*S, F)
    xi = mm(x_all, ci_ref[...])

    bs = B * S

    def mic(a, m):
        return a[m * bs:(m + 1) * bs, :]

    ar = jnp.concatenate([mic(xr, 0), mic(xr, 0), mic(xr, 1)], axis=0)    # (P*B*S, F)
    ai = jnp.concatenate([mic(xi, 0), mic(xi, 0), mic(xi, 1)], axis=0)
    br = jnp.concatenate([mic(xr, 1), mic(xr, 2), mic(xr, 2)], axis=0)
    bi = jnp.concatenate([mic(xi, 1), mic(xi, 2), mic(xi, 2)], axis=0)

    # ---- GCC-PHAT weighting: keep imag(G) / (|G| + eps)  (matches the reference) ----
    g_re = ar * br + ai * bi
    g_im = ai * br - ar * bi
    g = g_im * pl.reciprocal(jnp.sqrt(g_re * g_re + g_im * g_im) + EPS, approx=True)

    # ---- layer_1: two conv+BN+LeakyReLU blocks, ONE matmul each over all NS samples ----
    xcol = jnp.concatenate([im2col(g[i * S:(i + 1) * S, :], 11) for i in range(NS)],
                           axis=1)                                        # (11*S, NS*F)
    h = leaky(mm(w1_ref[...], xcol) + s1_ref[...])                        # (CO, NS*F)
    xcol = jnp.concatenate([im2col(h[:, i * F:(i + 1) * F], 7) for i in range(NS)],
                           axis=1)                                        # (7*CO, NS*F)
    h = leaky(mm(w2_ref[...], xcol) + s2_ref[...])                        # (CO, NS*F)

    # ---- inverse rDFT restricted to the 41 kept lags + layer_2 conv #1 (Cin = 3*CO).
    # The pair axis stays on lanes: the 48-channel conv is split into 3 per-pair row
    # blocks (weight columns reordered host-side), so no transpose is ever needed.
    inv = inv_ref[...]
    pair_blocks = []
    for p in range(P):
        cols_b = []
        for b in range(B):
            s_idx = p * B + b
            cc = mm(h[:, s_idx * F:(s_idx + 1) * F], inv)                 # (CO, LAGS)
            cols_b.append(im2col(cc, 11))                                 # (11*CO, LAGS)
        pair_blocks.append(jnp.concatenate(cols_b, axis=1))               # (11*CO, B*LAGS)
    xcol = jnp.concatenate(pair_blocks, axis=0)                           # (3*11*CO, B*LAGS)
    h = leaky(mm(w3_ref[...], xcol) + s3_ref[...])                        # (CO, B*LAGS)

    # ---- layer_2 conv #2, batched over the batch dimension ----
    xcol = jnp.concatenate(
        [im2col(h[:, b * LAGS:(b + 1) * LAGS], 7) for b in range(B)], axis=1)
    h = leaky(mm(w4_ref[...], xcol) + s4_ref[...])                        # (CO, B*LAGS)

    # ---- head: BN + LeakyReLU + Linear + softmax.  torch's channel-major .view flatten
    # is folded into host-side weight layouts; logits[b,o] = sum_{c,l} z[c,l] * W[c,l,o]
    # computed with two rank-2 matmuls (weight stack -> diag mask -> output reduction).
    bnsc = bnsc_ref[...]                                                  # (CO, LAGS)
    bnsh = bnsh_ref[...]
    whs = whs_ref[...]                                                    # (LAGS, CO*n_out)
    hmask = hmask_ref[...]                                                # (CO, CO*n_out)
    sred = sred_ref[...]                                                  # (CO*n_out, n_out)
    rows = []
    for b in range(B):
        zb = leaky(h[:, b * LAGS:(b + 1) * LAGS] * bnsc + bnsh)           # (CO, LAGS)
        q = mm(zb, whs) * hmask                                           # (CO, CO*n_out)
        rows.append(mm(jnp.sum(q, axis=0, keepdims=True), sred))          # (1, n_out)
    logits = jnp.concatenate(rows, axis=0) + lb_ref[...]                  # (B, n_out)

    m = jnp.max(logits, axis=1, keepdims=True)
    e = jnp.exp(logits - m)
    o_ref[...] = (e / jnp.sum(e, axis=1, keepdims=True)).astype(o_ref.dtype)


# ----------------------------------------------------------------------------
# Parameter / constant construction (deterministic; BN folded for eval mode).
# ----------------------------------------------------------------------------
def init_params(key, num_stacked, n_outputs, length):
    n = 2 * length                        # rfft/irfft length used by the reference
    nbins = n // 2 + 1
    lags_n = 2 * MAX_TAU + 1
    nf = NUM_FILTERS
    keys = iter(jax.random.split(key, 40))

    # Forward rDFT matrices (real input of `length` samples, zero-padded to n).
    t = jnp.arange(length, dtype=jnp.float32)[:, None]
    f = jnp.arange(nbins, dtype=jnp.float32)[None, :]
    ang = 2.0 * math.pi * t * f / n
    cr = jnp.cos(ang)                     # (length, nbins)
    ci = -jnp.sin(ang)

    # Inverse rDFT (real spectrum -> n real samples) restricted to the 41 lag columns the
    # model keeps: torch's cat(cc[..., -max_tau:], cc[..., :max_tau+1]) (overlap preserved).
    lag_idx = jnp.array(list(range(n - MAX_TAU, n)) + list(range(0, MAX_TAU + 1)),
                        dtype=jnp.float32)                       # (41,)
    fcol = jnp.arange(nbins, dtype=jnp.float32)[:, None]
    wgt = jnp.where((jnp.arange(nbins) == 0) | (jnp.arange(nbins) == n // 2),
                    1.0, 2.0).astype(jnp.float32)[:, None]
    inv41 = wgt * jnp.cos(2.0 * math.pi * fcol * lag_idx[None, :] / n) / n   # (nbins, 41)

    def conv_block(ci_, co_, k_):
        w = jax.random.normal(next(keys), (co_, ci_, k_), jnp.float32) / math.sqrt(ci_ * k_)
        b = jax.random.normal(next(keys), (co_,), jnp.float32) * 0.05
        gamma = jax.random.uniform(next(keys), (co_,), jnp.float32, 0.5, 1.5)
        beta = jax.random.normal(next(keys), (co_,), jnp.float32) * 0.1
        mean = jax.random.normal(next(keys), (co_,), jnp.float32) * 0.1
        var = jax.random.uniform(next(keys), (co_,), jnp.float32, 0.5, 1.5)
        scale = gamma / jnp.sqrt(var + BN_EPS)
        shift = beta + (b - mean) * scale
        return w, scale, shift.reshape(co_, 1)

    def tap_major(w, scale):
        co_, ci_, k_ = w.shape            # columns ordered (tap, channel), BN scale folded
        return jnp.transpose(w, (0, 2, 1)).reshape(co_, k_ * ci_) * scale[:, None]

    # layer_1: Conv(num_stacked -> 16, k=11), Conv(16 -> 16, k=7)
    w1, sc1, sh1 = conv_block(num_stacked, nf, 11)
    w2, sc2, sh2 = conv_block(nf, nf, 7)
    # layer_2: Conv(48 -> 16, k=11), Conv(16 -> 16, k=7)
    w3, sc3, sh3 = conv_block(3 * nf, nf, 11)
    w4, sc4, sh4 = conv_block(nf, nf, 7)

    # layer_2 conv #1 weight reordered to the in-kernel RHS row order (pair, tap, channel).
    w3r = w3.reshape(nf, 3, nf, 11)                         # (co, pair, ci, k)
    w3_col = jnp.transpose(w3r, (0, 1, 3, 2)).reshape(nf, 3 * 11 * nf) * sc3[:, None]

    feat = lags_n * nf                                      # 41 * 16 = 656
    gamma = jax.random.uniform(next(keys), (feat,), jnp.float32, 0.5, 1.5)
    beta = jax.random.normal(next(keys), (feat,), jnp.float32) * 0.1
    mean = jax.random.normal(next(keys), (feat,), jnp.float32) * 0.1
    var = jax.random.uniform(next(keys), (feat,), jnp.float32, 0.5, 1.5)
    bn_scale = gamma / jnp.sqrt(var + BN_EPS)
    bn_shift = beta - mean * bn_scale

    lin_w = jax.random.normal(next(keys), (feat, n_outputs), jnp.float32) / math.sqrt(feat)
    lin_b = jax.random.normal(next(keys), (1, n_outputs), jnp.float32) * 0.05

    # Head layouts: torch flatten is channel-major (feature index = c*41 + lag).
    wh = lin_w.reshape(nf, lags_n, n_outputs)                       # [c, l, o]
    whstack = jnp.transpose(wh, (1, 0, 2)).reshape(lags_n, nf * n_outputs)   # [l, c*o]
    hmask = jnp.repeat(jnp.eye(nf, dtype=jnp.float32), n_outputs, axis=1)    # [c', c*o]
    sred = jnp.tile(jnp.eye(n_outputs, dtype=jnp.float32), (nf, 1))          # [c*o, o']

    return {
        "cr": cr, "ci": ci, "inv41": inv41,
        "w1": tap_major(w1, sc1), "s1": sh1,
        "w2": tap_major(w2, sc2), "s2": sh2,
        "w3": w3_col, "s3": sh3,
        "w4": tap_major(w4, sc4), "s4": sh4,
        "bn_scale": bn_scale.reshape(nf, lags_n),
        "bn_shift": bn_shift.reshape(nf, lags_n),
        "whstack": whstack, "hmask": hmask, "sred": sred, "lin_b": lin_b,
    }


# ----------------------------------------------------------------------------
# Forward pass: a single pallas_call (no grid, everything resident in VMEM).
# ----------------------------------------------------------------------------
def forward(params, x1, x2, x3):
    B = x1.shape[0]
    n_out = params["lin_b"].shape[1]
    vmem = pl.BlockSpec(memory_space=pltpu.MemorySpace.VMEM)
    args = (x1.astype(jnp.float32), x2.astype(jnp.float32), x3.astype(jnp.float32),
            params["cr"], params["ci"], params["inv41"],
            params["w1"], params["s1"], params["w2"], params["s2"],
            params["w3"], params["s3"], params["w4"], params["s4"],
            params["bn_scale"], params["bn_shift"],
            params["whstack"], params["hmask"], params["sred"], params["lin_b"])
    return pl.pallas_call(
        _net_kernel,
        out_shape=jax.ShapeDtypeStruct((B, n_out), jnp.float32),
        in_specs=[vmem] * len(args),
        out_specs=vmem,
    )(*args)


if __name__ == "__main__":
    batch = 2
    num_stacked = 4
    length = 16
    n_outputs = 8

    key = jax.random.PRNGKey(0)
    k_params, k1, k2, k3 = jax.random.split(key, 4)

    params = init_params(k_params, num_stacked, n_outputs, length)
    x1 = jax.random.normal(k1, (batch, num_stacked, length), jnp.float32)
    x2 = jax.random.normal(k2, (batch, num_stacked, length), jnp.float32)
    x3 = jax.random.normal(k3, (batch, num_stacked, length), jnp.float32)

    out = jax.jit(forward)(params, x1, x2, x3)
    out = jax.block_until_ready(out)

    assert out.shape == (batch, n_outputs)
    assert bool(jnp.all(jnp.isfinite(out)))
    assert bool(jnp.allclose(jnp.sum(out, axis=1), 1.0, atol=1e-4))
    print("KERNEL_OK")
</pallas_src>

<mosaic_0001>
module attributes {stable_mosaic.version = 11 : i64} {
  func.func @_net_kernel(%arg0: memref<2x4x16xf32, #tpu.memory_space<vmem>>, %arg1: memref<2x4x16xf32, #tpu.memory_space<vmem>>, %arg2: memref<2x4x16xf32, #tpu.memory_space<vmem>>, %arg3: memref<16x17xf32, #tpu.memory_space<vmem>>, %arg4: memref<16x17xf32, #tpu.memory_space<vmem>>, %arg5: memref<17x41xf32, #tpu.memory_space<vmem>>, %arg6: memref<16x44xf32, #tpu.memory_space<vmem>>, %arg7: memref<16x1xf32, #tpu.memory_space<vmem>>, %arg8: memref<16x112xf32, #tpu.memory_space<vmem>>, %arg9: memref<16x1xf32, #tpu.memory_space<vmem>>, %arg10: memref<16x528xf32, #tpu.memory_space<vmem>>, %arg11: memref<16x1xf32, #tpu.memory_space<vmem>>, %arg12: memref<16x112xf32, #tpu.memory_space<vmem>>, %arg13: memref<16x1xf32, #tpu.memory_space<vmem>>, %arg14: memref<16x41xf32, #tpu.memory_space<vmem>>, %arg15: memref<16x41xf32, #tpu.memory_space<vmem>>, %arg16: memref<41x128xf32, #tpu.memory_space<vmem>>, %arg17: memref<16x128xf32, #tpu.memory_space<vmem>>, %arg18: memref<128x8xf32, #tpu.memory_space<vmem>>, %arg19: memref<1x8xf32, #tpu.memory_space<vmem>>, %arg20: memref<2x8xf32, #tpu.memory_space<vmem>>) attributes {dimension_semantics = [], scalar_prefetch = 0 : i64, scratch_operands = 0 : i64, tpu.core_type = #tpu.core_type<tc>} {
    %c0 = arith.constant 0 : index
    %c0_0 = arith.constant 0 : index
    %c0_1 = arith.constant 0 : index
    %0 = vector.load %arg0[%c0, %c0_0, %c0_1] : memref<2x4x16xf32, #tpu.memory_space<vmem>>, vector<2x4x16xf32>
    %c0_2 = arith.constant 0 : index
    %c0_3 = arith.constant 0 : index
    %c0_4 = arith.constant 0 : index
    %1 = vector.load %arg1[%c0_2, %c0_3, %c0_4] : memref<2x4x16xf32, #tpu.memory_space<vmem>>, vector<2x4x16xf32>
    %c0_5 = arith.constant 0 : index
    %c0_6 = arith.constant 0 : index
    %c0_7 = arith.constant 0 : index
    %2 = vector.load %arg2[%c0_5, %c0_6, %c0_7] : memref<2x4x16xf32, #tpu.memory_space<vmem>>, vector<2x4x16xf32>
    %3 = vector.extract_strided_slice %0 {offsets = [0, 0, 0], sizes = [1, 4, 16], strides = [1, 1, 1]} : vector<2x4x16xf32> to vector<1x4x16xf32>
    %4 = vector.shape_cast %3 : vector<1x4x16xf32> to vector<4x16xf32>
    %5 = vector.extract_strided_slice %0 {offsets = [1, 0, 0], sizes = [1, 4, 16], strides = [1, 1, 1]} : vector<2x4x16xf32> to vector<1x4x16xf32>
    %6 = vector.shape_cast %5 : vector<1x4x16xf32> to vector<4x16xf32>
    %7 = vector.extract_strided_slice %1 {offsets = [0, 0, 0], sizes = [1, 4, 16], strides = [1, 1, 1]} : vector<2x4x16xf32> to vector<1x4x16xf32>
    %8 = vector.shape_cast %7 : vector<1x4x16xf32> to vector<4x16xf32>
    %9 = vector.extract_strided_slice %1 {offsets = [1, 0, 0], sizes = [1, 4, 16], strides = [1, 1, 1]} : vector<2x4x16xf32> to vector<1x4x16xf32>
    %10 = vector.shape_cast %9 : vector<1x4x16xf32> to vector<4x16xf32>
    %11 = vector.extract_strided_slice %2 {offsets = [0, 0, 0], sizes = [1, 4, 16], strides = [1, 1, 1]} : vector<2x4x16xf32> to vector<1x4x16xf32>
    %12 = vector.shape_cast %11 : vector<1x4x16xf32> to vector<4x16xf32>
    %13 = vector.extract_strided_slice %2 {offsets = [1, 0, 0], sizes = [1, 4, 16], strides = [1, 1, 1]} : vector<2x4x16xf32> to vector<1x4x16xf32>
    %14 = vector.shape_cast %13 : vector<1x4x16xf32> to vector<4x16xf32>
    %15 = tpu.concatenate %4, %6, %8, %10, %12, %14 in 0 : vector<4x16xf32>, vector<4x16xf32>, vector<4x16xf32>, vector<4x16xf32>, vector<4x16xf32>, vector<4x16xf32> -> vector<24x16xf32>
    %c0_8 = arith.constant 0 : index
    %c0_9 = arith.constant 0 : index
    %16 = vector.load %arg3[%c0_8, %c0_9] : memref<16x17xf32, #tpu.memory_space<vmem>>, vector<16x17xf32>
    %cst = arith.constant dense<0.000000e+00> : vector<24x17xf32>
    %17 = tpu.matmul %15, %16, %cst {dimension_numbers = #tpu.dot_dimension_numbers<[1], [0], [0], [1], [0, 0, 1, 1], [], []>} : vector<24x16xf32>, vector<16x17xf32>, vector<24x17xf32> -> vector<24x17xf32>
    %c0_10 = arith.constant 0 : index
    %c0_11 = arith.constant 0 : index
    %18 = vector.load %arg4[%c0_10, %c0_11] : memref<16x17xf32, #tpu.memory_space<vmem>>, vector<16x17xf32>
    %cst_12 = arith.constant dense<0.000000e+00> : vector<24x17xf32>
    %19 = tpu.matmul %15, %18, %cst_12 {dimension_numbers = #tpu.dot_dimension_numbers<[1], [0], [0], [1], [0, 0, 1, 1], [], []>} : vector<24x16xf32>, vector<16x17xf32>, vector<24x17xf32> -> vector<24x17xf32>
    %20 = vector.extract_strided_slice %17 {offsets = [0, 0], sizes = [8, 17], strides = [1, 1]} : vector<24x17xf32> to vector<8x17xf32>
    %21 = vector.extract_strided_slice %17 {offsets = [0, 0], sizes = [8, 17], strides = [1, 1]} : vector<24x17xf32> to vector<8x17xf32>
    %22 = vector.extract_strided_slice %17 {offsets = [8, 0], sizes = [8, 17], strides = [1, 1]} : vector<24x17xf32> to vector<8x17xf32>
    %23 = tpu.concatenate %20, %21, %22 in 0 : vector<8x17xf32>, vector<8x17xf32>, vector<8x17xf32> -> vector<24x17xf32>
    %24 = vector.extract_strided_slice %19 {offsets = [0, 0], sizes = [8, 17], strides = [1, 1]} : vector<24x17xf32> to vector<8x17xf32>
    %25 = vector.extract_strided_slice %19 {offsets = [0, 0], sizes = [8, 17], strides = [1, 1]} : vector<24x17xf32> to vector<8x17xf32>
    %26 = vector.extract_strided_slice %19 {offsets = [8, 0], sizes = [8, 17], strides = [1, 1]} : vector<24x17xf32> to vector<8x17xf32>
    %27 = tpu.concatenate %24, %25, %26 in 0 : vector<8x17xf32>, vector<8x17xf32>, vector<8x17xf32> -> vector<24x17xf32>
    %28 = vector.extract_strided_slice %17 {offsets = [8, 0], sizes = [8, 17], strides = [1, 1]} : vector<24x17xf32> to vector<8x17xf32>
    %29 = vector.extract_strided_slice %17 {offsets = [16, 0], sizes = [8, 17], strides = [1, 1]} : vector<24x17xf32> to vector<8x17xf32>
    %30 = vector.extract_strided_slice %17 {offsets = [16, 0], sizes = [8, 17], strides = [1, 1]} : vector<24x17xf32> to vector<8x17xf32>
    %31 = tpu.concatenate %28, %29, %30 in 0 : vector<8x17xf32>, vector<8x17xf32>, vector<8x17xf32> -> vector<24x17xf32>
    %32 = vector.extract_strided_slice %19 {offsets = [8, 0], sizes = [8, 17], strides = [1, 1]} : vector<24x17xf32> to vector<8x17xf32>
    %33 = vector.extract_strided_slice %19 {offsets = [16, 0], sizes = [8, 17], strides = [1, 1]} : vector<24x17xf32> to vector<8x17xf32>
    %34 = vector.extract_strided_slice %19 {offsets = [16, 0], sizes = [8, 17], strides = [1, 1]} : vector<24x17xf32> to vector<8x17xf32>
    %35 = tpu.concatenate %32, %33, %34 in 0 : vector<8x17xf32>, vector<8x17xf32>, vector<8x17xf32> -> vector<24x17xf32>
    %36 = arith.mulf %23, %31 : vector<24x17xf32>
    %37 = arith.mulf %27, %35 : vector<24x17xf32>
    %38 = arith.addf %36, %37 : vector<24x17xf32>
    %39 = arith.mulf %27, %31 : vector<24x17xf32>
    %40 = arith.mulf %23, %35 : vector<24x17xf32>
    %41 = arith.subf %39, %40 : vector<24x17xf32>
    %42 = arith.mulf %38, %38 : vector<24x17xf32>
    %43 = arith.mulf %41, %41 : vector<24x17xf32>
    %44 = arith.addf %42, %43 : vector<24x17xf32>
    %45 = math.sqrt %44 : vector<24x17xf32>
    %cst_13 = arith.constant 9.99999997E-7 : f32
    %46 = vector.broadcast %cst_13 : f32 to vector<24x17xf32>
    %47 = arith.addf %45, %46 : vector<24x17xf32>
    %48 = tpu.reciprocal %47 {approx = true} : vector<24x17xf32> -> vector<24x17xf32>
    %49 = arith.mulf %41, %48 : vector<24x17xf32>
    %50 = vector.extract_strided_slice %49 {offsets = [0, 0], sizes = [4, 17], strides = [1, 1]} : vector<24x17xf32> to vector<4x17xf32>
    %cst_14 = arith.constant 0.000000e+00 : f32
    %51 = vector.broadcast %cst_14 : f32 to vector<4x5xf32>
    %cst_15 = arith.constant 0.000000e+00 : f32
    %52 = vector.broadcast %cst_15 : f32 to vector<4x5xf32>
    %53 = tpu.concatenate %51, %50, %52 in 1 : vector<4x5xf32>, vector<4x17xf32>, vector<4x5xf32> -> vector<4x27xf32>
    %54 = vector.extract_strided_slice %53 {offsets = [0, 0], sizes = [4, 17], strides = [1, 1]} : vector<4x27xf32> to vector<4x17xf32>
    %55 = vector.extract_strided_slice %53 {offsets = [0, 1], sizes = [4, 17], strides = [1, 1]} : vector<4x27xf32> to vector<4x17xf32>
    %56 = vector.extract_strided_slice %53 {offsets = [0, 2], sizes = [4, 17], strides = [1, 1]} : vector<4x27xf32> to vector<4x17xf32>
    %57 = vector.extract_strided_slice %53 {offsets = [0, 3], sizes = [4, 17], strides = [1, 1]} : vector<4x27xf32> to vector<4x17xf32>
    %58 = vector.extract_strided_slice %53 {offsets = [0, 4], sizes = [4, 17], strides = [1, 1]} : vector<4x27xf32> to vector<4x17xf32>
    %59 = vector.extract_strided_slice %53 {offsets = [0, 5], sizes = [4, 17], strides = [1, 1]} : vector<4x27xf32> to vector<4x17xf32>
    %60 = vector.extract_strided_slice %53 {offsets = [0, 6], sizes = [4, 17], strides = [1, 1]} : vector<4x27xf32> to vector<4x17xf32>
    %61 = vector.extract_strided_slice %53 {offsets = [0, 7], sizes = [4, 17], strides = [1, 1]} : vector<4x27xf32> to vector<4x17xf32>
    %62 = vector.extract_strided_slice %53 {offsets = [0, 8], sizes = [4, 17], strides = [1, 1]} : vector<4x27xf32> to vector<4x17xf32>
    %63 = vector.extract_strided_slice %53 {offsets = [0, 9], sizes = [4, 17], strides = [1, 1]} : vector<4x27xf32> to vector<4x17xf32>
    %64 = vector.extract_strided_slice %53 {offsets = [0, 10], sizes = [4, 17], strides = [1, 1]} : vector<4x27xf32> to vector<4x17xf32>
    %65 = tpu.concatenate %54, %55, %56, %57, %58, %59, %60, %61, %62, %63, %64 in 0 : vector<4x17xf32>, vector<4x17xf32>, vector<4x17xf32>, vector<4x17xf32>, vector<4x17xf32>, vector<4x17xf32>, vector<4x17xf32>, vector<4x17xf32>, vector<4x17xf32>, vector<4x17xf32>, vector<4x17xf32> -> vector<44x17xf32>
    %66 = vector.extract_strided_slice %49 {offsets = [4, 0], sizes = [4, 17], strides = [1, 1]} : vector<24x17xf32> to vector<4x17xf32>
    %cst_16 = arith.constant 0.000000e+00 : f32
    %67 = vector.broadcast %cst_16 : f32 to vector<4x5xf32>
    %cst_17 = arith.constant 0.000000e+00 : f32
    %68 = vector.broadcast %cst_17 : f32 to vector<4x5xf32>
    %69 = tpu.concatenate %67, %66, %68 in 1 : vector<4x5xf32>, vector<4x17xf32>, vector<4x5xf32> -> vector<4x27xf32>
    %70 = vector.extract_strided_slice %69 {offsets = [0, 0], sizes = [4, 17], strides = [1, 1]} : vector<4x27xf32> to vector<4x17xf32>
    %71 = vector.extract_strided_slice %69 {offsets = [0, 1], sizes = [4, 17], strides = [1, 1]} : vector<4x27xf32> to vector<4x17xf32>
    %72 = vector.extract_strided_slice %69 {offsets = [0, 2], sizes = [4, 17], strides = [1, 1]} : vector<4x27xf32> to vector<4x17xf32>
    %73 = vector.extract_strided_slice %69 {offsets = [0, 3], sizes = [4, 17], strides = [1, 1]} : vector<4x27xf32> to vector<4x17xf32>
    %74 = vector.extract_strided_slice %69 {offsets = [0, 4], sizes = [4, 17], strides = [1, 1]} : vector<4x27xf32> to vector<4x17xf32>
    %75 = vector.extract_strided_slice %69 {offsets = [0, 5], sizes = [4, 17], strides = [1, 1]} : vector<4x27xf32> to vector<4x17xf32>
    %76 = vector.extract_strided_slice %69 {offsets = [0, 6], sizes = [4, 17], strides = [1, 1]} : vector<4x27xf32> to vector<4x17xf32>
    %77 = vector.extract_strided_slice %69 {offsets = [0, 7], sizes = [4, 17], strides = [1, 1]} : vector<4x27xf32> to vector<4x17xf32>
    %78 = vector.extract_strided_slice %69 {offsets = [0, 8], sizes = [4, 17], strides = [1, 1]} : vector<4x27xf32> to vector<4x17xf32>
    %79 = vector.extract_strided_slice %69 {offsets = [0, 9], sizes = [4, 17], strides = [1, 1]} : vector<4x27xf32> to vector<4x17xf32>
    %80 = vector.extract_strided_slice %69 {offsets = [0, 10], sizes = [4, 17], strides = [1, 1]} : vector<4x27xf32> to vector<4x17xf32>
    %81 = tpu.concatenate %70, %71, %72, %73, %74, %75, %76, %77, %78, %79, %80 in 0 : vector<4x17xf32>, vector<4x17xf32>, vector<4x17xf32>, vector<4x17xf32>, vector<4x17xf32>, vector<4x17xf32>, vector<4x17xf32>, vector<4x17xf32>, vector<4x17xf32>, vector<4x17xf32>, vector<4x17xf32> -> vector<44x17xf32>
    %82 = vector.extract_strided_slice %49 {offsets = [8, 0], sizes = [4, 17], strides = [1, 1]} : vector<24x17xf32> to vector<4x17xf32>
    %cst_18 = arith.constant 0.000000e+00 : f32
    %83 = vector.broadcast %cst_18 : f32 to vector<4x5xf32>
    %cst_19 = arith.constant 0.000000e+00 : f32
    %84 = vector.broadcast %cst_19 : f32 to vector<4x5xf32>
    %85 = tpu.concatenate %83, %82, %84 in 1 : vector<4x5xf32>, vector<4x17xf32>, vector<4x5xf32> -> vector<4x27xf32>
    %86 = vector.extract_strided_slice %85 {offsets = [0, 0], sizes = [4, 17], strides = [1, 1]} : vector<4x27xf32> to vector<4x17xf32>
    %87 = vector.extract_strided_slice %85 {offsets = [0, 1], sizes = [4, 17], strides = [1, 1]} : vector<4x27xf32> to vector<4x17xf32>
    %88 = vector.extract_strided_slice %85 {offsets = [0, 2], sizes = [4, 17], strides = [1, 1]} : vector<4x27xf32> to vector<4x17xf32>
    %89 = vector.extract_strided_slice %85 {offsets = [0, 3], sizes = [4, 17], strides = [1, 1]} : vector<4x27xf32> to vector<4x17xf32>
    %90 = vector.extract_strided_slice %85 {offsets = [0, 4], sizes = [4, 17], strides = [1, 1]} : vector<4x27xf32> to vector<4x17xf32>
    %91 = vector.extract_strided_slice %85 {offsets = [0, 5], sizes = [4, 17], strides = [1, 1]} : vector<4x27xf32> to vector<4x17xf32>
    %92 = vector.extract_strided_slice %85 {offsets = [0, 6], sizes = [4, 17], strides = [1, 1]} : vector<4x27xf32> to vector<4x17xf32>
    %93 = vector.extract_strided_slice %85 {offsets = [0, 7], sizes = [4, 17], strides = [1, 1]} : vector<4x27xf32> to vector<4x17xf32>
    %94 = vector.extract_strided_slice %85 {offsets = [0, 8], sizes = [4, 17], strides = [1, 1]} : vector<4x27xf32> to vector<4x17xf32>
    %95 = vector.extract_strided_slice %85 {offsets = [0, 9], sizes = [4, 17], strides = [1, 1]} : vector<4x27xf32> to vector<4x17xf32>
    %96 = vector.extract_strided_slice %85 {offsets = [0, 10], sizes = [4, 17], strides = [1, 1]} : vector<4x27xf32> to vector<4x17xf32>
    %97 = tpu.concatenate %86, %87, %88, %89, %90, %91, %92, %93, %94, %95, %96 in 0 : vector<4x17xf32>, vector<4x17xf32>, vector<4x17xf32>, vector<4x17xf32>, vector<4x17xf32>, vector<4x17xf32>, vector<4x17xf32>, vector<4x17xf32>, vector<4x17xf32>, vector<4x17xf32>, vector<4x17xf32> -> vector<44x17xf32>
    %98 = vector.extract_strided_slice %49 {offsets = [12, 0], sizes = [4, 17], strides = [1, 1]} : vector<24x17xf32> to vector<4x17xf32>
    %cst_20 = arith.constant 0.000000e+00 : f32
    %99 = vector.broadcast %cst_20 : f32 to vector<4x5xf32>
    %cst_21 = arith.constant 0.000000e+00 : f32
    %100 = vector.broadcast %cst_21 : f32 to vector<4x5xf32>
    %101 = tpu.concatenate %99, %98, %100 in 1 : vector<4x5xf32>, vector<4x17xf32>, vector<4x5xf32> -> vector<4x27xf32>
    %102 = vector.extract_strided_slice %101 {offsets = [0, 0], sizes = [4, 17], strides = [1, 1]} : vector<4x27xf32> to vector<4x17xf32>
    %103 = vector.extract_strided_slice %101 {offsets = [0, 1], sizes = [4, 17], strides = [1, 1]} : vector<4x27xf32> to vector<4x17xf32>
    %104 = vector.extract_strided_slice %101 {offsets = [0, 2], sizes = [4, 17], strides = [1, 1]} : vector<4x27xf32> to vector<4x17xf32>
    %105 = vector.extract_strided_slice %101 {offsets = [0, 3], sizes = [4, 17], strides = [1, 1]} : vector<4x27xf32> to vector<4x17xf32>
    %106 = vector.extract_strided_slice %101 {offsets = [0, 4], sizes = [4, 17], strides = [1, 1]} : vector<4x27xf32> to vector<4x17xf32>
    %107 = vector.extract_strided_slice %101 {offsets = [0, 5], sizes = [4, 17], strides = [1, 1]} : vector<4x27xf32> to vector<4x17xf32>
    %108 = vector.extract_strided_slice %101 {offsets = [0, 6], sizes = [4, 17], strides = [1, 1]} : vector<4x27xf32> to vector<4x17xf32>
    %109 = vector.extract_strided_slice %101 {offsets = [0, 7], sizes = [4, 17], strides = [1, 1]} : vector<4x27xf32> to vector<4x17xf32>
    %110 = vector.extract_strided_slice %101 {offsets = [0, 8], sizes = [4, 17], strides = [1, 1]} : vector<4x27xf32> to vector<4x17xf32>
    %111 = vector.extract_strided_slice %101 {offsets = [0, 9], sizes = [4, 17], strides = [1, 1]} : vector<4x27xf32> to vector<4x17xf32>
    %112 = vector.extract_strided_slice %101 {offsets = [0, 10], sizes = [4, 17], strides = [1, 1]} : vector<4x27xf32> to vector<4x17xf32>
    %113 = tpu.concatenate %102, %103, %104, %105, %106, %107, %108, %109, %110, %111, %112 in 0 : vector<4x17xf32>, vector<4x17xf32>, vector<4x17xf32>, vector<4x17xf32>, vector<4x17xf32>, vector<4x17xf32>, vector<4x17xf32>, vector<4x17xf32>, vector<4x17xf32>, vector<4x17xf32>, vector<4x17xf32> -> vector<44x17xf32>
    %114 = vector.extract_strided_slice %49 {offsets = [16, 0], sizes = [4, 17], strides = [1, 1]} : vector<24x17xf32> to vector<4x17xf32>
    %cst_22 = arith.constant 0.000000e+00 : f32
    %115 = vector.broadcast %cst_22 : f32 to vector<4x5xf32>
    %cst_23 = arith.constant 0.000000e+00 : f32
    %116 = vector.broadcast %cst_23 : f32 to vector<4x5xf32>
    %117 = tpu.concatenate %115, %114, %116 in 1 : vector<4x5xf32>, vector<4x17xf32>, vector<4x5xf32> -> vector<4x27xf32>
    %118 = vector.extract_strided_slice %117 {offsets = [0, 0], sizes = [4, 17], strides = [1, 1]} : vector<4x27xf32> to vector<4x17xf32>
    %119 = vector.extract_strided_slice %117 {offsets = [0, 1], sizes = [4, 17], strides = [1, 1]} : vector<4x27xf32> to vector<4x17xf32>
    %120 = vector.extract_strided_slice %117 {offsets = [0, 2], sizes = [4, 17], strides = [1, 1]} : vector<4x27xf32> to vector<4x17xf32>
    %121 = vector.extract_strided_slice %117 {offsets = [0, 3], sizes = [4, 17], strides = [1, 1]} : vector<4x27xf32> to vector<4x17xf32>
    %122 = vector.extract_strided_slice %117 {offsets = [0, 4], sizes = [4, 17], strides = [1, 1]} : vector<4x27xf32> to vector<4x17xf32>
    %123 = vector.extract_strided_slice %117 {offsets = [0, 5], sizes = [4, 17], strides = [1, 1]} : vector<4x27xf32> to vector<4x17xf32>
    %124 = vector.extract_strided_slice %117 {offsets = [0, 6], sizes = [4, 17], strides = [1, 1]} : vector<4x27xf32> to vector<4x17xf32>
    %125 = vector.extract_strided_slice %117 {offsets = [0, 7], sizes = [4, 17], strides = [1, 1]} : vector<4x27xf32> to vector<4x17xf32>
    %126 = vector.extract_strided_slice %117 {offsets = [0, 8], sizes = [4, 17], strides = [1, 1]} : vector<4x27xf32> to vector<4x17xf32>
    %127 = vector.extract_strided_slice %117 {offsets = [0, 9], sizes = [4, 17], strides = [1, 1]} : vector<4x27xf32> to vector<4x17xf32>
    %128 = vector.extract_strided_slice %117 {offsets = [0, 10], sizes = [4, 17], strides = [1, 1]} : vector<4x27xf32> to vector<4x17xf32>
    %129 = tpu.concatenate %118, %119, %120, %121, %122, %123, %124, %125, %126, %127, %128 in 0 : vector<4x17xf32>, vector<4x17xf32>, vector<4x17xf32>, vector<4x17xf32>, vector<4x17xf32>, vector<4x17xf32>, vector<4x17xf32>, vector<4x17xf32>, vector<4x17xf32>, vector<4x17xf32>, vector<4x17xf32> -> vector<44x17xf32>
    %130 = vector.extract_strided_slice %49 {offsets = [20, 0], sizes = [4, 17], strides = [1, 1]} : vector<24x17xf32> to vector<4x17xf32>
    %cst_24 = arith.constant 0.000000e+00 : f32
    %131 = vector.broadcast %cst_24 : f32 to vector<4x5xf32>
    %cst_25 = arith.constant 0.000000e+00 : f32
    %132 = vector.broadcast %cst_25 : f32 to vector<4x5xf32>
    %133 = tpu.concatenate %131, %130, %132 in 1 : vector<4x5xf32>, vector<4x17xf32>, vector<4x5xf32> -> vector<4x27xf32>
    %134 = vector.extract_strided_slice %133 {offsets = [0, 0], sizes = [4, 17], strides = [1, 1]} : vector<4x27xf32> to vector<4x17xf32>
    %135 = vector.extract_strided_slice %133 {offsets = [0, 1], sizes = [4, 17], strides = [1, 1]} : vector<4x27xf32> to vector<4x17xf32>
    %136 = vector.extract_strided_slice %133 {offsets = [0, 2], sizes = [4, 17], strides = [1, 1]} : vector<4x27xf32> to vector<4x17xf32>
    %137 = vector.extract_strided_slice %133 {offsets = [0, 3], sizes = [4, 17], strides = [1, 1]} : vector<4x27xf32> to vector<4x17xf32>
    %138 = vector.extract_strided_slice %133 {offsets = [0, 4], sizes = [4, 17], strides = [1, 1]} : vector<4x27xf32> to vector<4x17xf32>
    %139 = vector.extract_strided_slice %133 {offsets = [0, 5], sizes = [4, 17], strides = [1, 1]} : vector<4x27xf32> to vector<4x17xf32>
    %140 = vector.extract_strided_slice %133 {offsets = [0, 6], sizes = [4, 17], strides = [1, 1]} : vector<4x27xf32> to vector<4x17xf32>
    %141 = vector.extract_strided_slice %133 {offsets = [0, 7], sizes = [4, 17], strides = [1, 1]} : vector<4x27xf32> to vector<4x17xf32>
    %142 = vector.extract_strided_slice %133 {offsets = [0, 8], sizes = [4, 17], strides = [1, 1]} : vector<4x27xf32> to vector<4x17xf32>
    %143 = vector.extract_strided_slice %133 {offsets = [0, 9], sizes = [4, 17], strides = [1, 1]} : vector<4x27xf32> to vector<4x17xf32>
    %144 = vector.extract_strided_slice %133 {offsets = [0, 10], sizes = [4, 17], strides = [1, 1]} : vector<4x27xf32> to vector<4x17xf32>
    %145 = tpu.concatenate %134, %135, %136, %137, %138, %139, %140, %141, %142, %143, %144 in 0 : vector<4x17xf32>, vector<4x17xf32>, vector<4x17xf32>, vector<4x17xf32>, vector<4x17xf32>, vector<4x17xf32>, vector<4x17xf32>, vector<4x17xf32>, vector<4x17xf32>, vector<4x17xf32>, vector<4x17xf32> -> vector<44x17xf32>
    %146 = tpu.concatenate %65, %81, %97, %113, %129, %145 in 1 : vector<44x17xf32>, vector<44x17xf32>, vector<44x17xf32>, vector<44x17xf32>, vector<44x17xf32>, vector<44x17xf32> -> vector<44x102xf32>
    %c0_26 = arith.constant 0 : index
    %c0_27 = arith.constant 0 : index
    %147 = vector.load %arg6[%c0_26, %c0_27] : memref<16x44xf32, #tpu.memory_space<vmem>>, vector<16x44xf32>
    %cst_28 = arith.constant dense<0.000000e+00> : vector<16x102xf32>
    %148 = tpu.matmul %147, %146, %cst_28 {dimension_numbers = #tpu.dot_dimension_numbers<[1], [0], [0], [1], [0, 0, 1, 1], [], []>} : vector<16x44xf32>, vector<44x102xf32>, vector<16x102xf32> -> vector<16x102xf32>
    %c0_29 = arith.constant 0 : index
    %c0_30 = arith.constant 0 : index
    %149 = vector.load %arg7[%c0_29, %c0_30] : memref<16x1xf32, #tpu.memory_space<vmem>>, vector<16x1xf32>
    %150 = vector.broadcast %149 : vector<16x1xf32> to vector<16x102xf32>
    %151 = arith.addf %148, %150 : vector<16x102xf32>
    %cst_31 = arith.constant 0.000000e+00 : f32
    %152 = vector.broadcast %cst_31 : f32 to vector<16x102xf32>
    %153 = arith.cmpf ogt, %151, %152 : vector<16x102xf32>
    %cst_32 = arith.constant 2.000000e-01 : f32
    %154 = vector.broadcast %cst_32 : f32 to vector<16x102xf32>
    %155 = arith.mulf %154, %151 : vector<16x102xf32>
    %156 = arith.select %153, %151, %155 : vector<16x102xi1>, vector<16x102xf32>
    %157 = vector.extract_strided_slice %156 {offsets = [0, 0], sizes = [16, 17], strides = [1, 1]} : vector<16x102xf32> to vector<16x17xf32>
    %cst_33 = arith.constant 0.000000e+00 : f32
    %158 = vector.broadcast %cst_33 : f32 to vector<16x3xf32>
    %cst_34 = arith.constant 0.000000e+00 : f32
    %159 = vector.broadcast %cst_34 : f32 to vector<16x3xf32>
    %160 = tpu.concatenate %158, %157, %159 in 1 : vector<16x3xf32>, vector<16x17xf32>, vector<16x3xf32> -> vector<16x23xf32>
    %161 = vector.extract_strided_slice %160 {offsets = [0, 0], sizes = [16, 17], strides = [1, 1]} : vector<16x23xf32> to vector<16x17xf32>
    %162 = vector.extract_strided_slice %160 {offsets = [0, 1], sizes = [16, 17], strides = [1, 1]} : vector<16x23xf32> to vector<16x17xf32>
    %163 = vector.extract_strided_slice %160 {offsets = [0, 2], sizes = [16, 17], strides = [1, 1]} : vector<16x23xf32> to vector<16x17xf32>
    %164 = vector.extract_strided_slice %160 {offsets = [0, 3], sizes = [16, 17], strides = [1, 1]} : vector<16x23xf32> to vector<16x17xf32>
    %165 = vector.extract_strided_slice %160 {offsets = [0, 4], sizes = [16, 17], strides = [1, 1]} : vector<16x23xf32> to vector<16x17xf32>
    %166 = vector.extract_strided_slice %160 {offsets = [0, 5], sizes = [16, 17], strides = [1, 1]} : vector<16x23xf32> to vector<16x17xf32>
    %167 = vector.extract_strided_slice %160 {offsets = [0, 6], sizes = [16, 17], strides = [1, 1]} : vector<16x23xf32> to vector<16x17xf32>
    %168 = tpu.concatenate %161, %162, %163, %164, %165, %166, %167 in 0 : vector<16x17xf32>, vector<16x17xf32>, vector<16x17xf32>, vector<16x17xf32>, vector<16x17xf32>, vector<16x17xf32>, vector<16x17xf32> -> vector<112x17xf32>
    %169 = vector.extract_strided_slice %156 {offsets = [0, 17], sizes = [16, 17], strides = [1, 1]} : vector<16x102xf32> to vector<16x17xf32>
    %cst_35 = arith.constant 0.000000e+00 : f32
    %170 = vector.broadcast %cst_35 : f32 to vector<16x3xf32>
    %cst_36 = arith.constant 0.000000e+00 : f32
    %171 = vector.broadcast %cst_36 : f32 to vector<16x3xf32>
    %172 = tpu.concatenate %170, %169, %171 in 1 : vector<16x3xf32>, vector<16x17xf32>, vector<16x3xf32> -> vector<16x23xf32>
    %173 = vector.extract_strided_slice %172 {offsets = [0, 0], sizes = [16, 17], strides = [1, 1]} : vector<16x23xf32> to vector<16x17xf32>
    %174 = vector.extract_strided_slice %172 {offsets = [0, 1], sizes = [16, 17], strides = [1, 1]} : vector<16x23xf32> to vector<16x17xf32>
    %175 = vector.extract_strided_slice %172 {offsets = [0, 2], sizes = [16, 17], strides = [1, 1]} : vector<16x23xf32> to vector<16x17xf32>
    %176 = vector.extract_strided_slice %172 {offsets = [0, 3], sizes = [16, 17], strides = [1, 1]} : vector<16x23xf32> to vector<16x17xf32>
    %177 = vector.extract_strided_slice %172 {offsets = [0, 4], sizes = [16, 17], strides = [1, 1]} : vector<16x23xf32> to vector<16x17xf32>
    %178 = vector.extract_strided_slice %172 {offsets = [0, 5], sizes = [16, 17], strides = [1, 1]} : vector<16x23xf32> to vector<16x17xf32>
    %179 = vector.extract_strided_slice %172 {offsets = [0, 6], sizes = [16, 17], strides = [1, 1]} : vector<16x23xf32> to vector<16x17xf32>
    %180 = tpu.concatenate %173, %174, %175, %176, %177, %178, %179 in 0 : vector<16x17xf32>, vector<16x17xf32>, vector<16x17xf32>, vector<16x17xf32>, vector<16x17xf32>, vector<16x17xf32>, vector<16x17xf32> -> vector<112x17xf32>
    %181 = vector.extract_strided_slice %156 {offsets = [0, 34], sizes = [16, 17], strides = [1, 1]} : vector<16x102xf32> to vector<16x17xf32>
    %cst_37 = arith.constant 0.000000e+00 : f32
    %182 = vector.broadcast %cst_37 : f32 to vector<16x3xf32>
    %cst_38 = arith.constant 0.000000e+00 : f32
    %183 = vector.broadcast %cst_38 : f32 to vector<16x3xf32>
    %184 = tpu.concatenate %182, %181, %183 in 1 : vector<16x3xf32>, vector<16x17xf32>, vector<16x3xf32> -> vector<16x23xf32>
    %185 = vector.extract_strided_slice %184 {offsets = [0, 0], sizes = [16, 17], strides = [1, 1]} : vector<16x23xf32> to vector<16x17xf32>
    %186 = vector.extract_strided_slice %184 {offsets = [0, 1], sizes = [16, 17], strides = [1, 1]} : vector<16x23xf32> to vector<16x17xf32>
    %187 = vector.extract_strided_slice %184 {offsets = [0, 2], sizes = [16, 17], strides = [1, 1]} : vector<16x23xf32> to vector<16x17xf32>
    %188 = vector.extract_strided_slice %184 {offsets = [0, 3], sizes = [16, 17], strides = [1, 1]} : vector<16x23xf32> to vector<16x17xf32>
    %189 = vector.extract_strided_slice %184 {offsets = [0, 4], sizes = [16, 17], strides = [1, 1]} : vector<16x23xf32> to vector<16x17xf32>
    %190 = vector.extract_strided_slice %184 {offsets = [0, 5], sizes = [16, 17], strides = [1, 1]} : vector<16x23xf32> to vector<16x17xf32>
    %191 = vector.extract_strided_slice %184 {offsets = [0, 6], sizes = [16, 17], strides = [1, 1]} : vector<16x23xf32> to vector<16x17xf32>
    %192 = tpu.concatenate %185, %186, %187, %188, %189, %190, %191 in 0 : vector<16x17xf32>, vector<16x17xf32>, vector<16x17xf32>, vector<16x17xf32>, vector<16x17xf32>, vector<16x17xf32>, vector<16x17xf32> -> vector<112x17xf32>
    %193 = vector.extract_strided_slice %156 {offsets = [0, 51], sizes = [16, 17], strides = [1, 1]} : vector<16x102xf32> to vector<16x17xf32>
    %cst_39 = arith.constant 0.000000e+00 : f32
    %194 = vector.broadcast %cst_39 : f32 to vector<16x3xf32>
    %cst_40 = arith.constant 0.000000e+00 : f32
    %195 = vector.broadcast %cst_40 : f32 to vector<16x3xf32>
    %196 = tpu.concatenate %194, %193, %195 in 1 : vector<16x3xf32>, vector<16x17xf32>, vector<16x3xf32> -> vector<16x23xf32>
    %197 = vector.extract_strided_slice %196 {offsets = [0, 0], sizes = [16, 17], strides = [1, 1]} : vector<16x23xf32> to vector<16x17xf32>
    %198 = vector.extract_strided_slice %196 {offsets = [0, 1], sizes = [16, 17], strides = [1, 1]} : vector<16x23xf32> to vector<16x17xf32>
    %199 = vector.extract_strided_slice %196 {offsets = [0, 2], sizes = [16, 17], strides = [1, 1]} : vector<16x23xf32> to vector<16x17xf32>
    %200 = vector.extract_strided_slice %196 {offsets = [0, 3], sizes = [16, 17], strides = [1, 1]} : vector<16x23xf32> to vector<16x17xf32>
    %201 = vector.extract_strided_slice %196 {offsets = [0, 4], sizes = [16, 17], strides = [1, 1]} : vector<16x23xf32> to vector<16x17xf32>
    %202 = vector.extract_strided_slice %196 {offsets = [0, 5], sizes = [16, 17], strides = [1, 1]} : vector<16x23xf32> to vector<16x17xf32>
    %203 = vector.extract_strided_slice %196 {offsets = [0, 6], sizes = [16, 17], strides = [1, 1]} : vector<16x23xf32> to vector<16x17xf32>
    %204 = tpu.concatenate %197, %198, %199, %200, %201, %202, %203 in 0 : vector<16x17xf32>, vector<16x17xf32>, vector<16x17xf32>, vector<16x17xf32>, vector<16x17xf32>, vector<16x17xf32>, vector<16x17xf32> -> vector<112x17xf32>
    %205 = vector.extract_strided_slice %156 {offsets = [0, 68], sizes = [16, 17], strides = [1, 1]} : vector<16x102xf32> to vector<16x17xf32>
    %cst_41 = arith.constant 0.000000e+00 : f32
    %206 = vector.broadcast %cst_41 : f32 to vector<16x3xf32>
    %cst_42 = arith.constant 0.000000e+00 : f32
    %207 = vector.broadcast %cst_42 : f32 to vector<16x3xf32>
    %208 = tpu.concatenate %206, %205, %207 in 1 : vector<16x3xf32>, vector<16x17xf32>, vector<16x3xf32> -> vector<16x23xf32>
    %209 = vector.extract_strided_slice %208 {offsets = [0, 0], sizes = [16, 17], strides = [1, 1]} : vector<16x23xf32> to vector<16x17xf32>
    %210 = vector.extract_strided_slice %208 {offsets = [0, 1], sizes = [16, 17], strides = [1, 1]} : vector<16x23xf32> to vector<16x17xf32>
    %211 = vector.extract_strided_slice %208 {offsets = [0, 2], sizes = [16, 17], strides = [1, 1]} : vector<16x23xf32> to vector<16x17xf32>
    %212 = vector.extract_strided_slice %208 {offsets = [0, 3], sizes = [16, 17], strides = [1, 1]} : vector<16x23xf32> to vector<16x17xf32>
    %213 = vector.extract_strided_slice %208 {offsets = [0, 4], sizes = [16, 17], strides = [1, 1]} : vector<16x23xf32> to vector<16x17xf32>
    %214 = vector.extract_strided_slice %208 {offsets = [0, 5], sizes = [16, 17], strides = [1, 1]} : vector<16x23xf32> to vector<16x17xf32>
    %215 = vector.extract_strided_slice %208 {offsets = [0, 6], sizes = [16, 17], strides = [1, 1]} : vector<16x23xf32> to vector<16x17xf32>
    %216 = tpu.concatenate %209, %210, %211, %212, %213, %214, %215 in 0 : vector<16x17xf32>, vector<16x17xf32>, vector<16x17xf32>, vector<16x17xf32>, vector<16x17xf32>, vector<16x17xf32>, vector<16x17xf32> -> vector<112x17xf32>
    %217 = vector.extract_strided_slice %156 {offsets = [0, 85], sizes = [16, 17], strides = [1, 1]} : vector<16x102xf32> to vector<16x17xf32>
    %cst_43 = arith.constant 0.000000e+00 : f32
    %218 = vector.broadcast %cst_43 : f32 to vector<16x3xf32>
    %cst_44 = arith.constant 0.000000e+00 : f32
    %219 = vector.broadcast %cst_44 : f32 to vector<16x3xf32>
    %220 = tpu.concatenate %218, %217, %219 in 1 : vector<16x3xf32>, vector<16x17xf32>, vector<16x3xf32> -> vector<16x23xf32>
    %221 = vector.extract_strided_slice %220 {offsets = [0, 0], sizes = [16, 17], strides = [1, 1]} : vector<16x23xf32> to vector<16x17xf32>
    %222 = vector.extract_strided_slice %220 {offsets = [0, 1], sizes = [16, 17], strides = [1, 1]} : vector<16x23xf32> to vector<16x17xf32>
    %223 = vector.extract_strided_slice %220 {offsets = [0, 2], sizes = [16, 17], strides = [1, 1]} : vector<16x23xf32> to vector<16x17xf32>
    %224 = vector.extract_strided_slice %220 {offsets = [0, 3], sizes = [16, 17], strides = [1, 1]} : vector<16x23xf32> to vector<16x17xf32>
    %225 = vector.extract_strided_slice %220 {offsets = [0, 4], sizes = [16, 17], strides = [1, 1]} : vector<16x23xf32> to vector<16x17xf32>
    %226 = vector.extract_strided_slice %220 {offsets = [0, 5], sizes = [16, 17], strides = [1, 1]} : vector<16x23xf32> to vector<16x17xf32>
    %227 = vector.extract_strided_slice %220 {offsets = [0, 6], sizes = [16, 17], strides = [1, 1]} : vector<16x23xf32> to vector<16x17xf32>
    %228 = tpu.concatenate %221, %222, %223, %224, %225, %226, %227 in 0 : vector<16x17xf32>, vector<16x17xf32>, vector<16x17xf32>, vector<16x17xf32>, vector<16x17xf32>, vector<16x17xf32>, vector<16x17xf32> -> vector<112x17xf32>
    %229 = tpu.concatenate %168, %180, %192, %204, %216, %228 in 1 : vector<112x17xf32>, vector<112x17xf32>, vector<112x17xf32>, vector<112x17xf32>, vector<112x17xf32>, vector<112x17xf32> -> vector<112x102xf32>
    %c0_45 = arith.constant 0 : index
    %c0_46 = arith.constant 0 : index
    %230 = vector.load %arg8[%c0_45, %c0_46] : memref<16x112xf32, #tpu.memory_space<vmem>>, vector<16x112xf32>
    %cst_47 = arith.constant dense<0.000000e+00> : vector<16x102xf32>
    %231 = tpu.matmul %230, %229, %cst_47 {dimension_numbers = #tpu.dot_dimension_numbers<[1], [0], [0], [1], [0, 0, 1, 1], [], []>} : vector<16x112xf32>, vector<112x102xf32>, vector<16x102xf32> -> vector<16x102xf32>
    %c0_48 = arith.constant 0 : index
    %c0_49 = arith.constant 0 : index
    %232 = vector.load %arg9[%c0_48, %c0_49] : memref<16x1xf32, #tpu.memory_space<vmem>>, vector<16x1xf32>
    %233 = vector.broadcast %232 : vector<16x1xf32> to vector<16x102xf32>
    %234 = arith.addf %231, %233 : vector<16x102xf32>
    %cst_50 = arith.constant 0.000000e+00 : f32
    %235 = vector.broadcast %cst_50 : f32 to vector<16x102xf32>
    %236 = arith.cmpf ogt, %234, %235 : vector<16x102xf32>
    %cst_51 = arith.constant 2.000000e-01 : f32
    %237 = vector.broadcast %cst_51 : f32 to vector<16x102xf32>
    %238 = arith.mulf %237, %234 : vector<16x102xf32>
    %239 = arith.select %236, %234, %238 : vector<16x102xi1>, vector<16x102xf32>
    %c0_52 = arith.constant 0 : index
    %c0_53 = arith.constant 0 : index
    %240 = vector.load %arg5[%c0_52, %c0_53] : memref<17x41xf32, #tpu.memory_space<vmem>>, vector<17x41xf32>
    %241 = vector.extract_strided_slice %239 {offsets = [0, 0], sizes = [16, 17], strides = [1, 1]} : vector<16x102xf32> to vector<16x17xf32>
    %cst_54 = arith.constant dense<0.000000e+00> : vector<16x41xf32>
    %242 = tpu.matmul %241, %240, %cst_54 {dimension_numbers = #tpu.dot_dimension_numbers<[1], [0], [0], [1], [0, 0, 1, 1], [], []>} : vector<16x17xf32>, vector<17x41xf32>, vector<16x41xf32> -> vector<16x41xf32>
    %cst_55 = arith.constant 0.000000e+00 : f32
    %243 = vector.broadcast %cst_55 : f32 to vector<16x5xf32>
    %cst_56 = arith.constant 0.000000e+00 : f32
    %244 = vector.broadcast %cst_56 : f32 to vector<16x5xf32>
    %245 = tpu.concatenate %243, %242, %244 in 1 : vector<16x5xf32>, vector<16x41xf32>, vector<16x5xf32> -> vector<16x51xf32>
    %246 = vector.extract_strided_slice %245 {offsets = [0, 0], sizes = [16, 41], strides = [1, 1]} : vector<16x51xf32> to vector<16x41xf32>
    %247 = vector.extract_strided_slice %245 {offsets = [0, 1], sizes = [16, 41], strides = [1, 1]} : vector<16x51xf32> to vector<16x41xf32>
    %248 = vector.extract_strided_slice %245 {offsets = [0, 2], sizes = [16, 41], strides = [1, 1]} : vector<16x51xf32> to vector<16x41xf32>
    %249 = vector.extract_strided_slice %245 {offsets = [0, 3], sizes = [16, 41], strides = [1, 1]} : vector<16x51xf32> to vector<16x41xf32>
    %250 = vector.extract_strided_slice %245 {offsets = [0, 4], sizes = [16, 41], strides = [1, 1]} : vector<16x51xf32> to vector<16x41xf32>
    %251 = vector.extract_strided_slice %245 {offsets = [0, 5], sizes = [16, 41], strides = [1, 1]} : vector<16x51xf32> to vector<16x41xf32>
    %252 = vector.extract_strided_slice %245 {offsets = [0, 6], sizes = [16, 41], strides = [1, 1]} : vector<16x51xf32> to vector<16x41xf32>
    %253 = vector.extract_strided_slice %245 {offsets = [0, 7], sizes = [16, 41], strides = [1, 1]} : vector<16x51xf32> to vector<16x41xf32>
    %254 = vector.extract_strided_slice %245 {offsets = [0, 8], sizes = [16, 41], strides = [1, 1]} : vector<16x51xf32> to vector<16x41xf32>
    %255 = vector.extract_strided_slice %245 {offsets = [0, 9], sizes = [16, 41], strides = [1, 1]} : vector<16x51xf32> to vector<16x41xf32>
    %256 = vector.extract_strided_slice %245 {offsets = [0, 10], sizes = [16, 41], strides = [1, 1]} : vector<16x51xf32> to vector<16x41xf32>
    %257 = tpu.concatenate %246, %247, %248, %249, %250, %251, %252, %253, %254, %255, %256 in 0 : vector<16x41xf32>, vector<16x41xf32>, vector<16x41xf32>, vector<16x41xf32>, vector<16x41xf32>, vector<16x41xf32>, vector<16x41xf32>, vector<16x41xf32>, vector<16x41xf32>, vector<16x41xf32>, vector<16x41xf32> -> vector<176x41xf32>
    %258 = vector.extract_strided_slice %239 {offsets = [0, 17], sizes = [16, 17], strides = [1, 1]} : vector<16x102xf32> to vector<16x17xf32>
    %cst_57 = arith.constant dense<0.000000e+00> : vector<16x41xf32>
    %259 = tpu.matmul %258, %240, %cst_57 {dimension_numbers = #tpu.dot_dimension_numbers<[1], [0], [0], [1], [0, 0, 1, 1], [], []>} : vector<16x17xf32>, vector<17x41xf32>, vector<16x41xf32> -> vector<16x41xf32>
    %cst_58 = arith.constant 0.000000e+00 : f32
    %260 = vector.broadcast %cst_58 : f32 to vector<16x5xf32>
    %cst_59 = arith.constant 0.000000e+00 : f32
    %261 = vector.broadcast %cst_59 : f32 to vector<16x5xf32>
    %262 = tpu.concatenate %260, %259, %261 in 1 : vector<16x5xf32>, vector<16x41xf32>, vector<16x5xf32> -> vector<16x51xf32>
    %263 = vector.extract_strided_slice %262 {offsets = [0, 0], sizes = [16, 41], strides = [1, 1]} : vector<16x51xf32> to vector<16x41xf32>
    %264 = vector.extract_strided_slice %262 {offsets = [0, 1], sizes = [16, 41], strides = [1, 1]} : vector<16x51xf32> to vector<16x41xf32>
    %265 = vector.extract_strided_slice %262 {offsets = [0, 2], sizes = [16, 41], strides = [1, 1]} : vector<16x51xf32> to vector<16x41xf32>
    %266 = vector.extract_strided_slice %262 {offsets = [0, 3], sizes = [16, 41], strides = [1, 1]} : vector<16x51xf32> to vector<16x41xf32>
    %267 = vector.extract_strided_slice %262 {offsets = [0, 4], sizes = [16, 41], strides = [1, 1]} : vector<16x51xf32> to vector<16x41xf32>
    %268 = vector.extract_strided_slice %262 {offsets = [0, 5], sizes = [16, 41], strides = [1, 1]} : vector<16x51xf32> to vector<16x41xf32>
    %269 = vector.extract_strided_slice %262 {offsets = [0, 6], sizes = [16, 41], strides = [1, 1]} : vector<16x51xf32> to vector<16x41xf32>
    %270 = vector.extract_strided_slice %262 {offsets = [0, 7], sizes = [16, 41], strides = [1, 1]} : vector<16x51xf32> to vector<16x41xf32>
    %271 = vector.extract_strided_slice %262 {offsets = [0, 8], sizes = [16, 41], strides = [1, 1]} : vector<16x51xf32> to vector<16x41xf32>
    %272 = vector.extract_strided_slice %262 {offsets = [0, 9], sizes = [16, 41], strides = [1, 1]} : vector<16x51xf32> to vector<16x41xf32>
    %273 = vector.extract_strided_slice %262 {offsets = [0, 10], sizes = [16, 41], strides = [1, 1]} : vector<16x51xf32> to vector<16x41xf32>
    %274 = tpu.concatenate %263, %264, %265, %266, %267, %268, %269, %270, %271, %272, %273 in 0 : vector<16x41xf32>, vector<16x41xf32>, vector<16x41xf32>, vector<16x41xf32>, vector<16x41xf32>, vector<16x41xf32>, vector<16x41xf32>, vector<16x41xf32>, vector<16x41xf32>, vector<16x41xf32>, vector<16x41xf32> -> vector<176x41xf32>
    %275 = tpu.concatenate %257, %274 in 1 : vector<176x41xf32>, vector<176x41xf32> -> vector<176x82xf32>
    %276 = vector.extract_strided_slice %239 {offsets = [0, 34], sizes = [16, 17], strides = [1, 1]} : vector<16x102xf32> to vector<16x17xf32>
    %cst_60 = arith.constant dense<0.000000e+00> : vector<16x41xf32>
    %277 = tpu.matmul %276, %240, %cst_60 {dimension_numbers = #tpu.dot_dimension_numbers<[1], [0], [0], [1], [0, 0, 1, 1], [], []>} : vector<16x17xf32>, vector<17x41xf32>, vector<16x41xf32> -> vector<16x41xf32>
    %cst_61 = arith.constant 0.000000e+00 : f32
    %278 = vector.broadcast %cst_61 : f32 to vector<16x5xf32>
    %cst_62 = arith.constant 0.000000e+00 : f32
    %279 = vector.broadcast %cst_62 : f32 to vector<16x5xf32>
    %280 = tpu.concatenate %278, %277, %279 in 1 : vector<16x5xf32>, vector<16x41xf32>, vector<16x5xf32> -> vector<16x51xf32>
    %281 = vector.extract_strided_slice %280 {offsets = [0, 0], sizes = [16, 41], strides = [1, 1]} : vector<16x51xf32> to vector<16x41xf32>
    %282 = vector.extract_strided_slice %280 {offsets = [0, 1], sizes = [16, 41], strides = [1, 1]} : vector<16x51xf32> to vector<16x41xf32>
    %283 = vector.extract_strided_slice %280 {offsets = [0, 2], sizes = [16, 41], strides = [1, 1]} : vector<16x51xf32> to vector<16x41xf32>
    %284 = vector.extract_strided_slice %280 {offsets = [0, 3], sizes = [16, 41], strides = [1, 1]} : vector<16x51xf32> to vector<16x41xf32>
    %285 = vector.extract_strided_slice %280 {offsets = [0, 4], sizes = [16, 41], strides = [1, 1]} : vector<16x51xf32> to vector<16x41xf32>
    %286 = vector.extract_strided_slice %280 {offsets = [0, 5], sizes = [16, 41], strides = [1, 1]} : vector<16x51xf32> to vector<16x41xf32>
    %287 = vector.extract_strided_slice %280 {offsets = [0, 6], sizes = [16, 41], strides = [1, 1]} : vector<16x51xf32> to vector<16x41xf32>
    %288 = vector.extract_strided_slice %280 {offsets = [0, 7], sizes = [16, 41], strides = [1, 1]} : vector<16x51xf32> to vector<16x41xf32>
    %289 = vector.extract_strided_slice %280 {offsets = [0, 8], sizes = [16, 41], strides = [1, 1]} : vector<16x51xf32> to vector<16x41xf32>
    %290 = vector.extract_strided_slice %280 {offsets = [0, 9], sizes = [16, 41], strides = [1, 1]} : vector<16x51xf32> to vector<16x41xf32>
    %291 = vector.extract_strided_slice %280 {offsets = [0, 10], sizes = [16, 41], strides = [1, 1]} : vector<16x51xf32> to vector<16x41xf32>
    %292 = tpu.concatenate %281, %282, %283, %284, %285, %286, %287, %288, %289, %290, %291 in 0 : vector<16x41xf32>, vector<16x41xf32>, vector<16x41xf32>, vector<16x41xf32>, vector<16x41xf32>, vector<16x41xf32>, vector<16x41xf32>, vector<16x41xf32>, vector<16x41xf32>, vector<16x41xf32>, vector<16x41xf32> -> vector<176x41xf32>
    %293 = vector.extract_strided_slice %239 {offsets = [0, 51], sizes = [16, 17], strides = [1, 1]} : vector<16x102xf32> to vector<16x17xf32>
    %cst_63 = arith.constant dense<0.000000e+00> : vector<16x41xf32>
    %294 = tpu.matmul %293, %240, %cst_63 {dimension_numbers = #tpu.dot_dimension_numbers<[1], [0], [0], [1], [0, 0, 1, 1], [], []>} : vector<16x17xf32>, vector<17x41xf32>, vector<16x41xf32> -> vector<16x41xf32>
    %cst_64 = arith.constant 0.000000e+00 : f32
    %295 = vector.broadcast %cst_64 : f32 to vector<16x5xf32>
    %cst_65 = arith.constant 0.000000e+00 : f32
    %296 = vector.broadcast %cst_65 : f32 to vector<16x5xf32>
    %297 = tpu.concatenate %295, %294, %296 in 1 : vector<16x5xf32>, vector<16x41xf32>, vector<16x5xf32> -> vector<16x51xf32>
    %298 = vector.extract_strided_slice %297 {offsets = [0, 0], sizes = [16, 41], strides = [1, 1]} : vector<16x51xf32> to vector<16x41xf32>
    %299 = vector.extract_strided_slice %297 {offsets = [0, 1], sizes = [16, 41], strides = [1, 1]} : vector<16x51xf32> to vector<16x41xf32>
    %300 = vector.extract_strided_slice %297 {offsets = [0, 2], sizes = [16, 41], strides = [1, 1]} : vector<16x51xf32> to vector<16x41xf32>
    %301 = vector.extract_strided_slice %297 {offsets = [0, 3], sizes = [16, 41], strides = [1, 1]} : vector<16x51xf32> to vector<16x41xf32>
    %302 = vector.extract_strided_slice %297 {offsets = [0, 4], sizes = [16, 41], strides = [1, 1]} : vector<16x51xf32> to vector<16x41xf32>
    %303 = vector.extract_strided_slice %297 {offsets = [0, 5], sizes = [16, 41], strides = [1, 1]} : vector<16x51xf32> to vector<16x41xf32>
    %304 = vector.extract_strided_slice %297 {offsets = [0, 6], sizes = [16, 41], strides = [1, 1]} : vector<16x51xf32> to vector<16x41xf32>
    %305 = vector.extract_strided_slice %297 {offsets = [0, 7], sizes = [16, 41], strides = [1, 1]} : vector<16x51xf32> to vector<16x41xf32>
    %306 = vector.extract_strided_slice %297 {offsets = [0, 8], sizes = [16, 41], strides = [1, 1]} : vector<16x51xf32> to vector<16x41xf32>
    %307 = vector.extract_strided_slice %297 {offsets = [0, 9], sizes = [16, 41], strides = [1, 1]} : vector<16x51xf32> to vector<16x41xf32>
    %308 = vector.extract_strided_slice %297 {offsets = [0, 10], sizes = [16, 41], strides = [1, 1]} : vector<16x51xf32> to vector<16x41xf32>
    %309 = tpu.concatenate %298, %299, %300, %301, %302, %303, %304, %305, %306, %307, %308 in 0 : vector<16x41xf32>, vector<16x41xf32>, vector<16x41xf32>, vector<16x41xf32>, vector<16x41xf32>, vector<16x41xf32>, vector<16x41xf32>, vector<16x41xf32>, vector<16x41xf32>, vector<16x41xf32>, vector<16x41xf32> -> vector<176x41xf32>
    %310 = tpu.concatenate %292, %309 in 1 : vector<176x41xf32>, vector<176x41xf32> -> vector<176x82xf32>
    %311 = vector.extract_strided_slice %239 {offsets = [0, 68], sizes = [16, 17], strides = [1, 1]} : vector<16x102xf32> to vector<16x17xf32>
    %cst_66 = arith.constant dense<0.000000e+00> : vector<16x41xf32>
    %312 = tpu.matmul %311, %240, %cst_66 {dimension_numbers = #tpu.dot_dimension_numbers<[1], [0], [0], [1], [0, 0, 1, 1], [], []>} : vector<16x17xf32>, vector<17x41xf32>, vector<16x41xf32> -> vector<16x41xf32>
    %cst_67 = arith.constant 0.000000e+00 : f32
    %313 = vector.broadcast %cst_67 : f32 to vector<16x5xf32>
    %cst_68 = arith.constant 0.000000e+00 : f32
    %314 = vector.broadcast %cst_68 : f32 to vector<16x5xf32>
    %315 = tpu.concatenate %313, %312, %314 in 1 : vector<16x5xf32>, vector<16x41xf32>, vector<16x5xf32> -> vector<16x51xf32>
    %316 = vector.extract_strided_slice %315 {offsets = [0, 0], sizes = [16, 41], strides = [1, 1]} : vector<16x51xf32> to vector<16x41xf32>
    %317 = vector.extract_strided_slice %315 {offsets = [0, 1], sizes = [16, 41], strides = [1, 1]} : vector<16x51xf32> to vector<16x41xf32>
    %318 = vector.extract_strided_slice %315 {offsets = [0, 2], sizes = [16, 41], strides = [1, 1]} : vector<16x51xf32> to vector<16x41xf32>
    %319 = vector.extract_strided_slice %315 {offsets = [0, 3], sizes = [16, 41], strides = [1, 1]} : vector<16x51xf32> to vector<16x41xf32>
    %320 = vector.extract_strided_slice %315 {offsets = [0, 4], sizes = [16, 41], strides = [1, 1]} : vector<16x51xf32> to vector<16x41xf32>
    %321 = vector.extract_strided_slice %315 {offsets = [0, 5], sizes = [16, 41], strides = [1, 1]} : vector<16x51xf32> to vector<16x41xf32>
    %322 = vector.extract_strided_slice %315 {offsets = [0, 6], sizes = [16, 41], strides = [1, 1]} : vector<16x51xf32> to vector<16x41xf32>
    %323 = vector.extract_strided_slice %315 {offsets = [0, 7], sizes = [16, 41], strides = [1, 1]} : vector<16x51xf32> to vector<16x41xf32>
    %324 = vector.extract_strided_slice %315 {offsets = [0, 8], sizes = [16, 41], strides = [1, 1]} : vector<16x51xf32> to vector<16x41xf32>
    %325 = vector.extract_strided_slice %315 {offsets = [0, 9], sizes = [16, 41], strides = [1, 1]} : vector<16x51xf32> to vector<16x41xf32>
    %326 = vector.extract_strided_slice %315 {offsets = [0, 10], sizes = [16, 41], strides = [1, 1]} : vector<16x51xf32> to vector<16x41xf32>
    %327 = tpu.concatenate %316, %317, %318, %319, %320, %321, %322, %323, %324, %325, %326 in 0 : vector<16x41xf32>, vector<16x41xf32>, vector<16x41xf32>, vector<16x41xf32>, vector<16x41xf32>, vector<16x41xf32>, vector<16x41xf32>, vector<16x41xf32>, vector<16x41xf32>, vector<16x41xf32>, vector<16x41xf32> -> vector<176x41xf32>
    %328 = vector.extract_strided_slice %239 {offsets = [0, 85], sizes = [16, 17], strides = [1, 1]} : vector<16x102xf32> to vector<16x17xf32>
    %cst_69 = arith.constant dense<0.000000e+00> : vector<16x41xf32>
    %329 = tpu.matmul %328, %240, %cst_69 {dimension_numbers = #tpu.dot_dimension_numbers<[1], [0], [0], [1], [0, 0, 1, 1], [], []>} : vector<16x17xf32>, vector<17x41xf32>, vector<16x41xf32> -> vector<16x41xf32>
    %cst_70 = arith.constant 0.000000e+00 : f32
    %330 = vector.broadcast %cst_70 : f32 to vector<16x5xf32>
    %cst_71 = arith.constant 0.000000e+00 : f32
    %331 = vector.broadcast %cst_71 : f32 to vector<16x5xf32>
    %332 = tpu.concatenate %330, %329, %331 in 1 : vector<16x5xf32>, vector<16x41xf32>, vector<16x5xf32> -> vector<16x51xf32>
    %333 = vector.extract_strided_slice %332 {offsets = [0, 0], sizes = [16, 41], strides = [1, 1]} : vector<16x51xf32> to vector<16x41xf32>
    %334 = vector.extract_strided_slice %332 {offsets = [0, 1], sizes = [16, 41], strides = [1, 1]} : vector<16x51xf32> to vector<16x41xf32>
    %335 = vector.extract_strided_slice %332 {offsets = [0, 2], sizes = [16, 41], strides = [1, 1]} : vector<16x51xf32> to vector<16x41xf32>
    %336 = vector.extract_strided_slice %332 {offsets = [0, 3], sizes = [16, 41], strides = [1, 1]} : vector<16x51xf32> to vector<16x41xf32>
    %337 = vector.extract_strided_slice %332 {offsets = [0, 4], sizes = [16, 41], strides = [1, 1]} : vector<16x51xf32> to vector<16x41xf32>
    %338 = vector.extract_strided_slice %332 {offsets = [0, 5], sizes = [16, 41], strides = [1, 1]} : vector<16x51xf32> to vector<16x41xf32>
    %339 = vector.extract_strided_slice %332 {offsets = [0, 6], sizes = [16, 41], strides = [1, 1]} : vector<16x51xf32> to vector<16x41xf32>
    %340 = vector.extract_strided_slice %332 {offsets = [0, 7], sizes = [16, 41], strides = [1, 1]} : vector<16x51xf32> to vector<16x41xf32>
    %341 = vector.extract_strided_slice %332 {offsets = [0, 8], sizes = [16, 41], strides = [1, 1]} : vector<16x51xf32> to vector<16x41xf32>
    %342 = vector.extract_strided_slice %332 {offsets = [0, 9], sizes = [16, 41], strides = [1, 1]} : vector<16x51xf32> to vector<16x41xf32>
    %343 = vector.extract_strided_slice %332 {offsets = [0, 10], sizes = [16, 41], strides = [1, 1]} : vector<16x51xf32> to vector<16x41xf32>
    %344 = tpu.concatenate %333, %334, %335, %336, %337, %338, %339, %340, %341, %342, %343 in 0 : vector<16x41xf32>, vector<16x41xf32>, vector<16x41xf32>, vector<16x41xf32>, vector<16x41xf32>, vector<16x41xf32>, vector<16x41xf32>, vector<16x41xf32>, vector<16x41xf32>, vector<16x41xf32>, vector<16x41xf32> -> vector<176x41xf32>
    %345 = tpu.concatenate %327, %344 in 1 : vector<176x41xf32>, vector<176x41xf32> -> vector<176x82xf32>
    %346 = tpu.concatenate %275, %310, %345 in 0 : vector<176x82xf32>, vector<176x82xf32>, vector<176x82xf32> -> vector<528x82xf32>
    %c0_72 = arith.constant 0 : index
    %c0_73 = arith.constant 0 : index
    %347 = vector.load %arg10[%c0_72, %c0_73] : memref<16x528xf32, #tpu.memory_space<vmem>>, vector<16x528xf32>
    %cst_74 = arith.constant dense<0.000000e+00> : vector<16x82xf32>
    %348 = tpu.matmul %347, %346, %cst_74 {dimension_numbers = #tpu.dot_dimension_numbers<[1], [0], [0], [1], [0, 0, 1, 1], [], []>} : vector<16x528xf32>, vector<528x82xf32>, vector<16x82xf32> -> vector<16x82xf32>
    %c0_75 = arith.constant 0 : index
    %c0_76 = arith.constant 0 : index
    %349 = vector.load %arg11[%c0_75, %c0_76] : memref<16x1xf32, #tpu.memory_space<vmem>>, vector<16x1xf32>
    %350 = vector.broadcast %349 : vector<16x1xf32> to vector<16x82xf32>
    %351 = arith.addf %348, %350 : vector<16x82xf32>
    %cst_77 = arith.constant 0.000000e+00 : f32
    %352 = vector.broadcast %cst_77 : f32 to vector<16x82xf32>
    %353 = arith.cmpf ogt, %351, %352 : vector<16x82xf32>
    %cst_78 = arith.constant 2.000000e-01 : f32
    %354 = vector.broadcast %cst_78 : f32 to vector<16x82xf32>
    %355 = arith.mulf %354, %351 : vector<16x82xf32>
    %356 = arith.select %353, %351, %355 : vector<16x82xi1>, vector<16x82xf32>
    %357 = vector.extract_strided_slice %356 {offsets = [0, 0], sizes = [16, 41], strides = [1, 1]} : vector<16x82xf32> to vector<16x41xf32>
    %cst_79 = arith.constant 0.000000e+00 : f32
    %358 = vector.broadcast %cst_79 : f32 to vector<16x3xf32>
    %cst_80 = arith.constant 0.000000e+00 : f32
    %359 = vector.broadcast %cst_80 : f32 to vector<16x3xf32>
    %360 = tpu.concatenate %358, %357, %359 in 1 : vector<16x3xf32>, vector<16x41xf32>, vector<16x3xf32> -> vector<16x47xf32>
    %361 = vector.extract_strided_slice %360 {offsets = [0, 0], sizes = [16, 41], strides = [1, 1]} : vector<16x47xf32> to vector<16x41xf32>
    %362 = vector.extract_strided_slice %360 {offsets = [0, 1], sizes = [16, 41], strides = [1, 1]} : vector<16x47xf32> to vector<16x41xf32>
    %363 = vector.extract_strided_slice %360 {offsets = [0, 2], sizes = [16, 41], strides = [1, 1]} : vector<16x47xf32> to vector<16x41xf32>
    %364 = vector.extract_strided_slice %360 {offsets = [0, 3], sizes = [16, 41], strides = [1, 1]} : vector<16x47xf32> to vector<16x41xf32>
    %365 = vector.extract_strided_slice %360 {offsets = [0, 4], sizes = [16, 41], strides = [1, 1]} : vector<16x47xf32> to vector<16x41xf32>
    %366 = vector.extract_strided_slice %360 {offsets = [0, 5], sizes = [16, 41], strides = [1, 1]} : vector<16x47xf32> to vector<16x41xf32>
    %367 = vector.extract_strided_slice %360 {offsets = [0, 6], sizes = [16, 41], strides = [1, 1]} : vector<16x47xf32> to vector<16x41xf32>
    %368 = tpu.concatenate %361, %362, %363, %364, %365, %366, %367 in 0 : vector<16x41xf32>, vector<16x41xf32>, vector<16x41xf32>, vector<16x41xf32>, vector<16x41xf32>, vector<16x41xf32>, vector<16x41xf32> -> vector<112x41xf32>
    %369 = vector.extract_strided_slice %356 {offsets = [0, 41], sizes = [16, 41], strides = [1, 1]} : vector<16x82xf32> to vector<16x41xf32>
    %cst_81 = arith.constant 0.000000e+00 : f32
    %370 = vector.broadcast %cst_81 : f32 to vector<16x3xf32>
    %cst_82 = arith.constant 0.000000e+00 : f32
    %371 = vector.broadcast %cst_82 : f32 to vector<16x3xf32>
    %372 = tpu.concatenate %370, %369, %371 in 1 : vector<16x3xf32>, vector<16x41xf32>, vector<16x3xf32> -> vector<16x47xf32>
    %373 = vector.extract_strided_slice %372 {offsets = [0, 0], sizes = [16, 41], strides = [1, 1]} : vector<16x47xf32> to vector<16x41xf32>
    %374 = vector.extract_strided_slice %372 {offsets = [0, 1], sizes = [16, 41], strides = [1, 1]} : vector<16x47xf32> to vector<16x41xf32>
    %375 = vector.extract_strided_slice %372 {offsets = [0, 2], sizes = [16, 41], strides = [1, 1]} : vector<16x47xf32> to vector<16x41xf32>
    %376 = vector.extract_strided_slice %372 {offsets = [0, 3], sizes = [16, 41], strides = [1, 1]} : vector<16x47xf32> to vector<16x41xf32>
    %377 = vector.extract_strided_slice %372 {offsets = [0, 4], sizes = [16, 41], strides = [1, 1]} : vector<16x47xf32> to vector<16x41xf32>
    %378 = vector.extract_strided_slice %372 {offsets = [0, 5], sizes = [16, 41], strides = [1, 1]} : vector<16x47xf32> to vector<16x41xf32>
    %379 = vector.extract_strided_slice %372 {offsets = [0, 6], sizes = [16, 41], strides = [1, 1]} : vector<16x47xf32> to vector<16x41xf32>
    %380 = tpu.concatenate %373, %374, %375, %376, %377, %378, %379 in 0 : vector<16x41xf32>, vector<16x41xf32>, vector<16x41xf32>, vector<16x41xf32>, vector<16x41xf32>, vector<16x41xf32>, vector<16x41xf32> -> vector<112x41xf32>
    %381 = tpu.concatenate %368, %380 in 1 : vector<112x41xf32>, vector<112x41xf32> -> vector<112x82xf32>
    %c0_83 = arith.constant 0 : index
    %c0_84 = arith.constant 0 : index
    %382 = vector.load %arg12[%c0_83, %c0_84] : memref<16x112xf32, #tpu.memory_space<vmem>>, vector<16x112xf32>
    %cst_85 = arith.constant dense<0.000000e+00> : vector<16x82xf32>
    %383 = tpu.matmul %382, %381, %cst_85 {dimension_numbers = #tpu.dot_dimension_numbers<[1], [0], [0], [1], [0, 0, 1, 1], [], []>} : vector<16x112xf32>, vector<112x82xf32>, vector<16x82xf32> -> vector<16x82xf32>
    %c0_86 = arith.constant 0 : index
    %c0_87 = arith.constant 0 : index
    %384 = vector.load %arg13[%c0_86, %c0_87] : memref<16x1xf32, #tpu.memory_space<vmem>>, vector<16x1xf32>
    %385 = vector.broadcast %384 : vector<16x1xf32> to vector<16x82xf32>
    %386 = arith.addf %383, %385 : vector<16x82xf32>
    %cst_88 = arith.constant 0.000000e+00 : f32
    %387 = vector.broadcast %cst_88 : f32 to vector<16x82xf32>
    %388 = arith.cmpf ogt, %386, %387 : vector<16x82xf32>
    %cst_89 = arith.constant 2.000000e-01 : f32
    %389 = vector.broadcast %cst_89 : f32 to vector<16x82xf32>
    %390 = arith.mulf %389, %386 : vector<16x82xf32>
    %391 = arith.select %388, %386, %390 : vector<16x82xi1>, vector<16x82xf32>
    %c0_90 = arith.constant 0 : index
    %c0_91 = arith.constant 0 : index
    %392 = vector.load %arg14[%c0_90, %c0_91] : memref<16x41xf32, #tpu.memory_space<vmem>>, vector<16x41xf32>
    %c0_92 = arith.constant 0 : index
    %c0_93 = arith.constant 0 : index
    %393 = vector.load %arg15[%c0_92, %c0_93] : memref<16x41xf32, #tpu.memory_space<vmem>>, vector<16x41xf32>
    %c0_94 = arith.constant 0 : index
    %c0_95 = arith.constant 0 : index
    %394 = vector.load %arg16[%c0_94, %c0_95] : memref<41x128xf32, #tpu.memory_space<vmem>>, vector<41x128xf32>
    %c0_96 = arith.constant 0 : index
    %c0_97 = arith.constant 0 : index
    %395 = vector.load %arg17[%c0_96, %c0_97] : memref<16x128xf32, #tpu.memory_space<vmem>>, vector<16x128xf32>
    %c0_98 = arith.constant 0 : index
    %c0_99 = arith.constant 0 : index
    %396 = vector.load %arg18[%c0_98, %c0_99] : memref<128x8xf32, #tpu.memory_space<vmem>>, vector<128x8xf32>
    %397 = vector.extract_strided_slice %391 {offsets = [0, 0], sizes = [16, 41], strides = [1, 1]} : vector<16x82xf32> to vector<16x41xf32>
    %398 = arith.mulf %397, %392 : vector<16x41xf32>
    %399 = arith.addf %398, %393 : vector<16x41xf32>
    %cst_100 = arith.constant 0.000000e+00 : f32
    %400 = vector.broadcast %cst_100 : f32 to vector<16x41xf32>
    %401 = arith.cmpf ogt, %399, %400 : vector<16x41xf32>
    %cst_101 = arith.constant 2.000000e-01 : f32
    %402 = vector.broadcast %cst_101 : f32 to vector<16x41xf32>
    %403 = arith.mulf %402, %399 : vector<16x41xf32>
    %404 = arith.select %401, %399, %403 : vector<16x41xi1>, vector<16x41xf32>
    %cst_102 = arith.constant dense<0.000000e+00> : vector<16x128xf32>
    %405 = tpu.matmul %404, %394, %cst_102 {dimension_numbers = #tpu.dot_dimension_numbers<[1], [0], [0], [1], [0, 0, 1, 1], [], []>} : vector<16x41xf32>, vector<41x128xf32>, vector<16x128xf32> -> vector<16x128xf32>
    %406 = arith.mulf %405, %395 : vector<16x128xf32>
    %cst_103 = arith.constant dense<0.000000e+00> : vector<128xf32>
    %407 = vector.multi_reduction <add>, %406, %cst_103 [0] : vector<16x128xf32> to vector<128xf32>
    %408 = vector.shape_cast %407 : vector<128xf32> to vector<1x128xf32>
    %cst_104 = arith.constant dense<0.000000e+00> : vector<1x8xf32>
    %409 = tpu.matmul %408, %396, %cst_104 {dimension_numbers = #tpu.dot_dimension_numbers<[1], [0], [0], [1], [0, 0, 1, 1], [], []>} : vector<1x128xf32>, vector<128x8xf32>, vector<1x8xf32> -> vector<1x8xf32>
    %410 = vector.extract_strided_slice %391 {offsets = [0, 41], sizes = [16, 41], strides = [1, 1]} : vector<16x82xf32> to vector<16x41xf32>
    %411 = arith.mulf %410, %392 : vector<16x41xf32>
    %412 = arith.addf %411, %393 : vector<16x41xf32>
    %cst_105 = arith.constant 0.000000e+00 : f32
    %413 = vector.broadcast %cst_105 : f32 to vector<16x41xf32>
    %414 = arith.cmpf ogt, %412, %413 : vector<16x41xf32>
    %cst_106 = arith.constant 2.000000e-01 : f32
    %415 = vector.broadcast %cst_106 : f32 to vector<16x41xf32>
    %416 = arith.mulf %415, %412 : vector<16x41xf32>
    %417 = arith.select %414, %412, %416 : vector<16x41xi1>, vector<16x41xf32>
    %cst_107 = arith.constant dense<0.000000e+00> : vector<16x128xf32>
    %418 = tpu.matmul %417, %394, %cst_107 {dimension_numbers = #tpu.dot_dimension_numbers<[1], [0], [0], [1], [0, 0, 1, 1], [], []>} : vector<16x41xf32>, vector<41x128xf32>, vector<16x128xf32> -> vector<16x128xf32>
    %419 = arith.mulf %418, %395 : vector<16x128xf32>
    %cst_108 = arith.constant dense<0.000000e+00> : vector<128xf32>
    %420 = vector.multi_reduction <add>, %419, %cst_108 [0] : vector<16x128xf32> to vector<128xf32>
    %421 = vector.shape_cast %420 : vector<128xf32> to vector<1x128xf32>
    %cst_109 = arith.constant dense<0.000000e+00> : vector<1x8xf32>
    %422 = tpu.matmul %421, %396, %cst_109 {dimension_numbers = #tpu.dot_dimension_numbers<[1], [0], [0], [1], [0, 0, 1, 1], [], []>} : vector<1x128xf32>, vector<128x8xf32>, vector<1x8xf32> -> vector<1x8xf32>
    %423 = tpu.concatenate %409, %422 in 0 : vector<1x8xf32>, vector<1x8xf32> -> vector<2x8xf32>
    %c0_110 = arith.constant 0 : index
    %c0_111 = arith.constant 0 : index
    %424 = vector.load %arg19[%c0_110, %c0_111] : memref<1x8xf32, #tpu.memory_space<vmem>>, vector<1x8xf32>
    %425 = vector.broadcast %424 : vector<1x8xf32> to vector<2x8xf32>
    %426 = arith.addf %423, %425 : vector<2x8xf32>
    %cst_112 = arith.constant dense<0xFF800000> : vector<2xf32>
    %427 = vector.multi_reduction <maximumf>, %426, %cst_112 [1] : vector<2x8xf32> to vector<2xf32>
    %428 = vector.shape_cast %427 : vector<2xf32> to vector<2x1xf32>
    %429 = vector.broadcast %428 : vector<2x1xf32> to vector<2x8xf32>
    %430 = arith.subf %426, %429 : vector<2x8xf32>
    %431 = math.exp %430 : vector<2x8xf32>
    %cst_113 = arith.constant dense<0.000000e+00> : vector<2xf32>
    %432 = vector.multi_reduction <add>, %431, %cst_113 [1] : vector<2x8xf32> to vector<2xf32>
    %433 = vector.shape_cast %432 : vector<2xf32> to vector<2x1xf32>
    %434 = vector.broadcast %433 : vector<2x1xf32> to vector<2x8xf32>
    %435 = arith.divf %431, %434 : vector<2x8xf32>
    %c0_114 = arith.constant 0 : index
    %c0_115 = arith.constant 0 : index
    %436 = vector.load %arg20[%c0_114, %c0_115] : memref<2x8xf32, #tpu.memory_space<vmem>>, vector<2x8xf32>
    tpu.vector_store %arg20[%c0_114, %c0_115], %435 {strides = array<i32>} : memref<2x8xf32, #tpu.memory_space<vmem>>, vector<2x8xf32>,
    return
  }
}

</mosaic_0001>

<llo_original>
// kernel: forward.1
$region0: #{forward.1}
  #allocation0 [shape = 'u32[]', space=smem, size = 0x4, offset = 0x4, fixed_abs, tag = 'smem constant byte address 0x4 - core index']
  #allocation1 [shape = 'u32[72,128]{1,0:T(1,128)}', space=vmem, size = 0x9000, scoped, tag = 'internal scratch']
  %s0 = inlined_call_operand.vmem [shape: f32[2,4,16], index: 0, kind: input, shape index: {}]
  %s1 = inlined_call_operand.vmem [shape: f32[2,4,16], index: 1, kind: input, shape index: {}]
  %s2 = inlined_call_operand.vmem [shape: f32[2,4,16], index: 2, kind: input, shape index: {}]
  %s3 = inlined_call_operand.vmem [shape: f32[16,17], index: 3, kind: input, shape index: {}]
  %s4 = inlined_call_operand.vmem [shape: f32[16,17], index: 4, kind: input, shape index: {}]
  %s5 = inlined_call_operand.vmem [shape: f32[17,41], index: 5, kind: input, shape index: {}]
  %s6 = inlined_call_operand.hbm [shape: f32[16,44], index: 6, kind: input, shape index: {}]
  %s7 = inlined_call_operand.vmem [shape: f32[16,1], index: 7, kind: input, shape index: {}]
  %s8 = inlined_call_operand.hbm [shape: f32[16,112], index: 8, kind: input, shape index: {}]
  %s9 = inlined_call_operand.vmem [shape: f32[16,1], index: 9, kind: input, shape index: {}]
  %s10 = inlined_call_operand.vmem [shape: f32[16,528], index: 10, kind: input, shape index: {}]
  %s11 = inlined_call_operand.vmem [shape: f32[16,1], index: 11, kind: input, shape index: {}]
  %s12 = inlined_call_operand.hbm [shape: f32[16,112], index: 12, kind: input, shape index: {}]
  %s13 = inlined_call_operand.vmem [shape: f32[16,1], index: 13, kind: input, shape index: {}]
  %s14 = inlined_call_operand.hbm [shape: f32[16,41], index: 14, kind: input, shape index: {}]
  %s15 = inlined_call_operand.hbm [shape: f32[16,41], index: 15, kind: input, shape index: {}]
  %s16 = inlined_call_operand.vmem [shape: f32[41,128], index: 16, kind: input, shape index: {}]
  %s17 = inlined_call_operand.hbm [shape: f32[16,128], index: 17, kind: input, shape index: {}]
  %s18 = inlined_call_operand.vmem [shape: f32[128,8], index: 18, kind: input, shape index: {}]
  %s19 = inlined_call_operand.vmem [shape: f32[1,8], index: 19, kind: input, shape index: {}]
  %s20 = inlined_call_operand.hbm [shape: f32[2,8], index: 20, kind: output, shape index: {}]
  %s21 = sld [smem:[#allocation0]]
  $region114: #{forward.1} parent=0
    _
  %s23 = ssub.s32 1, %s21
  %s24 = scalar_select 0, %s23, %s21
  $region1: #{forward.1} parent=0
    #allocation2 [shape = 'u8[8192]{0}', space=vmem, size = 0x2000, scoped, tag = 'input window, operand 6, single buffered']
    #allocation3 [shape = 's32[1]{0}', space=sflag, size = 0x4, scoped, tag = 'scoped memory for forward.1']
    #allocation4 [shape = 's32[1]{0}', space=sflag, size = 0x4, scoped, tag = 'scoped memory for forward.1']
    #allocation5 [shape = 'u8[8192]{0}', space=vmem, size = 0x2000, scoped, tag = 'input window, operand 8, single buffered']
    #allocation6 [shape = 's32[1]{0}', space=sflag, size = 0x4, scoped, tag = 'scoped memory for forward.1']
    #allocation7 [shape = 'u8[8192]{0}', space=vmem, size = 0x2000, scoped, tag = 'input window, operand 12, single buffered']
    #allocation8 [shape = 'u8[8192]{0}', space=vmem, size = 0x2000, scoped, tag = 'input window, operand 14, single buffered']
    #allocation9 [shape = 's32[1]{0}', space=sflag, size = 0x4, scoped, tag = 'scoped memory for forward.1']
    #allocation10 [shape = 'u8[8192]{0}', space=vmem, size = 0x2000, scoped, tag = 'input window, operand 15, single buffered']
    #allocation11 [shape = 'u8[8192]{0}', space=vmem, size = 0x2000, scoped, tag = 'input window, operand 17, single buffered']
    #allocation12 [shape = 's32[1]{0}', space=sflag, size = 0x4, scoped, tag = 'scoped memory for forward.1']
    #allocation13 [shape = 'u8[1024]{0}', space=vmem, size = 0x400, scoped, tag = 'output window, operand 0, single buffered']
    %25 = vsyncpa [#allocation3], 0
    %26 = vsyncpa [#allocation6], 0
    %27 = vsyncpa [#allocation9], 0
    %28 = vsyncpa [#allocation12], 0
    %29 = vsyncpa [#allocation4], 0
    // Predicated region
    $region2: #{forward.1} parent=1 // pred_check
      _
    $region3: #{forward.1} parent=1 // pred_check_branch
      %31 = sbr.rel (0) target = $region5
    $region4: #{forward.1} parent=1 // pred_region
      _
    $region5: #{forward.1} parent=1 // pred_fallthru
      _
    // Predicated region
    $region6: #{forward.1} parent=1 // pred_check
      _
    $region7: #{forward.1} parent=1 // pred_check_branch
      %33 = sbr.rel (0) target = $region9
    $region8: #{forward.1} parent=1 // pred_region
      _
    $region9: #{forward.1} parent=1 // pred_fallthru
      _
    // Predicated region
    $region10: #{forward.1} parent=1 // pred_check
      _
    $region11: #{forward.1} parent=1 // pred_check_branch
      %35 = sbr.rel (0) target = $region13
    $region12: #{forward.1} parent=1 // pred_region
      _
    $region13: #{forward.1} parent=1 // pred_fallthru
      _
    // Predicated region
    $region14: #{forward.1} parent=1 // pred_check
      _
    $region15: #{forward.1} parent=1 // pred_check_branch
      %37 = sbr.rel (0) target = $region17
    $region16: #{forward.1} parent=1 // pred_region
      _
    $region17: #{forward.1} parent=1 // pred_fallthru
      _
    // Predicated region
    $region18: #{forward.1} parent=1 // pred_check
      _
    $region19: #{forward.1} parent=1 // pred_check_branch
      %39 = sbr.rel (0) target = $region21
    $region20: #{forward.1} parent=1 // pred_region
      _
    $region21: #{forward.1} parent=1 // pred_fallthru
      _
    // Predicated region
    $region22: #{forward.1} parent=1 // pred_check
      _
    $region23: #{forward.1} parent=1 // pred_check_branch
      %41 = sbr.rel (0) target = $region25
    $region24: #{forward.1} parent=1 // pred_region
      _
    $region25: #{forward.1} parent=1 // pred_fallthru
      _
    // Predicated region
    $region26: #{forward.1} parent=1 // pred_check
      _
    $region27: #{forward.1} parent=1 // pred_check_branch
      %43 = sbr.rel (0) target = $region29
    $region28: #{forward.1} parent=1 // pred_region
      %45 = vsyncadd [#allocation3], 0
      %s46 = sshll.u32 %s6, 4
      %s47 = int_to_ptr.hbm [resolvable:$true] %s46
      %s48 = sshll.u32 [#allocation2], 4
      %s49 = int_to_ptr.vmem [resolvable:$true] %s48
      %54 = dma.hbm_to_vmem [thread:$0]  %s47, 256, %s49, [#allocation3], 128, 128, 8
    $region29: #{forward.1} parent=1 // pred_fallthru
      _
    // Predicated region
    $region30: #{forward.1} parent=1 // pred_check
      _
    $region31: #{forward.1} parent=1 // pred_check_branch
      %56 = sbr.rel (0) target = $region33
    $region32: #{forward.1} parent=1 // pred_region
      _
    $region33: #{forward.1} parent=1 // pred_fallthru
      _
    // Predicated region
    $region34: #{forward.1} parent=1 // pred_check
      _
    $region35: #{forward.1} parent=1 // pred_check_branch
      %58 = sbr.rel (0) target = $region37
    $region36: #{forward.1} parent=1 // pred_region
      %60 = vsyncadd [#allocation6], 0
      %s61 = sshll.u32 %s8, 4
      %s62 = int_to_ptr.hbm [resolvable:$true] %s61
      %s63 = sshll.u32 [#allocation5], 4
      %s64 = int_to_ptr.vmem [resolvable:$true] %s63
      %69 = dma.hbm_to_vmem [thread:$0]  %s62, 256, %s64, [#allocation6], 128, 128, 8
    $region37: #{forward.1} parent=1 // pred_fallthru
      _
    // Predicated region
    $region38: #{forward.1} parent=1 // pred_check
      _
    $region39: #{forward.1} parent=1 // pred_check_branch
      %71 = sbr.rel (0) target = $region41
    $region40: #{forward.1} parent=1 // pred_region
      _
    $region41: #{forward.1} parent=1 // pred_fallthru
      _
    // Predicated region
    $region42: #{forward.1} parent=1 // pred_check
      _
    $region43: #{forward.1} parent=1 // pred_check_branch
      %73 = sbr.rel (0) target = $region45
    $region44: #{forward.1} parent=1 // pred_region
      _
    $region45: #{forward.1} parent=1 // pred_fallthru
      _
    // Predicated region
    $region46: #{forward.1} parent=1 // pred_check
      _
    $region47: #{forward.1} parent=1 // pred_check_branch
      %75 = sbr.rel (0) target = $region49
    $region48: #{forward.1} parent=1 // pred_region
      _
    $region49: #{forward.1} parent=1 // pred_fallthru
      _
    // Predicated region
    $region50: #{forward.1} parent=1 // pred_check
      _
    $region51: #{forward.1} parent=1 // pred_check_branch
      %77 = sbr.rel (0) target = $region53
    $region52: #{forward.1} parent=1 // pred_region
      %79 = vsyncadd [#allocation6], 0
      %s80 = sshll.u32 %s12, 4
      %s81 = int_to_ptr.hbm [resolvable:$true] %s80
      %s82 = sshll.u32 [#allocation7], 4
      %s83 = int_to_ptr.vmem [resolvable:$true] %s82
      %88 = dma.hbm_to_vmem [thread:$0]  %s81, 256, %s83, [#allocation6], 128, 128, 8
    $region53: #{forward.1} parent=1 // pred_fallthru
      _
    // Predicated region
    $region54: #{forward.1} parent=1 // pred_check
      _
    $region55: #{forward.1} parent=1 // pred_check_branch
      %90 = sbr.rel (0) target = $region57
    $region56: #{forward.1} parent=1 // pred_region
      _
    $region57: #{forward.1} parent=1 // pred_fallthru
      _
    // Predicated region
    $region58: #{forward.1} parent=1 // pred_check
      _
    $region59: #{forward.1} parent=1 // pred_check_branch
      %92 = sbr.rel (0) target = $region61
    $region60: #{forward.1} parent=1 // pred_region
      %94 = vsyncadd [#allocation9], 0
      %s95 = sshll.u32 %s14, 4
      %s96 = int_to_ptr.hbm [resolvable:$true] %s95
      %s97 = sshll.u32 [#allocation8], 4
      %s98 = int_to_ptr.vmem [resolvable:$true] %s97
      %103 = dma.hbm_to_vmem [thread:$0]  %s96, 256, %s98, [#allocation9], 128, 128, 8
    $region61: #{forward.1} parent=1 // pred_fallthru
      _
    // Predicated region
    $region62: #{forward.1} parent=1 // pred_check
      _
    $region63: #{forward.1} parent=1 // pred_check_branch
      %105 = sbr.rel (0) target = $region65
    $region64: #{forward.1} parent=1 // pred_region
      %107 = vsyncadd [#allocation9], 0
      %s108 = sshll.u32 %s15, 4
      %s109 = int_to_ptr.hbm [resolvable:$true] %s108
      %s110 = sshll.u32 [#allocation10], 4
      %s111 = int_to_ptr.vmem [resolvable:$true] %s110
      %116 = dma.hbm_to_vmem [thread:$0]  %s109, 256, %s111, [#allocation9], 128, 128, 8
    $region65: #{forward.1} parent=1 // pred_fallthru
      _
    // Predicated region
    $region66: #{forward.1} parent=1 // pred_check
      _
    $region67: #{forward.1} parent=1 // pred_check_branch
      %118 = sbr.rel (0) target = $region69
    $region68: #{forward.1} parent=1 // pred_region
      _
    $region69: #{forward.1} parent=1 // pred_fallthru
      _
    // Predicated region
    $region70: #{forward.1} parent=1 // pred_check
      _
    $region71: #{forward.1} parent=1 // pred_check_branch
      %120 = sbr.rel (0) target = $region73
    $region72: #{forward.1} parent=1 // pred_region
      %122 = vsyncadd [#allocation12], 0
      %s123 = sshll.u32 %s17, 4
      %s124 = int_to_ptr.hbm [resolvable:$true] %s123
      %s125 = sshll.u32 [#allocation11], 4
      %s126 = int_to_ptr.vmem [resolvable:$true] %s125
      %131 = dma.hbm_to_vmem [thread:$0]  %s124, 256, %s126, [#allocation12], 128, 128, 8
    $region73: #{forward.1} parent=1 // pred_fallthru
      _
    // Predicated region
    $region74: #{forward.1} parent=1 // pred_check
      _
    $region75: #{forward.1} parent=1 // pred_check_branch
      %133 = sbr.rel (0) target = $region77
    $region76: #{forward.1} parent=1 // pred_region
      _
    $region77: #{forward.1} parent=1 // pred_fallthru
      _
    // Predicated region
    $region78: #{forward.1} parent=1 // pred_check
      _
    $region79: #{forward.1} parent=1 // pred_check_branch
      %135 = sbr.rel (0) target = $region81
    $region80: #{forward.1} parent=1 // pred_region
      _
    $region81: #{forward.1} parent=1 // pred_fallthru
      _
    // Predicated region
    $region82: #{forward.1} parent=1 // pred_check
      _
    $region83: #{forward.1} parent=1 // pred_check_branch
      %137 = sbr.rel (0) target = $region85
    $region84: #{forward.1} parent=1 // pred_region
      %139 = dma.done [#allocation3], 256
    $region85: #{forward.1} parent=1 // pred_fallthru
      _
    // Predicated region
    $region86: #{forward.1} parent=1 // pred_check
      _
    $region87: #{forward.1} parent=1 // pred_check_branch
      %141 = sbr.rel (0) target = $region89
    $region88: #{forward.1} parent=1 // pred_region
      %143 = dma.done [#allocation6], 256
    $region89: #{forward.1} parent=1 // pred_fallthru
      _
    // Predicated region
    $region90: #{forward.1} parent=1 // pred_check
      _
    $region91: #{forward.1} parent=1 // pred_check_branch
      %145 = sbr.rel (0) target = $region93
    $region92: #{forward.1} parent=1 // pred_region
      %147 = dma.done [#allocation6], 256
    $region93: #{forward.1} parent=1 // pred_fallthru
      _
    // Predicated region
    $region94: #{forward.1} parent=1 // pred_check
      _
    $region95: #{forward.1} parent=1 // pred_check_branch
      %149 = sbr.rel (0) target = $region97
    $region96: #{forward.1} parent=1 // pred_region
      %151 = dma.done [#allocation9], 256
    $region97: #{forward.1} parent=1 // pred_fallthru
      _
    // Predicated region
    $region98: #{forward.1} parent=1 // pred_check
      _
    $region99: #{forward.1} parent=1 // pred_check_branch
      %153 = sbr.rel (0) target = $region101
    $region100: #{forward.1} parent=1 // pred_region
      %155 = dma.done [#allocation9], 256
    $region101: #{forward.1} parent=1 // pred_fallthru
      _
    // Predicated region
    $region102: #{forward.1} parent=1 // pred_check
      _
    $region103: #{forward.1} parent=1 // pred_check_branch
      %157 = sbr.rel (0) target = $region105
    $region104: #{forward.1} parent=1 // pred_region
      %159 = dma.done [#allocation12], 256
    $region105: #{forward.1} parent=1 // pred_fallthru
      _
    %v160 = vld [vmem:[%s0] sm:$0xf]
    %v161 = vld [vmem:[%s0 + $0x4] sm:$0xf]
    %v162 = vld [vmem:[%s1] sm:$0xf]
    %v163 = vld [vmem:[%s1 + $0x4] sm:$0xf]
    %v164 = vld [vmem:[%s2] sm:$0xf]
    %v165 = vld [vmem:[%s2 + $0x4] sm:$0xf]
    %v167 = vrot.slane %v161, 4
    %v170 = vrot.slane %v163, 4
    %v173 = vrot.slane %v165, 4
    %vm175 = vcmask 1043456
    %v176 = vsel %vm175, %v160, %v167
    %v177 = vsel %vm175, %v162, %v170
    %v178 = vsel %vm175, %v164, %v173
    %v179 = vld [vmem:[%s3] sm:$0xff]
    %v180 = vld [vmem:[%s3 + $0x8] sm:$0xff]
    %vm181 = vcmask 130048
    %v183 = vsel %vm181, %v176, 0
    %v186 = vsel %vm181, %v177, 0
    %v189 = vsel %vm181, %v178, 0
    %191 = vmatpush.msra.mxu0 0.0
    %192 = vmatpush.msra.mxu0 0.0
    %193 = vmatpush.msra.mxu0 0.0
    %194 = vmatpush.msra.mxu0 0.0
    %195 = vmatpush.msra.mxu0 0.0
    %196 = vmatpush.msra.mxu0 0.0
    %197 = vmatpush.msra.mxu0 0.0
    %198 = vmatpush.msra.mxu0 0.0
    %199 = vmatpush.msra.mxu0 0.0
    %200 = vmatpush.msra.mxu0 0.0
    %201 = vmatpush.msra.mxu0 0.0
    %202 = vmatpush.msra.mxu0 0.0
    %203 = vmatpush.msra.mxu0 0.0
    %204 = vmatpush.msra.mxu0 0.0
    %205 = vmatpush.msra.mxu0 %v180
    %206 = vmatpush.msra.mxu0 %v179
    %207 = vmatmul.f32.gmra.mxu0 %v183
    %v208 = vpop.f32.mrf.mxu0
    %v209 = vadd.f32 0.0, %v208
    %210 = vmatmul.f32.gmra.mxu0 %v186
    %v211 = vpop.f32.mrf.mxu0
    %v212 = vadd.f32 0.0, %v211
    %213 = vmatmul.f32.gmra.mxu0 %v189
    %v214 = vpop.f32.mrf.mxu0
    %v215 = vadd.f32 0.0, %v214
    %216 = vdwg.mxu0
    %v217 = vld [vmem:[%s4] sm:$0xff]
    %v218 = vld [vmem:[%s4 + $0x8] sm:$0xff]
    %219 = vmatpush.msra.mxu0 0.0
    %220 = vmatpush.msra.mxu0 0.0
    %221 = vmatpush.msra.mxu0 0.0
    %222 = vmatpush.msra.mxu0 0.0
    %223 = vmatpush.msra.mxu0 0.0
    %224 = vmatpush.msra.mxu0 0.0
    %225 = vmatpush.msra.mxu0 0.0
    %226 = vmatpush.msra.mxu0 0.0
    %227 = vmatpush.msra.mxu0 0.0
    %228 = vmatpush.msra.mxu0 0.0
    %229 = vmatpush.msra.mxu0 0.0
    %230 = vmatpush.msra.mxu0 0.0
    %231 = vmatpush.msra.mxu0 0.0
    %232 = vmatpush.msra.mxu0 0.0
    %233 = vmatpush.msra.mxu0 %v218
    %234 = vmatpush.msra.mxu0 %v217
    %235 = vmatmul.f32.gmra.mxu0 %v183
    %v236 = vpop.f32.mrf.mxu0
    %v237 = vadd.f32 0.0, %v236
    %238 = vmatmul.f32.gmra.mxu0 %v186
    %v239 = vpop.f32.mrf.mxu0
    %v240 = vadd.f32 0.0, %v239
    %241 = vmatmul.f32.gmra.mxu0 %v189
    %v242 = vpop.f32.mrf.mxu0
    %v243 = vadd.f32 0.0, %v242
    %244 = vdwg.mxu0
    %v245 = vmul.f32 %v209, %v212
    %v246 = vmul.f32 %v209, %v215
    %v247 = vmul.f32 %v212, %v215
    %v248 = vmul.f32 %v237, %v240
    %v249 = vmul.f32 %v237, %v243
    %v250 = vmul.f32 %v240, %v243
    %v251 = vadd.f32 %v245, %v248
    %v252 = vadd.f32 %v246, %v249
    %v253 = vadd.f32 %v247, %v250
    %v254 = vmul.f32 %v237, %v212
    %v255 = vmul.f32 %v237, %v215
    %v256 = vmul.f32 %v240, %v215
    %v257 = vmul.f32 %v209, %v240
    %v258 = vmul.f32 %v209, %v243
    %v259 = vmul.f32 %v212, %v243
    %v260 = vsub.f32 %v254, %v257
    %v261 = vsub.f32 %v255, %v258
    %v262 = vsub.f32 %v256, %v259
    %v263 = vmul.f32 %v251, %v251
    %v264 = vmul.f32 %v252, %v252
    %v265 = vmul.f32 %v253, %v253
    %v266 = vmul.f32 %v260, %v260
    %v267 = vmul.f32 %v261, %v261
    %v268 = vmul.f32 %v262, %v262
    %v269 = vadd.f32 %v263, %v266
    %v270 = vadd.f32 %v264, %v267
    %v271 = vadd.f32 %v265, %v268
    %v272 = vrsqrt.pop %v269
    %v273 = vmul.f32 %v272, %v269
    %v274 = vmul.f32 %v273, %v272
    %v275 = vmul.f32 0.5, %v274
    %v276 = vsub.f32 1.5, %v275
    %v277 = vmul.f32 %v272, %v276
    %v278 = vmul.f32 %v269, %v277
    %vm279 = vcmp.eq.f32.partialorder %v269, inf
    %v280 = vsel %vm279, %v269, %v278
    %vm281 = vcmp.eq.f32.partialorder %v269, 0.0
    %v282 = vand.u32 %v269, 2147483648
    %v283 = vsel %vm281, %v282, %v280
    %v284 = vrsqrt.pop %v270
    %v285 = vmul.f32 %v284, %v270
    %v286 = vmul.f32 %v285, %v284
    %v287 = vmul.f32 0.5, %v286
    %v288 = vsub.f32 1.5, %v287
    %v289 = vmul.f32 %v284, %v288
    %v290 = vmul.f32 %v270, %v289
    %vm291 = vcmp.eq.f32.partialorder %v270, inf
    %v292 = vsel %vm291, %v270, %v290
    %vm293 = vcmp.eq.f32.partialorder %v270, 0.0
    %v294 = vand.u32 %v270, 2147483648
    %v295 = vsel %vm293, %v294, %v292
    %v296 = vrsqrt.pop %v271
    %v297 = vmul.f32 %v296, %v271
    %v298 = vmul.f32 %v297, %v296
    %v299 = vmul.f32 0.5, %v298
    %v300 = vsub.f32 1.5, %v299
    %v301 = vmul.f32 %v296, %v300
    %v302 = vmul.f32 %v271, %v301
    %vm303 = vcmp.eq.f32.partialorder %v271, inf
    %v304 = vsel %vm303, %v271, %v302
    %vm305 = vcmp.eq.f32.partialorder %v271, 0.0
    %v306 = vand.u32 %v271, 2147483648
    %v307 = vsel %vm305, %v306, %v304
    %v308 = vadd.f32 %v283, 1e-06
    %v309 = vadd.f32 %v295, 1e-06
    %v310 = vadd.f32 %v307, 1e-06
    %v311 = vrcp.pop %v308
    %v312 = vrcp.pop %v309
    %v313 = vrcp.pop %v310
    %v314 = vmul.f32 %v260, %v311
    %v315 = vmul.f32 %v261, %v312
    %v316 = vmul.f32 %v262, %v313
    %318 = vrot.lane.b32.xlu0 %v314, 5
    %v319 = vpop.permute.xlu0 %318
    %vm321 = vcmask 39936
    %v322 = vsel %vm321, 0.0, %v319
    %vm323 = vcmask 179200
    %v324 = vsel %vm323, %v322, 0.0
    %v326 = vrot.slane %v324, 4
    %327 = vrot.lane.b32.xlu0 %v326, 127
    %v328 = vpop.permute.xlu0 %327
    %330 = vrot.lane.b32.xlu0 %v324, 126
    %v331 = vpop.permute.xlu0 %330
    %333 = vrot.lane.b32.xlu0 %v326, 125
    %v334 = vpop.permute.xlu0 %333
    %336 = vrot.lane.b32.xlu0 %v324, 124
    %v337 = vpop.permute.xlu0 %336
    %339 = vrot.lane.b32.xlu0 %v326, 123
    %v340 = vpop.permute.xlu0 %339
    %342 = vrot.lane.b32.xlu0 %v324, 122
    %v343 = vpop.permute.xlu0 %342
    %345 = vrot.lane.b32.xlu0 %v326, 121
    %v346 = vpop.permute.xlu0 %345
    %348 = vrot.lane.b32.xlu0 %v324, 120
    %v349 = vpop.permute.xlu0 %348
    %351 = vrot.lane.b32.xlu0 %v326, 119
    %v352 = vpop.permute.xlu0 %351
    %354 = vrot.lane.b32.xlu0 %v324, 118
    %v355 = vpop.permute.xlu0 %354
    %v357 = vsel %vm175, %v324, %v328
    %v358 = vsel %vm175, %v331, %v334
    %v359 = vsel %vm175, %v337, %v340
    %v360 = vsel %vm175, %v343, %v346
    %v361 = vsel %vm175, %v349, %v352
    %v362 = vrot.slane %v314, 4
    %363 = vrot.lane.b32.xlu0 %v362, 5
    %v364 = vpop.permute.xlu0 %363
    %v366 = vsel %vm321, 0.0, %v364
    %v367 = vsel %vm323, %v366, 0.0
    %v369 = vrot.slane %v367, 4
    %370 = vrot.lane.b32.xlu0 %v369, 127
    %v371 = vpop.permute.xlu0 %370
    %373 = vrot.lane.b32.xlu0 %v367, 126
    %v374 = vpop.permute.xlu0 %373
    %376 = vrot.lane.b32.xlu0 %v369, 125
    %v377 = vpop.permute.xlu0 %376
    %379 = vrot.lane.b32.xlu0 %v367, 124
    %v380 = vpop.permute.xlu0 %379
    %382 = vrot.lane.b32.xlu0 %v369, 123
    %v383 = vpop.permute.xlu0 %382
    %385 = vrot.lane.b32.xlu0 %v367, 122
    %v386 = vpop.permute.xlu0 %385
    %388 = vrot.lane.b32.xlu0 %v369, 121
    %v389 = vpop.permute.xlu0 %388
    %391 = vrot.lane.b32.xlu0 %v367, 120
    %v392 = vpop.permute.xlu0 %391
    %394 = vrot.lane.b32.xlu0 %v369, 119
    %v395 = vpop.permute.xlu0 %394
    %397 = vrot.lane.b32.xlu0 %v367, 118
    %v398 = vpop.permute.xlu0 %397
    %v399 = vsel %vm175, %v367, %v371
    %v400 = vsel %vm175, %v374, %v377
    %v401 = vsel %vm175, %v380, %v383
    %v402 = vsel %vm175, %v386, %v389
    %v403 = vsel %vm175, %v392, %v395
    %405 = vrot.lane.b32.xlu0 %v315, 5
    %v406 = vpop.permute.xlu0 %405
    %v408 = vsel %vm321, 0.0, %v406
    %v409 = vsel %vm323, %v408, 0.0
    %v411 = vrot.slane %v409, 4
    %412 = vrot.lane.b32.xlu0 %v411, 127
    %v413 = vpop.permute.xlu0 %412
    %415 = vrot.lane.b32.xlu0 %v409, 126
    %v416 = vpop.permute.xlu0 %415
    %418 = vrot.lane.b32.xlu0 %v411, 125
    %v419 = vpop.permute.xlu0 %418
    %421 = vrot.lane.b32.xlu0 %v409, 124
    %v422 = vpop.permute.xlu0 %421
    %424 = vrot.lane.b32.xlu0 %v411, 123
    %v425 = vpop.permute.xlu0 %424
    %427 = vrot.lane.b32.xlu0 %v409, 122
    %v428 = vpop.permute.xlu0 %427
    %430 = vrot.lane.b32.xlu0 %v411, 121
    %v431 = vpop.permute.xlu0 %430
    %433 = vrot.lane.b32.xlu0 %v409, 120
    %v434 = vpop.permute.xlu0 %433
    %436 = vrot.lane.b32.xlu0 %v411, 119
    %v437 = vpop.permute.xlu0 %436
    %439 = vrot.lane.b32.xlu0 %v409, 118
    %v440 = vpop.permute.xlu0 %439
    %v441 = vsel %vm175, %v409, %v413
    %v442 = vsel %vm175, %v416, %v419
    %v443 = vsel %vm175, %v422, %v425
    %v444 = vsel %vm175, %v428, %v431
    %v445 = vsel %vm175, %v434, %v437
    %v446 = vrot.slane %v315, 4
    %447 = vrot.lane.b32.xlu0 %v446, 5
    %v448 = vpop.permute.xlu0 %447
    %v450 = vsel %vm321, 0.0, %v448
    %v451 = vsel %vm323, %v450, 0.0
    %v453 = vrot.slane %v451, 4
    %454 = vrot.lane.b32.xlu0 %v453, 127
    %v455 = vpop.permute.xlu0 %454
    %457 = vrot.lane.b32.xlu0 %v451, 126
    %v458 = vpop.permute.xlu0 %457
    %460 = vrot.lane.b32.xlu0 %v453, 125
    %v461 = vpop.permute.xlu0 %460
    %463 = vrot.lane.b32.xlu0 %v451, 124
    %v464 = vpop.permute.xlu0 %463
    %466 = vrot.lane.b32.xlu0 %v453, 123
    %v467 = vpop.permute.xlu0 %466
    %469 = vrot.lane.b32.xlu0 %v451, 122
    %v470 = vpop.permute.xlu0 %469
    %472 = vrot.lane.b32.xlu0 %v453, 121
    %v473 = vpop.permute.xlu0 %472
    %475 = vrot.lane.b32.xlu0 %v451, 120
    %v476 = vpop.permute.xlu0 %475
    %478 = vrot.lane.b32.xlu0 %v453, 119
    %v479 = vpop.permute.xlu0 %478
    %481 = vrot.lane.b32.xlu0 %v451, 118
    %v482 = vpop.permute.xlu0 %481
    %v483 = vsel %vm175, %v451, %v455
    %v484 = vsel %vm175, %v458, %v461
    %v485 = vsel %vm175, %v464, %v467
    %v486 = vsel %vm175, %v470, %v473
    %v487 = vsel %vm175, %v476, %v479
    %489 = vrot.lane.b32.xlu0 %v316, 5
    %v490 = vpop.permute.xlu0 %489
    %v492 = vsel %vm321, 0.0, %v490
    %v493 = vsel %vm323, %v492, 0.0
    %v495 = vrot.slane %v493, 4
    %496 = vrot.lane.b32.xlu0 %v495, 127
    %v497 = vpop.permute.xlu0 %496
    %499 = vrot.lane.b32.xlu0 %v493, 126
    %v500 = vpop.permute.xlu0 %499
    %502 = vrot.lane.b32.xlu0 %v495, 125
    %v503 = vpop.permute.xlu0 %502
    %505 = vrot.lane.b32.xlu0 %v493, 124
    %v506 = vpop.permute.xlu0 %505
    %508 = vrot.lane.b32.xlu0 %v495, 123
    %v509 = vpop.permute.xlu0 %508
    %511 = vrot.lane.b32.xlu0 %v493, 122
    %v512 = vpop.permute.xlu0 %511
    %514 = vrot.lane.b32.xlu0 %v495, 121
    %v515 = vpop.permute.xlu0 %514
    %517 = vrot.lane.b32.xlu0 %v493, 120
    %v518 = vpop.permute.xlu0 %517
    %520 = vrot.lane.b32.xlu0 %v495, 119
    %v521 = vpop.permute.xlu0 %520
    %523 = vrot.lane.b32.xlu0 %v493, 118
    %v524 = vpop.permute.xlu0 %523
    %v525 = vsel %vm175, %v493, %v497
    %v526 = vsel %vm175, %v500, %v503
    %v527 = vsel %vm175, %v506, %v509
    %v528 = vsel %vm175, %v512, %v515
    %v529 = vsel %vm175, %v518, %v521
    %v530 = vrot.slane %v316, 4
    %531 = vrot.lane.b32.xlu0 %v530, 5
    %v532 = vpop.permute.xlu0 %531
    %v534 = vsel %vm321, 0.0, %v532
    %v535 = vsel %vm323, %v534, 0.0
    %v537 = vrot.slane %v535, 4
    %538 = vrot.lane.b32.xlu0 %v537, 127
    %v539 = vpop.permute.xlu0 %538
    %541 = vrot.lane.b32.xlu0 %v535, 126
    %v542 = vpop.permute.xlu0 %541
    %544 = vrot.lane.b32.xlu0 %v537, 125
    %v545 = vpop.permute.xlu0 %544
    %547 = vrot.lane.b32.xlu0 %v535, 124
    %v548 = vpop.permute.xlu0 %547
    %550 = vrot.lane.b32.xlu0 %v537, 123
    %v551 = vpop.permute.xlu0 %550
    %553 = vrot.lane.b32.xlu0 %v535, 122
    %v554 = vpop.permute.xlu0 %553
    %556 = vrot.lane.b32.xlu0 %v537, 121
    %v557 = vpop.permute.xlu0 %556
    %559 = vrot.lane.b32.xlu0 %v535, 120
    %v560 = vpop.permute.xlu0 %559
    %562 = vrot.lane.b32.xlu0 %v537, 119
    %v563 = vpop.permute.xlu0 %562
    %565 = vrot.lane.b32.xlu0 %v535, 118
    %v566 = vpop.permute.xlu0 %565
    %v567 = vsel %vm175, %v535, %v539
    %v568 = vsel %vm175, %v542, %v545
    %v569 = vsel %vm175, %v548, %v551
    %v570 = vsel %vm175, %v554, %v557
    %v571 = vsel %vm175, %v560, %v563
    %577 = vrot.lane.b32.xlu0 %v399, 17
    %v578 = vpop.permute.xlu0 %577
    %579 = vrot.lane.b32.xlu0 %v400, 17
    %v580 = vpop.permute.xlu0 %579
    %581 = vrot.lane.b32.xlu0 %v401, 17
    %v582 = vpop.permute.xlu0 %581
    %583 = vrot.lane.b32.xlu0 %v402, 17
    %v584 = vpop.permute.xlu0 %583
    %585 = vrot.lane.b32.xlu0 %v403, 17
    %v586 = vpop.permute.xlu0 %585
    %587 = vrot.lane.b32.xlu0 %v398, 17
    %v588 = vpop.permute.xlu0 %587
    %600 = vrot.lane.b32.xlu0 %v441, 34
    %v601 = vpop.permute.xlu0 %600
    %602 = vrot.lane.b32.xlu0 %v442, 34
    %v603 = vpop.permute.xlu0 %602
    %604 = vrot.lane.b32.xlu0 %v443, 34
    %v605 = vpop.permute.xlu0 %604
    %606 = vrot.lane.b32.xlu0 %v444, 34
    %v607 = vpop.permute.xlu0 %606
    %608 = vrot.lane.b32.xlu0 %v445, 34
    %v609 = vpop.permute.xlu0 %608
    %610 = vrot.lane.b32.xlu0 %v440, 34
    %v611 = vpop.permute.xlu0 %610
    %623 = vrot.lane.b32.xlu0 %v483, 51
    %v624 = vpop.permute.xlu0 %623
    %625 = vrot.lane.b32.xlu0 %v484, 51
    %v626 = vpop.permute.xlu0 %625
    %627 = vrot.lane.b32.xlu0 %v485, 51
    %v628 = vpop.permute.xlu0 %627
    %629 = vrot.lane.b32.xlu0 %v486, 51
    %v630 = vpop.permute.xlu0 %629
    %631 = vrot.lane.b32.xlu0 %v487, 51
    %v632 = vpop.permute.xlu0 %631
    %633 = vrot.lane.b32.xlu0 %v482, 51
    %v634 = vpop.permute.xlu0 %633
    %646 = vrot.lane.b32.xlu0 %v525, 68
    %v647 = vpop.permute.xlu0 %646
    %648 = vrot.lane.b32.xlu0 %v526, 68
    %v649 = vpop.permute.xlu0 %648
    %650 = vrot.lane.b32.xlu0 %v527, 68
    %v651 = vpop.permute.xlu0 %650
    %652 = vrot.lane.b32.xlu0 %v528, 68
    %v653 = vpop.permute.xlu0 %652
    %654 = vrot.lane.b32.xlu0 %v529, 68
    %v655 = vpop.permute.xlu0 %654
    %656 = vrot.lane.b32.xlu0 %v524, 68
    %v657 = vpop.permute.xlu0 %656
    %669 = vrot.lane.b32.xlu0 %v567, 85
    %v670 = vpop.permute.xlu0 %669
    %671 = vrot.lane.b32.xlu0 %v568, 85
    %v672 = vpop.permute.xlu0 %671
    %673 = vrot.lane.b32.xlu0 %v569, 85
    %v674 = vpop.permute.xlu0 %673
    %675 = vrot.lane.b32.xlu0 %v570, 85
    %v676 = vpop.permute.xlu0 %675
    %677 = vrot.lane.b32.xlu0 %v571, 85
    %v678 = vpop.permute.xlu0 %677
    %679 = vrot.lane.b32.xlu0 %v566, 85
    %v680 = vpop.permute.xlu0 %679
    %vm687 = vcmask 138240
    %v688 = vsel %vm687, %v357, %v578
    %v689 = vsel %vm687, %v358, %v580
    %v690 = vsel %vm687, %v359, %v582
    %v691 = vsel %vm687, %v360, %v584
    %v692 = vsel %vm687, %v361, %v586
    %v693 = vsel %vm687, %v355, %v588
    %vm694 = vcmask 277504
    %v695 = vsel %vm694, %v688, %v601
    %v696 = vsel %vm694, %v689, %v603
    %v697 = vsel %vm694, %v690, %v605
    %v698 = vsel %vm694, %v691, %v607
    %v699 = vsel %vm694, %v692, %v609
    %v700 = vsel %vm694, %v693, %v611
    %vm701 = vcmask 416768
    %v702 = vsel %vm701, %v695, %v624
    %v703 = vsel %vm701, %v696, %v626
    %v704 = vsel %vm701, %v697, %v628
    %v705 = vsel %vm701, %v698, %v630
    %v706 = vsel %vm701, %v699, %v632
    %v707 = vsel %vm701, %v700, %v634
    %vm708 = vcmask 556032
    %v709 = vsel %vm708, %v702, %v647
    %v710 = vsel %vm708, %v703, %v649
    %v711 = vsel %vm708, %v704, %v651
    %v712 = vsel %vm708, %v705, %v653
    %v713 = vsel %vm708, %v706, %v655
    %v714 = vsel %vm708, %v707, %v657
    %vm715 = vcmask 695296
    %v716 = vsel %vm715, %v709, %v670
    %v717 = vsel %vm715, %v710, %v672
    %v718 = vsel %vm715, %v711, %v674
    %v719 = vsel %vm715, %v712, %v676
    %v720 = vsel %vm715, %v713, %v678
    %v721 = vsel %vm715, %v714, %v680
    %v722 = vld [vmem:[#allocation2] sm:$0xff]
    %v723 = vld [vmem:[#allocation2 + $0x8] sm:$0xff]
    %v724 = vld [vmem:[%s7] sm:$0xff]
    %v725 = vld [vmem:[%s7 + $0x8] sm:$0xff]
    %727 = vset.pattern.permute.xlu0 0
    %728 = vperm.xlu0 %727, %v724
    %v729 = vpop.permute.xlu0 %728
    %732 = vset.pattern.permute.xlu0 0
    %733 = vperm.xlu0 %732, %v725
    %v734 = vpop.permute.xlu0 %733
    %vm736 = vcmask 359424
    %v738 = vsel %vm736, %v722, 0
    %v741 = vsel %vm736, %v723, 0
    %v744 = vsel %vm175, %v721, 0
    %746 = vmatpush.msra.mxu0 0.0
    %747 = vmatpush.msra.mxu0 0.0
    %748 = vmatpush.msra.mxu0 0.0
    %749 = vmatpush.msra.mxu0 0.0
    %750 = vmatpush.msra.mxu0 0.0
    %751 = vmatpush.msra.mxu0 0.0
    %752 = vmatpush.msra.mxu0 0.0
    %753 = vmatpush.msra.mxu0 0.0
    %754 = vmatpush.msra.mxu0 0.0
    %755 = vmatpush.msra.mxu0 0.0
    %756 = vmatpush.msra.mxu0 %v744
    %757 = vmatpush.msra.mxu0 %v720
    %758 = vmatpush.msra.mxu0 %v719
    %759 = vmatpush.msra.mxu0 %v718
    %760 = vmatpush.msra.mxu0 %v717
    %761 = vmatpush.msra.mxu0 %v716
    %762 = vmatmul.f32.gmra.mxu0 %v738
    %v763 = vpop.f32.mrf.mxu0
    %v764 = vadd.f32 %v729, %v763
    %765 = vmatmul.f32.gmra.mxu0 %v741
    %v766 = vpop.f32.mrf.mxu0
    %v767 = vadd.f32 %v734, %v766
    %768 = vdwg.mxu0
    %vm769 = vcmp.gt.f32.partialorder %v764, 0.0
    %vm770 = vcmp.gt.f32.partialorder %v767, 0.0
    %v771 = vmul.f32 %v764, 0.2
    %v772 = vmul.f32 %v767, 0.2
    %v773 = vsel %vm769, %v764, %v771
    %v774 = vsel %vm770, %v767, %v772
    %777 = vrot.lane.b32.xlu0 %v773, 3
    %v778 = vpop.permute.xlu0 %777
    %779 = vrot.lane.b32.xlu0 %v774, 3
    %v780 = vpop.permute.xlu0 %779
    %vm783 = vcmask 23552
    %v784 = vsel %vm783, 0.0, %v778
    %v785 = vsel %vm783, 0.0, %v780
    %vm786 = vcmask 162816
    %v787 = vsel %vm786, %v784, 0.0
    %v788 = vsel %vm786, %v785, 0.0
    %791 = vrot.lane.b32.xlu0 %v787, 127
    %v792 = vpop.permute.xlu0 %791
    %793 = vrot.lane.b32.xlu0 %v788, 127
    %v794 = vpop.permute.xlu0 %793
    %797 = vrot.lane.b32.xlu0 %v787, 126
    %v798 = vpop.permute.xlu0 %797
    %799 = vrot.lane.b32.xlu0 %v788, 126
    %v800 = vpop.permute.xlu0 %799
    %803 = vrot.lane.b32.xlu0 %v787, 125
    %v804 = vpop.permute.xlu0 %803
    %805 = vrot.lane.b32.xlu0 %v788, 125
    %v806 = vpop.permute.xlu0 %805
    %809 = vrot.lane.b32.xlu0 %v787, 124
    %v810 = vpop.permute.xlu0 %809
    %811 = vrot.lane.b32.xlu0 %v788, 124
    %v812 = vpop.permute.xlu0 %811
    %815 = vrot.lane.b32.xlu0 %v787, 123
    %v816 = vpop.permute.xlu0 %815
    %817 = vrot.lane.b32.xlu0 %v788, 123
    %v818 = vpop.permute.xlu0 %817
    %821 = vrot.lane.b32.xlu0 %v787, 122
    %v822 = vpop.permute.xlu0 %821
    %823 = vrot.lane.b32.xlu0 %v788, 122
    %v824 = vpop.permute.xlu0 %823
    %827 = vrot.lane.b32.xlu0 %v773, 114
    %v828 = vpop.permute.xlu0 %827
    %829 = vrot.lane.b32.xlu0 %v774, 114
    %v830 = vpop.permute.xlu0 %829
    %v833 = vsel %vm783, 0.0, %v828
    %v834 = vsel %vm783, 0.0, %v830
    %v835 = vsel %vm786, %v833, 0.0
    %v836 = vsel %vm786, %v834, 0.0
    %839 = vrot.lane.b32.xlu0 %v835, 127
    %v840 = vpop.permute.xlu0 %839
    %841 = vrot.lane.b32.xlu0 %v836, 127
    %v842 = vpop.permute.xlu0 %841
    %843 = vrot.lane.b32.xlu0 %v835, 126
    %v844 = vpop.permute.xlu0 %843
    %845 = vrot.lane.b32.xlu0 %v836, 126
    %v846 = vpop.permute.xlu0 %845
    %847 = vrot.lane.b32.xlu0 %v835, 125
    %v848 = vpop.permute.xlu0 %847
    %849 = vrot.lane.b32.xlu0 %v836, 125
    %v850 = vpop.permute.xlu0 %849
    %851 = vrot.lane.b32.xlu0 %v835, 124
    %v852 = vpop.permute.xlu0 %851
    %853 = vrot.lane.b32.xlu0 %v836, 124
    %v854 = vpop.permute.xlu0 %853
    %855 = vrot.lane.b32.xlu0 %v835, 123
    %v856 = vpop.permute.xlu0 %855
    %857 = vrot.lane.b32.xlu0 %v836, 123
    %v858 = vpop.permute.xlu0 %857
    %859 = vrot.lane.b32.xlu0 %v835, 122
    %v860 = vpop.permute.xlu0 %859
    %861 = vrot.lane.b32.xlu0 %v836, 122
    %v862 = vpop.permute.xlu0 %861
    %863 = vrot.lane.b32.xlu0 %v773, 97
    %v864 = vpop.permute.xlu0 %863
    %865 = vrot.lane.b32.xlu0 %v774, 97
    %v866 = vpop.permute.xlu0 %865
    %v869 = vsel %vm783, 0.0, %v864
    %v870 = vsel %vm783, 0.0, %v866
    %v871 = vsel %vm786, %v869, 0.0
    %v872 = vsel %vm786, %v870, 0.0
    %875 = vrot.lane.b32.xlu0 %v871, 127
    %v876 = vpop.permute.xlu0 %875
    %877 = vrot.lane.b32.xlu0 %v872, 127
    %v878 = vpop.permute.xlu0 %877
    %879 = vrot.lane.b32.xlu0 %v871, 126
    %v880 = vpop.permute.xlu0 %879
    %881 = vrot.lane.b32.xlu0 %v872, 126
    %v882 = vpop.permute.xlu0 %881
    %883 = vrot.lane.b32.xlu0 %v871, 125
    %v884 = vpop.permute.xlu0 %883
    %885 = vrot.lane.b32.xlu0 %v872, 125
    %v886 = vpop.permute.xlu0 %885
    %887 = vrot.lane.b32.xlu0 %v871, 124
    %v888 = vpop.permute.xlu0 %887
    %889 = vrot.lane.b32.xlu0 %v872, 124
    %v890 = vpop.permute.xlu0 %889
    %891 = vrot.lane.b32.xlu0 %v871, 123
    %v892 = vpop.permute.xlu0 %891
    %893 = vrot.lane.b32.xlu0 %v872, 123
    %v894 = vpop.permute.xlu0 %893
    %895 = vrot.lane.b32.xlu0 %v871, 122
    %v896 = vpop.permute.xlu0 %895
    %897 = vrot.lane.b32.xlu0 %v872, 122
    %v898 = vpop.permute.xlu0 %897
    %899 = vrot.lane.b32.xlu0 %v773, 80
    %v900 = vpop.permute.xlu0 %899
    %901 = vrot.lane.b32.xlu0 %v774, 80
    %v902 = vpop.permute.xlu0 %901
    %v905 = vsel %vm783, 0.0, %v900
    %v906 = vsel %vm783, 0.0, %v902
    %v907 = vsel %vm786, %v905, 0.0
    %v908 = vsel %vm786, %v906, 0.0
    %911 = vrot.lane.b32.xlu0 %v907, 127
    %v912 = vpop.permute.xlu0 %911
    %913 = vrot.lane.b32.xlu0 %v908, 127
    %v914 = vpop.permute.xlu0 %913
    %915 = vrot.lane.b32.xlu0 %v907, 126
    %v916 = vpop.permute.xlu0 %915
    %917 = vrot.lane.b32.xlu0 %v908, 126
    %v918 = vpop.permute.xlu0 %917
    %919 = vrot.lane.b32.xlu0 %v907, 125
    %v920 = vpop.permute.xlu0 %919
    %921 = vrot.lane.b32.xlu0 %v908, 125
    %v922 = vpop.permute.xlu0 %921
    %923 = vrot.lane.b32.xlu0 %v907, 124
    %v924 = vpop.permute.xlu0 %923
    %925 = vrot.lane.b32.xlu0 %v908, 124
    %v926 = vpop.permute.xlu0 %925
    %927 = vrot.lane.b32.xlu0 %v907, 123
    %v928 = vpop.permute.xlu0 %927
    %929 = vrot.lane.b32.xlu0 %v908, 123
    %v930 = vpop.permute.xlu0 %929
    %931 = vrot.lane.b32.xlu0 %v907, 122
    %v932 = vpop.permute.xlu0 %931
    %933 = vrot.lane.b32.xlu0 %v908, 122
    %v934 = vpop.permute.xlu0 %933
    %935 = vrot.lane.b32.xlu0 %v773, 63
    %v936 = vpop.permute.xlu0 %935
    %937 = vrot.lane.b32.xlu0 %v774, 63
    %v938 = vpop.permute.xlu0 %937
    %v941 = vsel %vm783, 0.0, %v936
    %v942 = vsel %vm783, 0.0, %v938
    %v943 = vsel %vm786, %v941, 0.0
    %v944 = vsel %vm786, %v942, 0.0
    %947 = vrot.lane.b32.xlu0 %v943, 127
    %v948 = vpop.permute.xlu0 %947
    %949 = vrot.lane.b32.xlu0 %v944, 127
    %v950 = vpop.permute.xlu0 %949
    %951 = vrot.lane.b32.xlu0 %v943, 126
    %v952 = vpop.permute.xlu0 %951
    %953 = vrot.lane.b32.xlu0 %v944, 126
    %v954 = vpop.permute.xlu0 %953
    %955 = vrot.lane.b32.xlu0 %v943, 125
    %v956 = vpop.permute.xlu0 %955
    %957 = vrot.lane.b32.xlu0 %v944, 125
    %v958 = vpop.permute.xlu0 %957
    %959 = vrot.lane.b32.xlu0 %v943, 124
    %v960 = vpop.permute.xlu0 %959
    %961 = vrot.lane.b32.xlu0 %v944, 124
    %v962 = vpop.permute.xlu0 %961
    %963 = vrot.lane.b32.xlu0 %v943, 123
    %v964 = vpop.permute.xlu0 %963
    %965 = vrot.lane.b32.xlu0 %v944, 123
    %v966 = vpop.permute.xlu0 %965
    %967 = vrot.lane.b32.xlu0 %v943, 122
    %v968 = vpop.permute.xlu0 %967
    %969 = vrot.lane.b32.xlu0 %v944, 122
    %v970 = vpop.permute.xlu0 %969
    %971 = vrot.lane.b32.xlu0 %v773, 46
    %v972 = vpop.permute.xlu0 %971
    %973 = vrot.lane.b32.xlu0 %v774, 46
    %v974 = vpop.permute.xlu0 %973
    %v977 = vsel %vm783, 0.0, %v972
    %v978 = vsel %vm783, 0.0, %v974
    %v979 = vsel %vm786, %v977, 0.0
    %v980 = vsel %vm786, %v978, 0.0
    %983 = vrot.lane.b32.xlu0 %v979, 127
    %v984 = vpop.permute.xlu0 %983
    %985 = vrot.lane.b32.xlu0 %v980, 127
    %v986 = vpop.permute.xlu0 %985
    %987 = vrot.lane.b32.xlu0 %v979, 126
    %v988 = vpop.permute.xlu0 %987
    %989 = vrot.lane.b32.xlu0 %v980, 126
    %v990 = vpop.permute.xlu0 %989
    %991 = vrot.lane.b32.xlu0 %v979, 125
    %v992 = vpop.permute.xlu0 %991
    %993 = vrot.lane.b32.xlu0 %v980, 125
    %v994 = vpop.permute.xlu0 %993
    %995 = vrot.lane.b32.xlu0 %v979, 124
    %v996 = vpop.permute.xlu0 %995
    %997 = vrot.lane.b32.xlu0 %v980, 124
    %v998 = vpop.permute.xlu0 %997
    %999 = vrot.lane.b32.xlu0 %v979, 123
    %v1000 = vpop.permute.xlu0 %999
    %1001 = vrot.lane.b32.xlu0 %v980, 123
    %v1002 = vpop.permute.xlu0 %1001
    %1003 = vrot.lane.b32.xlu0 %v979, 122
    %v1004 = vpop.permute.xlu0 %1003
    %1005 = vrot.lane.b32.xlu0 %v980, 122
    %v1006 = vpop.permute.xlu0 %1005
    %1007 = vrot.lane.b32.xlu0 %v835, 17
    %v1008 = vpop.permute.xlu0 %1007
    %1009 = vrot.lane.b32.xlu0 %v836, 17
    %v1010 = vpop.permute.xlu0 %1009
    %1011 = vrot.lane.b32.xlu0 %v840, 17
    %v1012 = vpop.permute.xlu0 %1011
    %1013 = vrot.lane.b32.xlu0 %v842, 17
    %v1014 = vpop.permute.xlu0 %1013
    %1015 = vrot.lane.b32.xlu0 %v844, 17
    %v1016 = vpop.permute.xlu0 %1015
    %1017 = vrot.lane.b32.xlu0 %v846, 17
    %v1018 = vpop.permute.xlu0 %1017
    %1019 = vrot.lane.b32.xlu0 %v848, 17
    %v1020 = vpop.permute.xlu0 %1019
    %1021 = vrot.lane.b32.xlu0 %v850, 17
    %v1022 = vpop.permute.xlu0 %1021
    %1023 = vrot.lane.b32.xlu0 %v852, 17
    %v1024 = vpop.permute.xlu0 %1023
    %1025 = vrot.lane.b32.xlu0 %v854, 17
    %v1026 = vpop.permute.xlu0 %1025
    %1027 = vrot.lane.b32.xlu0 %v856, 17
    %v1028 = vpop.permute.xlu0 %1027
    %1029 = vrot.lane.b32.xlu0 %v858, 17
    %v1030 = vpop.permute.xlu0 %1029
    %1031 = vrot.lane.b32.xlu0 %v860, 17
    %v1032 = vpop.permute.xlu0 %1031
    %1033 = vrot.lane.b32.xlu0 %v862, 17
    %v1034 = vpop.permute.xlu0 %1033
    %1049 = vrot.lane.b32.xlu0 %v871, 34
    %v1050 = vpop.permute.xlu0 %1049
    %1051 = vrot.lane.b32.xlu0 %v872, 34
    %v1052 = vpop.permute.xlu0 %1051
    %1053 = vrot.lane.b32.xlu0 %v876, 34
    %v1054 = vpop.permute.xlu0 %1053
    %1055 = vrot.lane.b32.xlu0 %v878, 34
    %v1056 = vpop.permute.xlu0 %1055
    %1057 = vrot.lane.b32.xlu0 %v880, 34
    %v1058 = vpop.permute.xlu0 %1057
    %1059 = vrot.lane.b32.xlu0 %v882, 34
    %v1060 = vpop.permute.xlu0 %1059
    %1061 = vrot.lane.b32.xlu0 %v884, 34
    %v1062 = vpop.permute.xlu0 %1061
    %1063 = vrot.lane.b32.xlu0 %v886, 34
    %v1064 = vpop.permute.xlu0 %1063
    %1065 = vrot.lane.b32.xlu0 %v888, 34
    %v1066 = vpop.permute.xlu0 %1065
    %1067 = vrot.lane.b32.xlu0 %v890, 34
    %v1068 = vpop.permute.xlu0 %1067
    %1069 = vrot.lane.b32.xlu0 %v892, 34
    %v1070 = vpop.permute.xlu0 %1069
    %1071 = vrot.lane.b32.xlu0 %v894, 34
    %v1072 = vpop.permute.xlu0 %1071
    %1073 = vrot.lane.b32.xlu0 %v896, 34
    %v1074 = vpop.permute.xlu0 %1073
    %1075 = vrot.lane.b32.xlu0 %v898, 34
    %v1076 = vpop.permute.xlu0 %1075
    %1091 = vrot.lane.b32.xlu0 %v907, 51
    %v1092 = vpop.permute.xlu0 %1091
    %1093 = vrot.lane.b32.xlu0 %v908, 51
    %v1094 = vpop.permute.xlu0 %1093
    %1095 = vrot.lane.b32.xlu0 %v912, 51
    %v1096 = vpop.permute.xlu0 %1095
    %1097 = vrot.lane.b32.xlu0 %v914, 51
    %v1098 = vpop.permute.xlu0 %1097
    %1099 = vrot.lane.b32.xlu0 %v916, 51
    %v1100 = vpop.permute.xlu0 %1099
    %1101 = vrot.lane.b32.xlu0 %v918, 51
    %v1102 = vpop.permute.xlu0 %1101
    %1103 = vrot.lane.b32.xlu0 %v920, 51
    %v1104 = vpop.permute.xlu0 %1103
    %1105 = vrot.lane.b32.xlu0 %v922, 51
    %v1106 = vpop.permute.xlu0 %1105
    %1107 = vrot.lane.b32.xlu0 %v924, 51
    %v1108 = vpop.permute.xlu0 %1107
    %1109 = vrot.lane.b32.xlu0 %v926, 51
    %v1110 = vpop.permute.xlu0 %1109
    %1111 = vrot.lane.b32.xlu0 %v928, 51
    %v1112 = vpop.permute.xlu0 %1111
    %1113 = vrot.lane.b32.xlu0 %v930, 51
    %v1114 = vpop.permute.xlu0 %1113
    %1115 = vrot.lane.b32.xlu0 %v932, 51
    %v1116 = vpop.permute.xlu0 %1115
    %1117 = vrot.lane.b32.xlu0 %v934, 51
    %v1118 = vpop.permute.xlu0 %1117
    %1133 = vrot.lane.b32.xlu0 %v943, 68
    %v1134 = vpop.permute.xlu0 %1133
    %1135 = vrot.lane.b32.xlu0 %v944, 68
    %v1136 = vpop.permute.xlu0 %1135
    %1137 = vrot.lane.b32.xlu0 %v948, 68
    %v1138 = vpop.permute.xlu0 %1137
    %1139 = vrot.lane.b32.xlu0 %v950, 68
    %v1140 = vpop.permute.xlu0 %1139
    %1141 = vrot.lane.b32.xlu0 %v952, 68
    %v1142 = vpop.permute.xlu0 %1141
    %1143 = vrot.lane.b32.xlu0 %v954, 68
    %v1144 = vpop.permute.xlu0 %1143
    %1145 = vrot.lane.b32.xlu0 %v956, 68
    %v1146 = vpop.permute.xlu0 %1145
    %1147 = vrot.lane.b32.xlu0 %v958, 68
    %v1148 = vpop.permute.xlu0 %1147
    %1149 = vrot.lane.b32.xlu0 %v960, 68
    %v1150 = vpop.permute.xlu0 %1149
    %1151 = vrot.lane.b32.xlu0 %v962, 68
    %v1152 = vpop.permute.xlu0 %1151
    %1153 = vrot.lane.b32.xlu0 %v964, 68
    %v1154 = vpop.permute.xlu0 %1153
    %1155 = vrot.lane.b32.xlu0 %v966, 68
    %v1156 = vpop.permute.xlu0 %1155
    %1157 = vrot.lane.b32.xlu0 %v968, 68
    %v1158 = vpop.permute.xlu0 %1157
    %1159 = vrot.lane.b32.xlu0 %v970, 68
    %v1160 = vpop.permute.xlu0 %1159
    %1175 = vrot.lane.b32.xlu0 %v979, 85
    %v1176 = vpop.permute.xlu0 %1175
    %1177 = vrot.lane.b32.xlu0 %v980, 85
    %v1178 = vpop.permute.xlu0 %1177
    %1179 = vrot.lane.b32.xlu0 %v984, 85
    %v1180 = vpop.permute.xlu0 %1179
    %1181 = vrot.lane.b32.xlu0 %v986, 85
    %v1182 = vpop.permute.xlu0 %1181
    %1183 = vrot.lane.b32.xlu0 %v988, 85
    %v1184 = vpop.permute.xlu0 %1183
    %1185 = vrot.lane.b32.xlu0 %v990, 85
    %v1186 = vpop.permute.xlu0 %1185
    %1187 = vrot.lane.b32.xlu0 %v992, 85
    %v1188 = vpop.permute.xlu0 %1187
    %1189 = vrot.lane.b32.xlu0 %v994, 85
    %v1190 = vpop.permute.xlu0 %1189
    %1191 = vrot.lane.b32.xlu0 %v996, 85
    %v1192 = vpop.permute.xlu0 %1191
    %1193 = vrot.lane.b32.xlu0 %v998, 85
    %v1194 = vpop.permute.xlu0 %1193
    %1195 = vrot.lane.b32.xlu0 %v1000, 85
    %v1196 = vpop.permute.xlu0 %1195
    %1197 = vrot.lane.b32.xlu0 %v1002, 85
    %v1198 = vpop.permute.xlu0 %1197
    %1199 = vrot.lane.b32.xlu0 %v1004, 85
    %v1200 = vpop.permute.xlu0 %1199
    %1201 = vrot.lane.b32.xlu0 %v1006, 85
    %v1202 = vpop.permute.xlu0 %1201
    %v1217 = vsel %vm687, %v787, %v1008
    %v1218 = vsel %vm687, %v788, %v1010
    %v1219 = vsel %vm687, %v792, %v1012
    %v1220 = vsel %vm687, %v794, %v1014
    %v1221 = vsel %vm687, %v798, %v1016
    %v1222 = vsel %vm687, %v800, %v1018
    %v1223 = vsel %vm687, %v804, %v1020
    %v1224 = vsel %vm687, %v806, %v1022
    %v1225 = vsel %vm687, %v810, %v1024
    %v1226 = vsel %vm687, %v812, %v1026
    %v1227 = vsel %vm687, %v816, %v1028
    %v1228 = vsel %vm687, %v818, %v1030
    %v1229 = vsel %vm687, %v822, %v1032
    %v1230 = vsel %vm687, %v824, %v1034
    %v1231 = vsel %vm694, %v1217, %v1050
    %v1232 = vsel %vm694, %v1218, %v1052
    %v1233 = vsel %vm694, %v1219, %v1054
    %v1234 = vsel %vm694, %v1220, %v1056
    %v1235 = vsel %vm694, %v1221, %v1058
    %v1236 = vsel %vm694, %v1222, %v1060
    %v1237 = vsel %vm694, %v1223, %v1062
    %v1238 = vsel %vm694, %v1224, %v1064
    %v1239 = vsel %vm694, %v1225, %v1066
    %v1240 = vsel %vm694, %v1226, %v1068
    %v1241 = vsel %vm694, %v1227, %v1070
    %v1242 = vsel %vm694, %v1228, %v1072
    %v1243 = vsel %vm694, %v1229, %v1074
    %v1244 = vsel %vm694, %v1230, %v1076
    %v1245 = vsel %vm701, %v1231, %v1092
    %v1246 = vsel %vm701, %v1232, %v1094
    %v1247 = vsel %vm701, %v1233, %v1096
    %v1248 = vsel %vm701, %v1234, %v1098
    %v1249 = vsel %vm701, %v1235, %v1100
    %v1250 = vsel %vm701, %v1236, %v1102
    %v1251 = vsel %vm701, %v1237, %v1104
    %v1252 = vsel %vm701, %v1238, %v1106
    %v1253 = vsel %vm701, %v1239, %v1108
    %v1254 = vsel %vm701, %v1240, %v1110
    %v1255 = vsel %vm701, %v1241, %v1112
    %v1256 = vsel %vm701, %v1242, %v1114
    %v1257 = vsel %vm701, %v1243, %v1116
    %v1258 = vsel %vm701, %v1244, %v1118
    %v1259 = vsel %vm708, %v1245, %v1134
    %v1260 = vsel %vm708, %v1246, %v1136
    %v1261 = vsel %vm708, %v1247, %v1138
    %v1262 = vsel %vm708, %v1248, %v1140
    %v1263 = vsel %vm708, %v1249, %v1142
    %v1264 = vsel %vm708, %v1250, %v1144
    %v1265 = vsel %vm708, %v1251, %v1146
    %v1266 = vsel %vm708, %v1252, %v1148
    %v1267 = vsel %vm708, %v1253, %v1150
    %v1268 = vsel %vm708, %v1254, %v1152
    %v1269 = vsel %vm708, %v1255, %v1154
    %v1270 = vsel %vm708, %v1256, %v1156
    %v1271 = vsel %vm708, %v1257, %v1158
    %v1272 = vsel %vm708, %v1258, %v1160
    %v1273 = vsel %vm715, %v1259, %v1176
    %v1274 = vsel %vm715, %v1260, %v1178
    %v1275 = vsel %vm715, %v1261, %v1180
    %v1276 = vsel %vm715, %v1262, %v1182
    %v1277 = vsel %vm715, %v1263, %v1184
    %v1278 = vsel %vm715, %v1264, %v1186
    %v1279 = vsel %vm715, %v1265, %v1188
    %v1280 = vsel %vm715, %v1266, %v1190
    %v1281 = vsel %vm715, %v1267, %v1192
    %v1282 = vsel %vm715, %v1268, %v1194
    %v1283 = vsel %vm715, %v1269, %v1196
    %v1284 = vsel %vm715, %v1270, %v1198
    %v1285 = vsel %vm715, %v1271, %v1200
    %v1286 = vsel %vm715, %v1272, %v1202
    %v1287 = vld [vmem:[#allocation5] sm:$0xff]
    %v1288 = vld [vmem:[#allocation5 + $0x8] sm:$0xff]
    %v1289 = vld [vmem:[%s9] sm:$0xff]
    %v1290 = vld [vmem:[%s9 + $0x8] sm:$0xff]
    %1292 = vset.pattern.permute.xlu0 0
    %1293 = vperm.xlu0 %1292, %v1289
    %v1294 = vpop.permute.xlu0 %1293
    %1297 = vset.pattern.permute.xlu0 0
    %1298 = vperm.xlu0 %1297, %v1290
    %v1299 = vpop.permute.xlu0 %1298
    %vm1301 = vcmask 916480
    %v1303 = vsel %vm1301, %v1287, 0
    %v1306 = vsel %vm1301, %v1288, 0
    %1308 = vmatpush.msra.mxu0 0.0
    %1309 = vmatpush.msra.mxu0 0.0
    %1310 = vmatpush.msra.mxu0 %v1286
    %1311 = vmatpush.msra.mxu0 %v1285
    %1312 = vmatpush.msra.mxu0 %v1284
    %1313 = vmatpush.msra.mxu0 %v1283
    %1314 = vmatpush.msra.mxu0 %v1282
    %1315 = vmatpush.msra.mxu0 %v1281
    %1316 = vmatpush.msra.mxu0 %v1280
    %1317 = vmatpush.msra.mxu0 %v1279
    %1318 = vmatpush.msra.mxu0 %v1278
    %1319 = vmatpush.msra.mxu0 %v1277
    %1320 = vmatpush.msra.mxu0 %v1276
    %1321 = vmatpush.msra.mxu0 %v1275
    %1322 = vmatpush.msra.mxu0 %v1274
    %1323 = vmatpush.msra.mxu0 %v1273
    %1324 = vmatmul.f32.gmra.mxu0 %v1303
    %v1325 = vpop.f32.mrf.mxu0
    %v1326 = vadd.f32 %v1294, %v1325
    %1327 = vmatmul.f32.gmra.mxu0 %v1306
    %v1328 = vpop.f32.mrf.mxu0
    %v1329 = vadd.f32 %v1299, %v1328
    %1330 = vdwg.mxu0
    %vm1331 = vcmp.gt.f32.partialorder %v1326, 0.0
    %vm1332 = vcmp.gt.f32.partialorder %v1329, 0.0
    %v1333 = vmul.f32 %v1326, 0.2
    %v1334 = vmul.f32 %v1329, 0.2
    %v1335 = vsel %vm1331, %v1326, %v1333
    %v1336 = vsel %vm1332, %v1329, %v1334
    %v1337 = vld [vmem:[%s5] sm:$0xff]
    %v1338 = vld [vmem:[%s5 + $0x8] sm:$0xff]
    %v1339 = vld [vmem:[%s5 + $0x10] sm:$0x1]
    %v1341 = vsel %vm687, %v1335, 0
    %v1344 = vsel %vm687, %v1336, 0
    %vm1346 = vcmask 1040384
    %v1348 = vsel %vm1346, %v1339, 0
    %1350 = vmatpush.msra.mxu0 0.0
    %1351 = vmatpush.msra.mxu0 0.0
    %1352 = vmatpush.msra.mxu0 0.0
    %1353 = vmatpush.msra.mxu0 0.0
    %1354 = vmatpush.msra.mxu0 0.0
    %1355 = vmatpush.msra.mxu0 0.0
    %1356 = vmatpush.msra.mxu0 0.0
    %1357 = vmatpush.msra.mxu0 0.0
    %1358 = vmatpush.msra.mxu0 0.0
    %1359 = vmatpush.msra.mxu0 0.0
    %1360 = vmatpush.msra.mxu0 0.0
    %1361 = vmatpush.msra.mxu0 0.0
    %1362 = vmatpush.msra.mxu0 0.0
    %1363 = vmatpush.msra.mxu0 %v1348
    %1364 = vmatpush.msra.mxu0 %v1338
    %1365 = vmatpush.msra.mxu0 %v1337
    %1366 = vmatmul.f32.gmra.mxu0 %v1341
    %v1367 = vpop.f32.mrf.mxu0
    %v1368 = vadd.f32 0.0, %v1367
    %1369 = vmatmul.f32.gmra.mxu0 %v1344
    %v1370 = vpop.f32.mrf.mxu0
    %v1371 = vadd.f32 0.0, %v1370
    %1372 = vdwg.mxu0
    %1375 = vrot.lane.b32.xlu0 %v1368, 5
    %v1376 = vpop.permute.xlu0 %1375
    %1377 = vrot.lane.b32.xlu0 %v1371, 5
    %v1378 = vpop.permute.xlu0 %1377
    %v1381 = vsel %vm321, 0.0, %v1376
    %v1382 = vsel %vm321, 0.0, %v1378
    %vm1383 = vcmask 375808
    %v1384 = vsel %vm1383, %v1381, 0.0
    %v1385 = vsel %vm1383, %v1382, 0.0
    %1388 = vrot.lane.b32.xlu0 %v1384, 127
    %v1389 = vpop.permute.xlu0 %1388
    %1390 = vrot.lane.b32.xlu0 %v1385, 127
    %v1391 = vpop.permute.xlu0 %1390
    %1394 = vrot.lane.b32.xlu0 %v1384, 126
    %v1395 = vpop.permute.xlu0 %1394
    %1396 = vrot.lane.b32.xlu0 %v1385, 126
    %v1397 = vpop.permute.xlu0 %1396
    %1400 = vrot.lane.b32.xlu0 %v1384, 125
    %v1401 = vpop.permute.xlu0 %1400
    %1402 = vrot.lane.b32.xlu0 %v1385, 125
    %v1403 = vpop.permute.xlu0 %1402
    %1406 = vrot.lane.b32.xlu0 %v1384, 124
    %v1407 = vpop.permute.xlu0 %1406
    %1408 = vrot.lane.b32.xlu0 %v1385, 124
    %v1409 = vpop.permute.xlu0 %1408
    %1412 = vrot.lane.b32.xlu0 %v1384, 123
    %v1413 = vpop.permute.xlu0 %1412
    %1414 = vrot.lane.b32.xlu0 %v1385, 123
    %v1415 = vpop.permute.xlu0 %1414
    %1418 = vrot.lane.b32.xlu0 %v1384, 122
    %v1419 = vpop.permute.xlu0 %1418
    %1420 = vrot.lane.b32.xlu0 %v1385, 122
    %v1421 = vpop.permute.xlu0 %1420
    %1424 = vrot.lane.b32.xlu0 %v1384, 121
    %v1425 = vpop.permute.xlu0 %1424
    %1426 = vrot.lane.b32.xlu0 %v1385, 121
    %v1427 = vpop.permute.xlu0 %1426
    %1430 = vrot.lane.b32.xlu0 %v1384, 120
    %v1431 = vpop.permute.xlu0 %1430
    %1432 = vrot.lane.b32.xlu0 %v1385, 120
    %v1433 = vpop.permute.xlu0 %1432
    %1436 = vrot.lane.b32.xlu0 %v1384, 119
    %v1437 = vpop.permute.xlu0 %1436
    %1438 = vrot.lane.b32.xlu0 %v1385, 119
    %v1439 = vpop.permute.xlu0 %1438
    %1442 = vrot.lane.b32.xlu0 %v1384, 118
    %v1443 = vpop.permute.xlu0 %1442
    %1444 = vrot.lane.b32.xlu0 %v1385, 118
    %v1445 = vpop.permute.xlu0 %1444
    %1448 = vrot.lane.b32.xlu0 %v1335, 111
    %v1449 = vpop.permute.xlu0 %1448
    %1450 = vrot.lane.b32.xlu0 %v1336, 111
    %v1451 = vpop.permute.xlu0 %1450
    %v1452 = vsel %vm687, %v1449, 0
    %v1454 = vsel %vm687, %v1451, 0
    %1456 = vmatpush.msra.mxu0 0.0
    %1457 = vmatpush.msra.mxu0 0.0
    %1458 = vmatpush.msra.mxu0 0.0
    %1459 = vmatpush.msra.mxu0 0.0
    %1460 = vmatpush.msra.mxu0 0.0
    %1461 = vmatpush.msra.mxu0 0.0
    %1462 = vmatpush.msra.mxu0 0.0
    %1463 = vmatpush.msra.mxu0 0.0
    %1464 = vmatpush.msra.mxu0 0.0
    %1465 = vmatpush.msra.mxu0 0.0
    %1466 = vmatpush.msra.mxu0 0.0
    %1467 = vmatpush.msra.mxu0 0.0
    %1468 = vmatpush.msra.mxu0 0.0
    %1469 = vmatpush.msra.mxu0 %v1348
    %1470 = vmatpush.msra.mxu0 %v1338
    %1471 = vmatpush.msra.mxu0 %v1337
    %1472 = vmatmul.f32.gmra.mxu0 %v1452
    %v1473 = vpop.f32.mrf.mxu0
    %v1474 = vadd.f32 0.0, %v1473
    %1475 = vmatmul.f32.gmra.mxu0 %v1454
    %v1476 = vpop.f32.mrf.mxu0
    %v1477 = vadd.f32 0.0, %v1476
    %1478 = vdwg.mxu0
    %1481 = vrot.lane.b32.xlu0 %v1474, 5
    %v1482 = vpop.permute.xlu0 %1481
    %1483 = vrot.lane.b32.xlu0 %v1477, 5
    %v1484 = vpop.permute.xlu0 %1483
    %v1487 = vsel %vm321, 0.0, %v1482
    %v1488 = vsel %vm321, 0.0, %v1484
    %v1489 = vsel %vm1383, %v1487, 0.0
    %v1490 = vsel %vm1383, %v1488, 0.0
    %1493 = vrot.lane.b32.xlu0 %v1489, 127
    %v1494 = vpop.permute.xlu0 %1493
    %1495 = vrot.lane.b32.xlu0 %v1490, 127
    %v1496 = vpop.permute.xlu0 %1495
    %1497 = vrot.lane.b32.xlu0 %v1489, 126
    %v1498 = vpop.permute.xlu0 %1497
    %1499 = vrot.lane.b32.xlu0 %v1490, 126
    %v1500 = vpop.permute.xlu0 %1499
    %1501 = vrot.lane.b32.xlu0 %v1489, 125
    %v1502 = vpop.permute.xlu0 %1501
    %1503 = vrot.lane.b32.xlu0 %v1490, 125
    %v1504 = vpop.permute.xlu0 %1503
    %1505 = vrot.lane.b32.xlu0 %v1489, 124
    %v1506 = vpop.permute.xlu0 %1505
    %1507 = vrot.lane.b32.xlu0 %v1490, 124
    %v1508 = vpop.permute.xlu0 %1507
    %1509 = vrot.lane.b32.xlu0 %v1489, 123
    %v1510 = vpop.permute.xlu0 %1509
    %1511 = vrot.lane.b32.xlu0 %v1490, 123
    %v1512 = vpop.permute.xlu0 %1511
    %1513 = vrot.lane.b32.xlu0 %v1489, 122
    %v1514 = vpop.permute.xlu0 %1513
    %1515 = vrot.lane.b32.xlu0 %v1490, 122
    %v1516 = vpop.permute.xlu0 %1515
    %1517 = vrot.lane.b32.xlu0 %v1489, 121
    %v1518 = vpop.permute.xlu0 %1517
    %1519 = vrot.lane.b32.xlu0 %v1490, 121
    %v1520 = vpop.permute.xlu0 %1519
    %1521 = vrot.lane.b32.xlu0 %v1489, 120
    %v1522 = vpop.permute.xlu0 %1521
    %1523 = vrot.lane.b32.xlu0 %v1490, 120
    %v1524 = vpop.permute.xlu0 %1523
    %1525 = vrot.lane.b32.xlu0 %v1489, 119
    %v1526 = vpop.permute.xlu0 %1525
    %1527 = vrot.lane.b32.xlu0 %v1490, 119
    %v1528 = vpop.permute.xlu0 %1527
    %1529 = vrot.lane.b32.xlu0 %v1489, 118
    %v1530 = vpop.permute.xlu0 %1529
    %1531 = vrot.lane.b32.xlu0 %v1490, 118
    %v1532 = vpop.permute.xlu0 %1531
    %1533 = vrot.lane.b32.xlu0 %v1489, 41
    %v1534 = vpop.permute.xlu0 %1533
    %1535 = vrot.lane.b32.xlu0 %v1490, 41
    %v1536 = vpop.permute.xlu0 %1535
    %1537 = vrot.lane.b32.xlu0 %v1494, 41
    %v1538 = vpop.permute.xlu0 %1537
    %1539 = vrot.lane.b32.xlu0 %v1496, 41
    %v1540 = vpop.permute.xlu0 %1539
    %1541 = vrot.lane.b32.xlu0 %v1498, 41
    %v1542 = vpop.permute.xlu0 %1541
    %1543 = vrot.lane.b32.xlu0 %v1500, 41
    %v1544 = vpop.permute.xlu0 %1543
    %1545 = vrot.lane.b32.xlu0 %v1502, 41
    %v1546 = vpop.permute.xlu0 %1545
    %1547 = vrot.lane.b32.xlu0 %v1504, 41
    %v1548 = vpop.permute.xlu0 %1547
    %1549 = vrot.lane.b32.xlu0 %v1506, 41
    %v1550 = vpop.permute.xlu0 %1549
    %1551 = vrot.lane.b32.xlu0 %v1508, 41
    %v1552 = vpop.permute.xlu0 %1551
    %1553 = vrot.lane.b32.xlu0 %v1510, 41
    %v1554 = vpop.permute.xlu0 %1553
    %1555 = vrot.lane.b32.xlu0 %v1512, 41
    %v1556 = vpop.permute.xlu0 %1555
    %1557 = vrot.lane.b32.xlu0 %v1514, 41
    %v1558 = vpop.permute.xlu0 %1557
    %1559 = vrot.lane.b32.xlu0 %v1516, 41
    %v1560 = vpop.permute.xlu0 %1559
    %1561 = vrot.lane.b32.xlu0 %v1518, 41
    %v1562 = vpop.permute.xlu0 %1561
    %1563 = vrot.lane.b32.xlu0 %v1520, 41
    %v1564 = vpop.permute.xlu0 %1563
    %1565 = vrot.lane.b32.xlu0 %v1522, 41
    %v1566 = vpop.permute.xlu0 %1565
    %1567 = vrot.lane.b32.xlu0 %v1524, 41
    %v1568 = vpop.permute.xlu0 %1567
    %1569 = vrot.lane.b32.xlu0 %v1526, 41
    %v1570 = vpop.permute.xlu0 %1569
    %1571 = vrot.lane.b32.xlu0 %v1528, 41
    %v1572 = vpop.permute.xlu0 %1571
    %1573 = vrot.lane.b32.xlu0 %v1530, 41
    %v1574 = vpop.permute.xlu0 %1573
    %1575 = vrot.lane.b32.xlu0 %v1532, 41
    %v1576 = vpop.permute.xlu0 %1575
    %vm1599 = vcmask 334848
    %v1600 = vsel %vm1599, %v1384, %v1534
    %v1601 = vsel %vm1599, %v1385, %v1536
    %v1602 = vsel %vm1599, %v1389, %v1538
    %v1603 = vsel %vm1599, %v1391, %v1540
    %v1604 = vsel %vm1599, %v1395, %v1542
    %v1605 = vsel %vm1599, %v1397, %v1544
    %v1606 = vsel %vm1599, %v1401, %v1546
    %v1607 = vsel %vm1599, %v1403, %v1548
    %v1608 = vsel %vm1599, %v1407, %v1550
    %v1609 = vsel %vm1599, %v1409, %v1552
    %v1610 = vsel %vm1599, %v1413, %v1554
    %v1611 = vsel %vm1599, %v1415, %v1556
    %v1612 = vsel %vm1599, %v1419, %v1558
    %v1613 = vsel %vm1599, %v1421, %v1560
    %v1614 = vsel %vm1599, %v1425, %v1562
    %v1615 = vsel %vm1599, %v1427, %v1564
    %v1616 = vsel %vm1599, %v1431, %v1566
    %v1617 = vsel %vm1599, %v1433, %v1568
    %v1618 = vsel %vm1599, %v1437, %v1570
    %v1619 = vsel %vm1599, %v1439, %v1572
    %v1620 = vsel %vm1599, %v1443, %v1574
    %v1621 = vsel %vm1599, %v1445, %v1576
    %1622 = vrot.lane.b32.xlu0 %v1335, 94
    %v1623 = vpop.permute.xlu0 %1622
    %1624 = vrot.lane.b32.xlu0 %v1336, 94
    %v1625 = vpop.permute.xlu0 %1624
    %v1626 = vsel %vm687, %v1623, 0
    %v1628 = vsel %vm687, %v1625, 0
    %1630 = vmatpush.msra.mxu0 0.0
    %1631 = vmatpush.msra.mxu0 0.0
    %1632 = vmatpush.msra.mxu0 0.0
    %1633 = vmatpush.msra.mxu0 0.0
    %1634 = vmatpush.msra.mxu0 0.0
    %1635 = vmatpush.msra.mxu0 0.0
    %1636 = vmatpush.msra.mxu0 0.0
    %1637 = vmatpush.msra.mxu0 0.0
    %1638 = vmatpush.msra.mxu0 0.0
    %1639 = vmatpush.msra.mxu0 0.0
    %1640 = vmatpush.msra.mxu0 0.0
    %1641 = vmatpush.msra.mxu0 0.0
    %1642 = vmatpush.msra.mxu0 0.0
    %1643 = vmatpush.msra.mxu0 %v1348
    %1644 = vmatpush.msra.mxu0 %v1338
    %1645 = vmatpush.msra.mxu0 %v1337
    %1646 = vmatmul.f32.gmra.mxu0 %v1626
    %v1647 = vpop.f32.mrf.mxu0
    %v1648 = vadd.f32 0.0, %v1647
    %1649 = vmatmul.f32.gmra.mxu0 %v1628
    %v1650 = vpop.f32.mrf.mxu0
    %v1651 = vadd.f32 0.0, %v1650
    %1652 = vdwg.mxu0
    %1655 = vrot.lane.b32.xlu0 %v1648, 5
    %v1656 = vpop.permute.xlu0 %1655
    %1657 = vrot.lane.b32.xlu0 %v1651, 5
    %v1658 = vpop.permute.xlu0 %1657
    %v1661 = vsel %vm321, 0.0, %v1656
    %v1662 = vsel %vm321, 0.0, %v1658
    %v1663 = vsel %vm1383, %v1661, 0.0
    %v1664 = vsel %vm1383, %v1662, 0.0
    %1667 = vrot.lane.b32.xlu0 %v1663, 127
    %v1668 = vpop.permute.xlu0 %1667
    %1669 = vrot.lane.b32.xlu0 %v1664, 127
    %v1670 = vpop.permute.xlu0 %1669
    %1673 = vrot.lane.b32.xlu0 %v1663, 126
    %v1674 = vpop.permute.xlu0 %1673
    %1675 = vrot.lane.b32.xlu0 %v1664, 126
    %v1676 = vpop.permute.xlu0 %1675
    %1679 = vrot.lane.b32.xlu0 %v1663, 125
    %v1680 = vpop.permute.xlu0 %1679
    %1681 = vrot.lane.b32.xlu0 %v1664, 125
    %v1682 = vpop.permute.xlu0 %1681
    %1685 = vrot.lane.b32.xlu0 %v1663, 124
    %v1686 = vpop.permute.xlu0 %1685
    %1687 = vrot.lane.b32.xlu0 %v1664, 124
    %v1688 = vpop.permute.xlu0 %1687
    %1691 = vrot.lane.b32.xlu0 %v1663, 123
    %v1692 = vpop.permute.xlu0 %1691
    %1693 = vrot.lane.b32.xlu0 %v1664, 123
    %v1694 = vpop.permute.xlu0 %1693
    %1697 = vrot.lane.b32.xlu0 %v1663, 122
    %v1698 = vpop.permute.xlu0 %1697
    %1699 = vrot.lane.b32.xlu0 %v1664, 122
    %v1700 = vpop.permute.xlu0 %1699
    %1703 = vrot.lane.b32.xlu0 %v1663, 121
    %v1704 = vpop.permute.xlu0 %1703
    %1705 = vrot.lane.b32.xlu0 %v1664, 121
    %v1706 = vpop.permute.xlu0 %1705
    %1709 = vrot.lane.b32.xlu0 %v1663, 120
    %v1710 = vpop.permute.xlu0 %1709
    %1711 = vrot.lane.b32.xlu0 %v1664, 120
    %v1712 = vpop.permute.xlu0 %1711
    %1715 = vrot.lane.b32.xlu0 %v1663, 119
    %v1716 = vpop.permute.xlu0 %1715
    %1717 = vrot.lane.b32.xlu0 %v1664, 119
    %v1718 = vpop.permute.xlu0 %1717
    %1721 = vrot.lane.b32.xlu0 %v1663, 118
    %v1722 = vpop.permute.xlu0 %1721
    %1723 = vrot.lane.b32.xlu0 %v1664, 118
    %v1724 = vpop.permute.xlu0 %1723
    %1727 = vrot.lane.b32.xlu0 %v1335, 77
    %v1728 = vpop.permute.xlu0 %1727
    %1729 = vrot.lane.b32.xlu0 %v1336, 77
    %v1730 = vpop.permute.xlu0 %1729
    %v1731 = vsel %vm687, %v1728, 0
    %v1733 = vsel %vm687, %v1730, 0
    %1735 = vmatpush.msra.mxu0 0.0
    %1736 = vmatpush.msra.mxu0 0.0
    %1737 = vmatpush.msra.mxu0 0.0
    %1738 = vmatpush.msra.mxu0 0.0
    %1739 = vmatpush.msra.mxu0 0.0
    %1740 = vmatpush.msra.mxu0 0.0
    %1741 = vmatpush.msra.mxu0 0.0
    %1742 = vmatpush.msra.mxu0 0.0
    %1743 = vmatpush.msra.mxu0 0.0
    %1744 = vmatpush.msra.mxu0 0.0
    %1745 = vmatpush.msra.mxu0 0.0
    %1746 = vmatpush.msra.mxu0 0.0
    %1747 = vmatpush.msra.mxu0 0.0
    %1748 = vmatpush.msra.mxu0 %v1348
    %1749 = vmatpush.msra.mxu0 %v1338
    %1750 = vmatpush.msra.mxu0 %v1337
    %1751 = vmatmul.f32.gmra.mxu0 %v1731
    %v1752 = vpop.f32.mrf.mxu0
    %v1753 = vadd.f32 0.0, %v1752
    %1754 = vmatmul.f32.gmra.mxu0 %v1733
    %v1755 = vpop.f32.mrf.mxu0
    %v1756 = vadd.f32 0.0, %v1755
    %1757 = vdwg.mxu0
    %1760 = vrot.lane.b32.xlu0 %v1753, 5
    %v1761 = vpop.permute.xlu0 %1760
    %1762 = vrot.lane.b32.xlu0 %v1756, 5
    %v1763 = vpop.permute.xlu0 %1762
    %v1766 = vsel %vm321, 0.0, %v1761
    %v1767 = vsel %vm321, 0.0, %v1763
    %v1768 = vsel %vm1383, %v1766, 0.0
    %v1769 = vsel %vm1383, %v1767, 0.0
    %1772 = vrot.lane.b32.xlu0 %v1768, 127
    %v1773 = vpop.permute.xlu0 %1772
    %1774 = vrot.lane.b32.xlu0 %v1769, 127
    %v1775 = vpop.permute.xlu0 %1774
    %1776 = vrot.lane.b32.xlu0 %v1768, 126
    %v1777 = vpop.permute.xlu0 %1776
    %1778 = vrot.lane.b32.xlu0 %v1769, 126
    %v1779 = vpop.permute.xlu0 %1778
    %1780 = vrot.lane.b32.xlu0 %v1768, 125
    %v1781 = vpop.permute.xlu0 %1780
    %1782 = vrot.lane.b32.xlu0 %v1769, 125
    %v1783 = vpop.permute.xlu0 %1782
    %1784 = vrot.lane.b32.xlu0 %v1768, 124
    %v1785 = vpop.permute.xlu0 %1784
    %1786 = vrot.lane.b32.xlu0 %v1769, 124
    %v1787 = vpop.permute.xlu0 %1786
    %1788 = vrot.lane.b32.xlu0 %v1768, 123
    %v1789 = vpop.permute.xlu0 %1788
    %1790 = vrot.lane.b32.xlu0 %v1769, 123
    %v1791 = vpop.permute.xlu0 %1790
    %1792 = vrot.lane.b32.xlu0 %v1768, 122
    %v1793 = vpop.permute.xlu0 %1792
    %1794 = vrot.lane.b32.xlu0 %v1769, 122
    %v1795 = vpop.permute.xlu0 %1794
    %1796 = vrot.lane.b32.xlu0 %v1768, 121
    %v1797 = vpop.permute.xlu0 %1796
    %1798 = vrot.lane.b32.xlu0 %v1769, 121
    %v1799 = vpop.permute.xlu0 %1798
    %1800 = vrot.lane.b32.xlu0 %v1768, 120
    %v1801 = vpop.permute.xlu0 %1800
    %1802 = vrot.lane.b32.xlu0 %v1769, 120
    %v1803 = vpop.permute.xlu0 %1802
    %1804 = vrot.lane.b32.xlu0 %v1768, 119
    %v1805 = vpop.permute.xlu0 %1804
    %1806 = vrot.lane.b32.xlu0 %v1769, 119
    %v1807 = vpop.permute.xlu0 %1806
    %1808 = vrot.lane.b32.xlu0 %v1768, 118
    %v1809 = vpop.permute.xlu0 %1808
    %1810 = vrot.lane.b32.xlu0 %v1769, 118
    %v1811 = vpop.permute.xlu0 %1810
    %1812 = vrot.lane.b32.xlu0 %v1768, 41
    %v1813 = vpop.permute.xlu0 %1812
    %1814 = vrot.lane.b32.xlu0 %v1769, 41
    %v1815 = vpop.permute.xlu0 %1814
    %1816 = vrot.lane.b32.xlu0 %v1773, 41
    %v1817 = vpop.permute.xlu0 %1816
    %1818 = vrot.lane.b32.xlu0 %v1775, 41
    %v1819 = vpop.permute.xlu0 %1818
    %1820 = vrot.lane.b32.xlu0 %v1777, 41
    %v1821 = vpop.permute.xlu0 %1820
    %1822 = vrot.lane.b32.xlu0 %v1779, 41
    %v1823 = vpop.permute.xlu0 %1822
    %1824 = vrot.lane.b32.xlu0 %v1781, 41
    %v1825 = vpop.permute.xlu0 %1824
    %1826 = vrot.lane.b32.xlu0 %v1783, 41
    %v1827 = vpop.permute.xlu0 %1826
    %1828 = vrot.lane.b32.xlu0 %v1785, 41
    %v1829 = vpop.permute.xlu0 %1828
    %1830 = vrot.lane.b32.xlu0 %v1787, 41
    %v1831 = vpop.permute.xlu0 %1830
    %1832 = vrot.lane.b32.xlu0 %v1789, 41
    %v1833 = vpop.permute.xlu0 %1832
    %1834 = vrot.lane.b32.xlu0 %v1791, 41
    %v1835 = vpop.permute.xlu0 %1834
    %1836 = vrot.lane.b32.xlu0 %v1793, 41
    %v1837 = vpop.permute.xlu0 %1836
    %1838 = vrot.lane.b32.xlu0 %v1795, 41
    %v1839 = vpop.permute.xlu0 %1838
    %1840 = vrot.lane.b32.xlu0 %v1797, 41
    %v1841 = vpop.permute.xlu0 %1840
    %1842 = vrot.lane.b32.xlu0 %v1799, 41
    %v1843 = vpop.permute.xlu0 %1842
    %1844 = vrot.lane.b32.xlu0 %v1801, 41
    %v1845 = vpop.permute.xlu0 %1844
    %1846 = vrot.lane.b32.xlu0 %v1803, 41
    %v1847 = vpop.permute.xlu0 %1846
    %1848 = vrot.lane.b32.xlu0 %v1805, 41
    %v1849 = vpop.permute.xlu0 %1848
    %1850 = vrot.lane.b32.xlu0 %v1807, 41
    %v1851 = vpop.permute.xlu0 %1850
    %1852 = vrot.lane.b32.xlu0 %v1809, 41
    %v1853 = vpop.permute.xlu0 %1852
    %1854 = vrot.lane.b32.xlu0 %v1811, 41
    %v1855 = vpop.permute.xlu0 %1854
    %v1878 = vsel %vm1599, %v1663, %v1813
    %v1879 = vsel %vm1599, %v1664, %v1815
    %v1880 = vsel %vm1599, %v1668, %v1817
    %v1881 = vsel %vm1599, %v1670, %v1819
    %v1882 = vsel %vm1599, %v1674, %v1821
    %v1883 = vsel %vm1599, %v1676, %v1823
    %v1884 = vsel %vm1599, %v1680, %v1825
    %v1885 = vsel %vm1599, %v1682, %v1827
    %v1886 = vsel %vm1599, %v1686, %v1829
    %v1887 = vsel %vm1599, %v1688, %v1831
    %v1888 = vsel %vm1599, %v1692, %v1833
    %v1889 = vsel %vm1599, %v1694, %v1835
    %v1890 = vsel %vm1599, %v1698, %v1837
    %v1891 = vsel %vm1599, %v1700, %v1839
    %v1892 = vsel %vm1599, %v1704, %v1841
    %v1893 = vsel %vm1599, %v1706, %v1843
    %v1894 = vsel %vm1599, %v1710, %v1845
    %v1895 = vsel %vm1599, %v1712, %v1847
    %v1896 = vsel %vm1599, %v1716, %v1849
    %v1897 = vsel %vm1599, %v1718, %v1851
    %v1898 = vsel %vm1599, %v1722, %v1853
    %v1899 = vsel %vm1599, %v1724, %v1855
    %1900 = vrot.lane.b32.xlu0 %v1335, 60
    %v1901 = vpop.permute.xlu0 %1900
    %1902 = vrot.lane.b32.xlu0 %v1336, 60
    %v1903 = vpop.permute.xlu0 %1902
    %v1904 = vsel %vm687, %v1901, 0
    %v1906 = vsel %vm687, %v1903, 0
    %1908 = vmatpush.msra.mxu0 0.0
    %1909 = vmatpush.msra.mxu0 0.0
    %1910 = vmatpush.msra.mxu0 0.0
    %1911 = vmatpush.msra.mxu0 0.0
    %1912 = vmatpush.msra.mxu0 0.0
    %1913 = vmatpush.msra.mxu0 0.0
    %1914 = vmatpush.msra.mxu0 0.0
    %1915 = vmatpush.msra.mxu0 0.0
    %1916 = vmatpush.msra.mxu0 0.0
    %1917 = vmatpush.msra.mxu0 0.0
    %1918 = vmatpush.msra.mxu0 0.0
    %1919 = vmatpush.msra.mxu0 0.0
    %1920 = vmatpush.msra.mxu0 0.0
    %1921 = vmatpush.msra.mxu0 %v1348
    %1922 = vmatpush.msra.mxu0 %v1338
    %1923 = vmatpush.msra.mxu0 %v1337
    %1924 = vmatmul.f32.gmra.mxu0 %v1904
    %v1925 = vpop.f32.mrf.mxu0
    %v1926 = vadd.f32 0.0, %v1925
    %1927 = vmatmul.f32.gmra.mxu0 %v1906
    %v1928 = vpop.f32.mrf.mxu0
    %v1929 = vadd.f32 0.0, %v1928
    %1930 = vdwg.mxu0
    %1933 = vrot.lane.b32.xlu0 %v1926, 5
    %v1934 = vpop.permute.xlu0 %1933
    %1935 = vrot.lane.b32.xlu0 %v1929, 5
    %v1936 = vpop.permute.xlu0 %1935
    %v1939 = vsel %vm321, 0.0, %v1934
    %v1940 = vsel %vm321, 0.0, %v1936
    %v1941 = vsel %vm1383, %v1939, 0.0
    %v1942 = vsel %vm1383, %v1940, 0.0
    %1945 = vrot.lane.b32.xlu0 %v1941, 127
    %v1946 = vpop.permute.xlu0 %1945
    %1947 = vrot.lane.b32.xlu0 %v1942, 127
    %v1948 = vpop.permute.xlu0 %1947
    %1951 = vrot.lane.b32.xlu0 %v1941, 126
    %v1952 = vpop.permute.xlu0 %1951
    %1953 = vrot.lane.b32.xlu0 %v1942, 126
    %v1954 = vpop.permute.xlu0 %1953
    %1957 = vrot.lane.b32.xlu0 %v1941, 125
    %v1958 = vpop.permute.xlu0 %1957
    %1959 = vrot.lane.b32.xlu0 %v1942, 125
    %v1960 = vpop.permute.xlu0 %1959
    %1963 = vrot.lane.b32.xlu0 %v1941, 124
    %v1964 = vpop.permute.xlu0 %1963
    %1965 = vrot.lane.b32.xlu0 %v1942, 124
    %v1966 = vpop.permute.xlu0 %1965
    %1969 = vrot.lane.b32.xlu0 %v1941, 123
    %v1970 = vpop.permute.xlu0 %1969
    %1971 = vrot.lane.b32.xlu0 %v1942, 123
    %v1972 = vpop.permute.xlu0 %1971
    %1975 = vrot.lane.b32.xlu0 %v1941, 122
    %v1976 = vpop.permute.xlu0 %1975
    %1977 = vrot.lane.b32.xlu0 %v1942, 122
    %v1978 = vpop.permute.xlu0 %1977
    %1981 = vrot.lane.b32.xlu0 %v1941, 121
    %v1982 = vpop.permute.xlu0 %1981
    %1983 = vrot.lane.b32.xlu0 %v1942, 121
    %v1984 = vpop.permute.xlu0 %1983
    %1987 = vrot.lane.b32.xlu0 %v1941, 120
    %v1988 = vpop.permute.xlu0 %1987
    %1989 = vrot.lane.b32.xlu0 %v1942, 120
    %v1990 = vpop.permute.xlu0 %1989
    %1993 = vrot.lane.b32.xlu0 %v1941, 119
    %v1994 = vpop.permute.xlu0 %1993
    %1995 = vrot.lane.b32.xlu0 %v1942, 119
    %v1996 = vpop.permute.xlu0 %1995
    %1999 = vrot.lane.b32.xlu0 %v1941, 118
    %v2000 = vpop.permute.xlu0 %1999
    %2001 = vrot.lane.b32.xlu0 %v1942, 118
    %v2002 = vpop.permute.xlu0 %2001
    %2005 = vrot.lane.b32.xlu0 %v1335, 43
    %v2006 = vpop.permute.xlu0 %2005
    %2007 = vrot.lane.b32.xlu0 %v1336, 43
    %v2008 = vpop.permute.xlu0 %2007
    %v2009 = vsel %vm687, %v2006, 0
    %v2011 = vsel %vm687, %v2008, 0
    %2013 = vmatpush.msra.mxu0 0.0
    %2014 = vmatpush.msra.mxu0 0.0
    %2015 = vmatpush.msra.mxu0 0.0
    %2016 = vmatpush.msra.mxu0 0.0
    %2017 = vmatpush.msra.mxu0 0.0
    %2018 = vmatpush.msra.mxu0 0.0
    %2019 = vmatpush.msra.mxu0 0.0
    %2020 = vmatpush.msra.mxu0 0.0
    %2021 = vmatpush.msra.mxu0 0.0
    %2022 = vmatpush.msra.mxu0 0.0
    %2023 = vmatpush.msra.mxu0 0.0
    %2024 = vmatpush.msra.mxu0 0.0
    %2025 = vmatpush.msra.mxu0 0.0
    %2026 = vmatpush.msra.mxu0 %v1348
    %2027 = vmatpush.msra.mxu0 %v1338
    %2028 = vmatpush.msra.mxu0 %v1337
    %2029 = vmatmul.f32.gmra.mxu0 %v2009
    %v2030 = vpop.f32.mrf.mxu0
    %v2031 = vadd.f32 0.0, %v2030
    %2032 = vmatmul.f32.gmra.mxu0 %v2011
    %v2033 = vpop.f32.mrf.mxu0
    %v2034 = vadd.f32 0.0, %v2033
    %2035 = vdwg.mxu0
    %2038 = vrot.lane.b32.xlu0 %v2031, 5
    %v2039 = vpop.permute.xlu0 %2038
    %2040 = vrot.lane.b32.xlu0 %v2034, 5
    %v2041 = vpop.permute.xlu0 %2040
    %v2044 = vsel %vm321, 0.0, %v2039
    %v2045 = vsel %vm321, 0.0, %v2041
    %v2046 = vsel %vm1383, %v2044, 0.0
    %v2047 = vsel %vm1383, %v2045, 0.0
    %2050 = vrot.lane.b32.xlu0 %v2046, 127
    %v2051 = vpop.permute.xlu0 %2050
    %2052 = vrot.lane.b32.xlu0 %v2047, 127
    %v2053 = vpop.permute.xlu0 %2052
    %2054 = vrot.lane.b32.xlu0 %v2046, 126
    %v2055 = vpop.permute.xlu0 %2054
    %2056 = vrot.lane.b32.xlu0 %v2047, 126
    %v2057 = vpop.permute.xlu0 %2056
    %2058 = vrot.lane.b32.xlu0 %v2046, 125
    %v2059 = vpop.permute.xlu0 %2058
    %2060 = vrot.lane.b32.xlu0 %v2047, 125
    %v2061 = vpop.permute.xlu0 %2060
    %2062 = vrot.lane.b32.xlu0 %v2046, 124
    %v2063 = vpop.permute.xlu0 %2062
    %2064 = vrot.lane.b32.xlu0 %v2047, 124
    %v2065 = vpop.permute.xlu0 %2064
    %2066 = vrot.lane.b32.xlu0 %v2046, 123
    %v2067 = vpop.permute.xlu0 %2066
    %2068 = vrot.lane.b32.xlu0 %v2047, 123
    %v2069 = vpop.permute.xlu0 %2068
    %2070 = vrot.lane.b32.xlu0 %v2046, 122
    %v2071 = vpop.permute.xlu0 %2070
    %2072 = vrot.lane.b32.xlu0 %v2047, 122
    %v2073 = vpop.permute.xlu0 %2072
    %2074 = vrot.lane.b32.xlu0 %v2046, 121
    %v2075 = vpop.permute.xlu0 %2074
    %2076 = vrot.lane.b32.xlu0 %v2047, 121
    %v2077 = vpop.permute.xlu0 %2076
    %2078 = vrot.lane.b32.xlu0 %v2046, 120
    %v2079 = vpop.permute.xlu0 %2078
    %2080 = vrot.lane.b32.xlu0 %v2047, 120
    %v2081 = vpop.permute.xlu0 %2080
    %2082 = vrot.lane.b32.xlu0 %v2046, 119
    %v2083 = vpop.permute.xlu0 %2082
    %2084 = vrot.lane.b32.xlu0 %v2047, 119
    %v2085 = vpop.permute.xlu0 %2084
    %2086 = vrot.lane.b32.xlu0 %v2046, 118
    %v2087 = vpop.permute.xlu0 %2086
    %2088 = vrot.lane.b32.xlu0 %v2047, 118
    %v2089 = vpop.permute.xlu0 %2088
    %2090 = vrot.lane.b32.xlu0 %v2046, 41
    %v2091 = vpop.permute.xlu0 %2090
    %2092 = vrot.lane.b32.xlu0 %v2047, 41
    %v2093 = vpop.permute.xlu0 %2092
    %2094 = vrot.lane.b32.xlu0 %v2051, 41
    %v2095 = vpop.permute.xlu0 %2094
    %2096 = vrot.lane.b32.xlu0 %v2053, 41
    %v2097 = vpop.permute.xlu0 %2096
    %2098 = vrot.lane.b32.xlu0 %v2055, 41
    %v2099 = vpop.permute.xlu0 %2098
    %2100 = vrot.lane.b32.xlu0 %v2057, 41
    %v2101 = vpop.permute.xlu0 %2100
    %2102 = vrot.lane.b32.xlu0 %v2059, 41
    %v2103 = vpop.permute.xlu0 %2102
    %2104 = vrot.lane.b32.xlu0 %v2061, 41
    %v2105 = vpop.permute.xlu0 %2104
    %2106 = vrot.lane.b32.xlu0 %v2063, 41
    %v2107 = vpop.permute.xlu0 %2106
    %2108 = vrot.lane.b32.xlu0 %v2065, 41
    %v2109 = vpop.permute.xlu0 %2108
    %2110 = vrot.lane.b32.xlu0 %v2067, 41
    %v2111 = vpop.permute.xlu0 %2110
    %2112 = vrot.lane.b32.xlu0 %v2069, 41
    %v2113 = vpop.permute.xlu0 %2112
    %2114 = vrot.lane.b32.xlu0 %v2071, 41
    %v2115 = vpop.permute.xlu0 %2114
    %2116 = vrot.lane.b32.xlu0 %v2073, 41
    %v2117 = vpop.permute.xlu0 %2116
    %2118 = vrot.lane.b32.xlu0 %v2075, 41
    %v2119 = vpop.permute.xlu0 %2118
    %2120 = vrot.lane.b32.xlu0 %v2077, 41
    %v2121 = vpop.permute.xlu0 %2120
    %2122 = vrot.lane.b32.xlu0 %v2079, 41
    %v2123 = vpop.permute.xlu0 %2122
    %2124 = vrot.lane.b32.xlu0 %v2081, 41
    %v2125 = vpop.permute.xlu0 %2124
    %2126 = vrot.lane.b32.xlu0 %v2083, 41
    %v2127 = vpop.permute.xlu0 %2126
    %2128 = vrot.lane.b32.xlu0 %v2085, 41
    %v2129 = vpop.permute.xlu0 %2128
    %2130 = vrot.lane.b32.xlu0 %v2087, 41
    %v2131 = vpop.permute.xlu0 %2130
    %2132 = vrot.lane.b32.xlu0 %v2089, 41
    %v2133 = vpop.permute.xlu0 %2132
    %v2156 = vsel %vm1599, %v1941, %v2091
    %v2157 = vsel %vm1599, %v1942, %v2093
    %v2158 = vsel %vm1599, %v1946, %v2095
    %v2159 = vsel %vm1599, %v1948, %v2097
    %v2160 = vsel %vm1599, %v1952, %v2099
    %v2161 = vsel %vm1599, %v1954, %v2101
    %v2162 = vsel %vm1599, %v1958, %v2103
    %v2163 = vsel %vm1599, %v1960, %v2105
    %v2164 = vsel %vm1599, %v1964, %v2107
    %v2165 = vsel %vm1599, %v1966, %v2109
    %v2166 = vsel %vm1599, %v1970, %v2111
    %v2167 = vsel %vm1599, %v1972, %v2113
    %v2168 = vsel %vm1599, %v1976, %v2115
    %v2169 = vsel %vm1599, %v1978, %v2117
    %v2170 = vsel %vm1599, %v1982, %v2119
    %v2171 = vsel %vm1599, %v1984, %v2121
    %v2172 = vsel %vm1599, %v1988, %v2123
    %v2173 = vsel %vm1599, %v1990, %v2125
    %v2174 = vsel %vm1599, %v1994, %v2127
    %v2175 = vsel %vm1599, %v1996, %v2129
    %v2176 = vsel %vm1599, %v2000, %v2131
    %v2177 = vsel %vm1599, %v2002, %v2133
    %v2178 = vld [vmem:[%s10] sm:$0xff]
    %v2179 = vld [vmem:[%s10 + $0x8] sm:$0xff]
    %v2180 = vld [vmem:[%s10 + $0x10] sm:$0xff]
    %v2181 = vld [vmem:[%s10 + $0x18] sm:$0xff]
    %v2182 = vld [vmem:[%s10 + $0x20] sm:$0xff]
    %v2183 = vld [vmem:[%s10 + $0x28] sm:$0xff]
    %v2184 = vld [vmem:[%s10 + $0x30] sm:$0xff]
    %v2185 = vld [vmem:[%s10 + $0x38] sm:$0xff]
    %v2186 = vld [vmem:[%s10 + $0x40] sm:$0xff]
    %v2187 = vld [vmem:[%s10 + $0x48] sm:$0xff]
    %v2188 = vld [vmem:[%s11] sm:$0xff]
    %v2189 = vld [vmem:[%s11 + $0x8] sm:$0xff]
    %2191 = vset.pattern.permute.xlu0 0
    %2192 = vperm.xlu0 %2191, %v2188
    %v2193 = vpop.permute.xlu0 %2192
    %2196 = vset.pattern.permute.xlu0 0
    %2197 = vperm.xlu0 %2196, %v2189
    %v2198 = vpop.permute.xlu0 %2197
    %v2201 = vsel %vm181, %v2182, 0
    %v2204 = vsel %vm181, %v2187, 0
    %2206 = vmatpush.msra.mxu0 %v1615
    %2207 = vmatpush.msra.mxu0 %v1614
    %2208 = vmatpush.msra.mxu0 %v1613
    %2209 = vmatpush.msra.mxu0 %v1612
    %2210 = vmatpush.msra.mxu0 %v1611
    %2211 = vmatpush.msra.mxu0 %v1610
    %2212 = vmatpush.msra.mxu0 %v1609
    %2213 = vmatpush.msra.mxu0 %v1608
    %2214 = vmatpush.msra.mxu0 %v1607
    %2215 = vmatpush.msra.mxu0 %v1606
    %2216 = vmatpush.msra.mxu0 %v1605
    %2217 = vmatpush.msra.mxu0 %v1604
    %2218 = vmatpush.msra.mxu0 %v1603
    %2219 = vmatpush.msra.mxu0 %v1602
    %2220 = vmatpush.msra.mxu0 %v1601
    %2221 = vmatpush.msra.mxu0 %v1600
    %2222 = vmatmul.f32.gmra.mxu0 %v2178
    %v2223 = vpop.f32.mrf.mxu0
    %v2224 = vadd.f32 %v2193, %v2223
    %2225 = vmatmul.f32.gmra.mxu0 %v2183
    %v2226 = vpop.f32.mrf.mxu0
    %v2227 = vadd.f32 %v2198, %v2226
    %2228 = vdwg.mxu0
    %2229 = vmatpush.msra.mxu0 %v1887
    %2230 = vmatpush.msra.mxu0 %v1886
    %2231 = vmatpush.msra.mxu0 %v1885
    %2232 = vmatpush.msra.mxu0 %v1884
    %2233 = vmatpush.msra.mxu0 %v1883
    %2234 = vmatpush.msra.mxu0 %v1882
    %2235 = vmatpush.msra.mxu0 %v1881
    %2236 = vmatpush.msra.mxu0 %v1880
    %2237 = vmatpush.msra.mxu0 %v1879
    %2238 = vmatpush.msra.mxu0 %v1878
    %2239 = vmatpush.msra.mxu0 %v1621
    %2240 = vmatpush.msra.mxu0 %v1620
    %2241 = vmatpush.msra.mxu0 %v1619
    %2242 = vmatpush.msra.mxu0 %v1618
    %2243 = vmatpush.msra.mxu0 %v1617
    %2244 = vmatpush.msra.mxu0 %v1616
    %2245 = vmatmul.f32.gmra.mxu0 %v2179
    %v2246 = vpop.f32.mrf.mxu0
    %v2247 = vadd.f32 %v2224, %v2246
    %2248 = vmatmul.f32.gmra.mxu0 %v2184
    %v2249 = vpop.f32.mrf.mxu0
    %v2250 = vadd.f32 %v2227, %v2249
    %2251 = vdwg.mxu0
    %2252 = vmatpush.msra.mxu0 %v2159
    %2253 = vmatpush.msra.mxu0 %v2158
    %2254 = vmatpush.msra.mxu0 %v2157
    %2255 = vmatpush.msra.mxu0 %v2156
    %2256 = vmatpush.msra.mxu0 %v1899
    %2257 = vmatpush.msra.mxu0 %v1898
    %2258 = vmatpush.msra.mxu0 %v1897
    %2259 = vmatpush.msra.mxu0 %v1896
    %2260 = vmatpush.msra.mxu0 %v1895
    %2261 = vmatpush.msra.mxu0 %v1894
    %2262 = vmatpush.msra.mxu0 %v1893
    %2263 = vmatpush.msra.mxu0 %v1892
    %2264 = vmatpush.msra.mxu0 %v1891
    %2265 = vmatpush.msra.mxu0 %v1890
    %2266 = vmatpush.msra.mxu0 %v1889
    %2267 = vmatpush.msra.mxu0 %v1888
    %2268 = vmatmul.f32.gmra.mxu0 %v2180
    %v2269 = vpop.f32.mrf.mxu0
    %v2270 = vadd.f32 %v2247, %v2269
    %2271 = vmatmul.f32.gmra.mxu0 %v2185
    %v2272 = vpop.f32.mrf.mxu0
    %v2273 = vadd.f32 %v2250, %v2272
    %2274 = vdwg.mxu0
    %2275 = vmatpush.msra.mxu0 %v2175
    %2276 = vmatpush.msra.mxu0 %v2174
    %2277 = vmatpush.msra.mxu0 %v2173
    %2278 = vmatpush.msra.mxu0 %v2172
    %2279 = vmatpush.msra.mxu0 %v2171
    %2280 = vmatpush.msra.mxu0 %v2170
    %2281 = vmatpush.msra.mxu0 %v2169
    %2282 = vmatpush.msra.mxu0 %v2168
    %2283 = vmatpush.msra.mxu0 %v2167
    %2284 = vmatpush.msra.mxu0 %v2166
    %2285 = vmatpush.msra.mxu0 %v2165
    %2286 = vmatpush.msra.mxu0 %v2164
    %2287 = vmatpush.msra.mxu0 %v2163
    %2288 = vmatpush.msra.mxu0 %v2162
    %2289 = vmatpush.msra.mxu0 %v2161
    %2290 = vmatpush.msra.mxu0 %v2160
    %2291 = vmatmul.f32.gmra.mxu0 %v2181
    %v2292 = vpop.f32.mrf.mxu0
    %v2293 = vadd.f32 %v2270, %v2292
    %2294 = vmatmul.f32.gmra.mxu0 %v2186
    %v2295 = vpop.f32.mrf.mxu0
    %v2296 = vadd.f32 %v2273, %v2295
    %2297 = vdwg.mxu0
    %2298 = vmatpush.msra.mxu0 0.0
    %2299 = vmatpush.msra.mxu0 0.0
    %2300 = vmatpush.msra.mxu0 0.0
    %2301 = vmatpush.msra.mxu0 0.0
    %2302 = vmatpush.msra.mxu0 0.0
    %2303 = vmatpush.msra.mxu0 0.0
    %2304 = vmatpush.msra.mxu0 0.0
    %2305 = vmatpush.msra.mxu0 0.0
    %2306 = vmatpush.msra.mxu0 0.0
    %2307 = vmatpush.msra.mxu0 0.0
    %2308 = vmatpush.msra.mxu0 0.0
    %2309 = vmatpush.msra.mxu0 0.0
    %2310 = vmatpush.msra.mxu0 0.0
    %2311 = vmatpush.msra.mxu0 0.0
    %2312 = vmatpush.msra.mxu0 %v2177
    %2313 = vmatpush.msra.mxu0 %v2176
    %2314 = vmatmul.f32.gmra.mxu0 %v2201
    %v2315 = vpop.f32.mrf.mxu0
    %v2316 = vadd.f32 %v2293, %v2315
    %2317 = vmatmul.f32.gmra.mxu0 %v2204
    %v2318 = vpop.f32.mrf.mxu0
    %v2319 = vadd.f32 %v2296, %v2318
    %2320 = vdwg.mxu0
    %vm2321 = vcmp.gt.f32.partialorder %v2316, 0.0
    %vm2322 = vcmp.gt.f32.partialorder %v2319, 0.0
    %v2323 = vmul.f32 %v2316, 0.2
    %v2324 = vmul.f32 %v2319, 0.2
    %v2325 = vsel %vm2321, %v2316, %v2323
    %v2326 = vsel %vm2322, %v2319, %v2324
    %2329 = vrot.lane.b32.xlu0 %v2325, 3
    %v2330 = vpop.permute.xlu0 %2329
    %2331 = vrot.lane.b32.xlu0 %v2326, 3
    %v2332 = vpop.permute.xlu0 %2331
    %v2335 = vsel %vm783, 0.0, %v2330
    %v2336 = vsel %vm783, 0.0, %v2332
    %v2337 = vsel %vm736, %v2335, 0.0
    %v2338 = vsel %vm736, %v2336, 0.0
    %2341 = vrot.lane.b32.xlu0 %v2337, 127
    %v2342 = vpop.permute.xlu0 %2341
    %2343 = vrot.lane.b32.xlu0 %v2338, 127
    %v2344 = vpop.permute.xlu0 %2343
    %2347 = vrot.lane.b32.xlu0 %v2337, 126
    %v2348 = vpop.permute.xlu0 %2347
    %2349 = vrot.lane.b32.xlu0 %v2338, 126
    %v2350 = vpop.permute.xlu0 %2349
    %2353 = vrot.lane.b32.xlu0 %v2337, 125
    %v2354 = vpop.permute.xlu0 %2353
    %2355 = vrot.lane.b32.xlu0 %v2338, 125
    %v2356 = vpop.permute.xlu0 %2355
    %2359 = vrot.lane.b32.xlu0 %v2337, 124
    %v2360 = vpop.permute.xlu0 %2359
    %2361 = vrot.lane.b32.xlu0 %v2338, 124
    %v2362 = vpop.permute.xlu0 %2361
    %2365 = vrot.lane.b32.xlu0 %v2337, 123
    %v2366 = vpop.permute.xlu0 %2365
    %2367 = vrot.lane.b32.xlu0 %v2338, 123
    %v2368 = vpop.permute.xlu0 %2367
    %2371 = vrot.lane.b32.xlu0 %v2337, 122
    %v2372 = vpop.permute.xlu0 %2371
    %2373 = vrot.lane.b32.xlu0 %v2338, 122
    %v2374 = vpop.permute.xlu0 %2373
    %2377 = vrot.lane.b32.xlu0 %v2325, 90
    %v2378 = vpop.permute.xlu0 %2377
    %2379 = vrot.lane.b32.xlu0 %v2326, 90
    %v2380 = vpop.permute.xlu0 %2379
    %v2383 = vsel %vm783, 0.0, %v2378
    %v2384 = vsel %vm783, 0.0, %v2380
    %v2385 = vsel %vm736, %v2383, 0.0
    %v2386 = vsel %vm736, %v2384, 0.0
    %2389 = vrot.lane.b32.xlu0 %v2385, 127
    %v2390 = vpop.permute.xlu0 %2389
    %2391 = vrot.lane.b32.xlu0 %v2386, 127
    %v2392 = vpop.permute.xlu0 %2391
    %2393 = vrot.lane.b32.xlu0 %v2385, 126
    %v2394 = vpop.permute.xlu0 %2393
    %2395 = vrot.lane.b32.xlu0 %v2386, 126
    %v2396 = vpop.permute.xlu0 %2395
    %2397 = vrot.lane.b32.xlu0 %v2385, 125
    %v2398 = vpop.permute.xlu0 %2397
    %2399 = vrot.lane.b32.xlu0 %v2386, 125
    %v2400 = vpop.permute.xlu0 %2399
    %2401 = vrot.lane.b32.xlu0 %v2385, 124
    %v2402 = vpop.permute.xlu0 %2401
    %2403 = vrot.lane.b32.xlu0 %v2386, 124
    %v2404 = vpop.permute.xlu0 %2403
    %2405 = vrot.lane.b32.xlu0 %v2385, 123
    %v2406 = vpop.permute.xlu0 %2405
    %2407 = vrot.lane.b32.xlu0 %v2386, 123
    %v2408 = vpop.permute.xlu0 %2407
    %2409 = vrot.lane.b32.xlu0 %v2385, 122
    %v2410 = vpop.permute.xlu0 %2409
    %2411 = vrot.lane.b32.xlu0 %v2386, 122
    %v2412 = vpop.permute.xlu0 %2411
    %2413 = vrot.lane.b32.xlu0 %v2385, 41
    %v2414 = vpop.permute.xlu0 %2413
    %2415 = vrot.lane.b32.xlu0 %v2386, 41
    %v2416 = vpop.permute.xlu0 %2415
    %2417 = vrot.lane.b32.xlu0 %v2390, 41
    %v2418 = vpop.permute.xlu0 %2417
    %2419 = vrot.lane.b32.xlu0 %v2392, 41
    %v2420 = vpop.permute.xlu0 %2419
    %2421 = vrot.lane.b32.xlu0 %v2394, 41
    %v2422 = vpop.permute.xlu0 %2421
    %2423 = vrot.lane.b32.xlu0 %v2396, 41
    %v2424 = vpop.permute.xlu0 %2423
    %2425 = vrot.lane.b32.xlu0 %v2398, 41
    %v2426 = vpop.permute.xlu0 %2425
    %2427 = vrot.lane.b32.xlu0 %v2400, 41
    %v2428 = vpop.permute.xlu0 %2427
    %2429 = vrot.lane.b32.xlu0 %v2402, 41
    %v2430 = vpop.permute.xlu0 %2429
    %2431 = vrot.lane.b32.xlu0 %v2404, 41
    %v2432 = vpop.permute.xlu0 %2431
    %2433 = vrot.lane.b32.xlu0 %v2406, 41
    %v2434 = vpop.permute.xlu0 %2433
    %2435 = vrot.lane.b32.xlu0 %v2408, 41
    %v2436 = vpop.permute.xlu0 %2435
    %2437 = vrot.lane.b32.xlu0 %v2410, 41
    %v2438 = vpop.permute.xlu0 %2437
    %2439 = vrot.lane.b32.xlu0 %v2412, 41
    %v2440 = vpop.permute.xlu0 %2439
    %v2455 = vsel %vm1599, %v2337, %v2414
    %v2456 = vsel %vm1599, %v2338, %v2416
    %v2457 = vsel %vm1599, %v2342, %v2418
    %v2458 = vsel %vm1599, %v2344, %v2420
    %v2459 = vsel %vm1599, %v2348, %v2422
    %v2460 = vsel %vm1599, %v2350, %v2424
    %v2461 = vsel %vm1599, %v2354, %v2426
    %v2462 = vsel %vm1599, %v2356, %v2428
    %v2463 = vsel %vm1599, %v2360, %v2430
    %v2464 = vsel %vm1599, %v2362, %v2432
    %v2465 = vsel %vm1599, %v2366, %v2434
    %v2466 = vsel %vm1599, %v2368, %v2436
    %v2467 = vsel %vm1599, %v2372, %v2438
    %v2468 = vsel %vm1599, %v2374, %v2440
    %v2469 = vld [vmem:[#allocation7] sm:$0xff]
    %v2470 = vld [vmem:[#allocation7 + $0x8] sm:$0xff]
    %v2471 = vld [vmem:[%s13] sm:$0xff]
    %v2472 = vld [vmem:[%s13 + $0x8] sm:$0xff]
    %2474 = vset.pattern.permute.xlu0 0
    %2475 = vperm.xlu0 %2474, %v2471
    %v2476 = vpop.permute.xlu0 %2475
    %2479 = vset.pattern.permute.xlu0 0
    %2480 = vperm.xlu0 %2479, %v2472
    %v2481 = vpop.permute.xlu0 %2480
    %v2484 = vsel %vm1301, %v2469, 0
    %v2487 = vsel %vm1301, %v2470, 0
    %2489 = vmatpush.msra.mxu0 0.0
    %2490 = vmatpush.msra.mxu0 0.0
    %2491 = vmatpush.msra.mxu0 %v2468
    %2492 = vmatpush.msra.mxu0 %v2467
    %2493 = vmatpush.msra.mxu0 %v2466
    %2494 = vmatpush.msra.mxu0 %v2465
    %2495 = vmatpush.msra.mxu0 %v2464
    %2496 = vmatpush.msra.mxu0 %v2463
    %2497 = vmatpush.msra.mxu0 %v2462
    %2498 = vmatpush.msra.mxu0 %v2461
    %2499 = vmatpush.msra.mxu0 %v2460
    %2500 = vmatpush.msra.mxu0 %v2459
    %2501 = vmatpush.msra.mxu0 %v2458
    %2502 = vmatpush.msra.mxu0 %v2457
    %2503 = vmatpush.msra.mxu0 %v2456
    %2504 = vmatpush.msra.mxu0 %v2455
    %2505 = vmatmul.f32.gmra.mxu0 %v2484
    %v2506 = vpop.f32.mrf.mxu0
    %v2507 = vadd.f32 %v2476, %v2506
    %2508 = vmatmul.f32.gmra.mxu0 %v2487
    %v2509 = vpop.f32.mrf.mxu0
    %v2510 = vadd.f32 %v2481, %v2509
    %2511 = vdwg.mxu0
    %vm2512 = vcmp.gt.f32.partialorder %v2507, 0.0
    %vm2513 = vcmp.gt.f32.partialorder %v2510, 0.0
    %v2514 = vmul.f32 %v2507, 0.2
    %v2515 = vmul.f32 %v2510, 0.2
    %v2516 = vsel %vm2512, %v2507, %v2514
    %v2517 = vsel %vm2513, %v2510, %v2515
    %v2518 = vld [vmem:[#allocation8] sm:$0xff]
    %v2519 = vld [vmem:[#allocation8 + $0x8] sm:$0xff]
    %v2520 = vld [vmem:[#allocation10] sm:$0xff]
    %v2521 = vld [vmem:[#allocation10 + $0x8] sm:$0xff]
    %v2522 = vld [vmem:[%s16] sm:$0xff]
    %v2523 = vld [vmem:[%s16 + $0x8] sm:$0xff]
    %v2524 = vld [vmem:[%s16 + $0x10] sm:$0xff]
    %v2525 = vld [vmem:[%s16 + $0x18] sm:$0xff]
    %v2526 = vld [vmem:[%s16 + $0x20] sm:$0xff]
    %v2527 = vld [vmem:[%s16 + $0x28] sm:$0x1]
    %v2528 = vld [vmem:[#allocation11] sm:$0xff]
    %v2529 = vld [vmem:[#allocation11 + $0x8] sm:$0xff]
    %v2530 = vld [vmem:[%s18] sm:$0xff]
    %v2531 = vld [vmem:[%s18 + $0x8] sm:$0xff]
    %v2532 = vld [vmem:[%s18 + $0x10] sm:$0xff]
    %v2533 = vld [vmem:[%s18 + $0x18] sm:$0xff]
    %v2534 = vld [vmem:[%s18 + $0x20] sm:$0xff]
    %v2535 = vld [vmem:[%s18 + $0x28] sm:$0xff]
    %v2536 = vld [vmem:[%s18 + $0x30] sm:$0xff]
    %v2537 = vld [vmem:[%s18 + $0x38] sm:$0xff]
    %v2538 = vld [vmem:[%s18 + $0x40] sm:$0xff]
    %v2539 = vld [vmem:[%s18 + $0x48] sm:$0xff]
    %v2540 = vld [vmem:[%s18 + $0x50] sm:$0xff]
    %v2541 = vld [vmem:[%s18 + $0x58] sm:$0xff]
    %v2542 = vld [vmem:[%s18 + $0x60] sm:$0xff]
    %v2543 = vld [vmem:[%s18 + $0x68] sm:$0xff]
    %v2544 = vld [vmem:[%s18 + $0x70] sm:$0xff]
    %v2545 = vld [vmem:[%s18 + $0x78] sm:$0xff]
    %v2546 = vmul.f32 %v2516, %v2518
    %v2547 = vmul.f32 %v2517, %v2519
    %v2548 = vadd.f32 %v2546, %v2520
    %v2549 = vadd.f32 %v2547, %v2521
    %vm2550 = vcmp.gt.f32.partialorder %v2548, 0.0
    %vm2551 = vcmp.gt.f32.partialorder %v2549, 0.0
    %v2552 = vmul.f32 %v2548, 0.2
    %v2553 = vmul.f32 %v2549, 0.2
    %v2554 = vsel %vm2550, %v2548, %v2552
    %v2555 = vsel %vm2551, %v2549, %v2553
    %v2557 = vsel %vm1599, %v2554, 0
    %v2560 = vsel %vm1599, %v2555, 0
    %v2563 = vsel %vm1346, %v2527, 0
    %2565 = vmatpush.msra.mxu0 0.0
    %2566 = vmatpush.msra.mxu0 0.0
    %2567 = vmatpush.msra.mxu0 0.0
    %2568 = vmatpush.msra.mxu0 0.0
    %2569 = vmatpush.msra.mxu0 0.0
    %2570 = vmatpush.msra.mxu0 0.0
    %2571 = vmatpush.msra.mxu0 0.0
    %2572 = vmatpush.msra.mxu0 0.0
    %2573 = vmatpush.msra.mxu0 0.0
    %2574 = vmatpush.msra.mxu0 0.0
    %2575 = vmatpush.msra.mxu0 %v2563
    %2576 = vmatpush.msra.mxu0 %v2526
    %2577 = vmatpush.msra.mxu0 %v2525
    %2578 = vmatpush.msra.mxu0 %v2524
    %2579 = vmatpush.msra.mxu0 %v2523
    %2580 = vmatpush.msra.mxu0 %v2522
    %2581 = vmatmul.f32.gmra.mxu0 %v2557
    %v2582 = vpop.f32.mrf.mxu0
    %v2583 = vadd.f32 0.0, %v2582
    %2584 = vmatmul.f32.gmra.mxu0 %v2560
    %v2585 = vpop.f32.mrf.mxu0
    %v2586 = vadd.f32 0.0, %v2585
    %2587 = vdwg.mxu0
    %v2588 = vmul.f32 %v2583, %v2528
    %v2589 = vmul.f32 %v2586, %v2529
    %v2590 = vadd.f32 %v2588, %v2589
    %v2591 = vrot.slane %v2590, 4
    %v2592 = vadd.f32 %v2590, %v2591
    %v2593 = vrot.slane %v2592, 2
    %v2594 = vadd.f32 %v2592, %v2593
    %v2595 = vrot.slane %v2594, 1
    %v2596 = vadd.f32 %v2594, %v2595
    %2597 = vmatpush.msra.mxu0 %v2545
    %2598 = vmatpush.msra.mxu0 %v2544
    %2599 = vmatpush.msra.mxu0 %v2543
    %2600 = vmatpush.msra.mxu0 %v2542
    %2601 = vmatpush.msra.mxu0 %v2541
    %2602 = vmatpush.msra.mxu0 %v2540
    %2603 = vmatpush.msra.mxu0 %v2539
    %2604 = vmatpush.msra.mxu0 %v2538
    %2605 = vmatpush.msra.mxu0 %v2537
    %2606 = vmatpush.msra.mxu0 %v2536
    %2607 = vmatpush.msra.mxu0 %v2535
    %2608 = vmatpush.msra.mxu0 %v2534
    %2609 = vmatpush.msra.mxu0 %v2533
    %2610 = vmatpush.msra.mxu0 %v2532
    %2611 = vmatpush.msra.mxu0 %v2531
    %2612 = vmatpush.msra.mxu0 %v2530
    %2613 = vmatmul.f32.gmra.mxu0 %v2596
    %v2614 = vpop.f32.mrf.mxu0
    %v2615 = vadd.f32 0.0, %v2614
    %2616 = vdwg.mxu0
    %2619 = vrot.lane.b32.xlu0 %v2518, 41
    %v2620 = vpop.permute.xlu0 %2619
    %2621 = vrot.lane.b32.xlu0 %v2519, 41
    %v2622 = vpop.permute.xlu0 %2621
    %v2625 = vmul.f32 %v2516, %v2620
    %v2626 = vmul.f32 %v2517, %v2622
    %2629 = vrot.lane.b32.xlu0 %v2520, 41
    %v2630 = vpop.permute.xlu0 %2629
    %2631 = vrot.lane.b32.xlu0 %v2521, 41
    %v2632 = vpop.permute.xlu0 %2631
    %v2635 = vadd.f32 %v2625, %v2630
    %v2636 = vadd.f32 %v2626, %v2632
    %vm2637 = vcmp.gt.f32.partialorder %v2635, 0.0
    %vm2638 = vcmp.gt.f32.partialorder %v2636, 0.0
    %v2639 = vmul.f32 %v2635, 0.2
    %v2640 = vmul.f32 %v2636, 0.2
    %v2641 = vsel %vm2637, %v2635, %v2639
    %v2642 = vsel %vm2638, %v2636, %v2640
    %2645 = vrot.lane.b32.xlu0 %v2641, 87
    %v2646 = vpop.permute.xlu0 %2645
    %2647 = vrot.lane.b32.xlu0 %v2642, 87
    %v2648 = vpop.permute.xlu0 %2647
    %v2649 = vsel %vm1599, %v2646, 0
    %v2651 = vsel %vm1599, %v2648, 0
    %2653 = vmatpush.msra.mxu0 0.0
    %2654 = vmatpush.msra.mxu0 0.0
    %2655 = vmatpush.msra.mxu0 0.0
    %2656 = vmatpush.msra.mxu0 0.0
    %2657 = vmatpush.msra.mxu0 0.0
    %2658 = vmatpush.msra.mxu0 0.0
    %2659 = vmatpush.msra.mxu0 0.0
    %2660 = vmatpush.msra.mxu0 0.0
    %2661 = vmatpush.msra.mxu0 0.0
    %2662 = vmatpush.msra.mxu0 0.0
    %2663 = vmatpush.msra.mxu0 %v2563
    %2664 = vmatpush.msra.mxu0 %v2526
    %2665 = vmatpush.msra.mxu0 %v2525
    %2666 = vmatpush.msra.mxu0 %v2524
    %2667 = vmatpush.msra.mxu0 %v2523
    %2668 = vmatpush.msra.mxu0 %v2522
    %2669 = vmatmul.f32.gmra.mxu0 %v2649
    %v2670 = vpop.f32.mrf.mxu0
    %v2671 = vadd.f32 0.0, %v2670
    %2672 = vmatmul.f32.gmra.mxu0 %v2651
    %v2673 = vpop.f32.mrf.mxu0
    %v2674 = vadd.f32 0.0, %v2673
    %2675 = vdwg.mxu0
    %v2676 = vmul.f32 %v2671, %v2528
    %v2677 = vmul.f32 %v2674, %v2529
    %v2678 = vadd.f32 %v2676, %v2677
    %v2679 = vrot.slane %v2678, 4
    %v2680 = vadd.f32 %v2678, %v2679
    %v2681 = vrot.slane %v2680, 2
    %v2682 = vadd.f32 %v2680, %v2681
    %v2683 = vrot.slane %v2682, 1
    %v2684 = vadd.f32 %v2682, %v2683
    %2685 = vmatpush.msra.mxu0 %v2545
    %2686 = vmatpush.msra.mxu0 %v2544
    %2687 = vmatpush.msra.mxu0 %v2543
    %2688 = vmatpush.msra.mxu0 %v2542
    %2689 = vmatpush.msra.mxu0 %v2541
    %2690 = vmatpush.msra.mxu0 %v2540
    %2691 = vmatpush.msra.mxu0 %v2539
    %2692 = vmatpush.msra.mxu0 %v2538
    %2693 = vmatpush.msra.mxu0 %v2537
    %2694 = vmatpush.msra.mxu0 %v2536
    %2695 = vmatpush.msra.mxu0 %v2535
    %2696 = vmatpush.msra.mxu0 %v2534
    %2697 = vmatpush.msra.mxu0 %v2533
    %2698 = vmatpush.msra.mxu0 %v2532
    %2699 = vmatpush.msra.mxu0 %v2531
    %2700 = vmatpush.msra.mxu0 %v2530
    %2701 = vmatmul.f32.gmra.mxu0 %v2684
    %v2702 = vpop.f32.mrf.mxu0
    %v2703 = vadd.f32 0.0, %v2702
    %2704 = vdwg.mxu0
    %v2706 = vrot.slane %v2703, 7
    %v2708 = vsel %vm1346, %v2615, %v2706
    %v2709 = vld [vmem:[%s19] sm:$0x1]
    %v2711 = vperm.slane %v2709, 0
    %v2713 = vadd.f32 %v2708, %v2711
    %vm2714 = vcmask 58368
    %v2715 = vsel %vm2714, %v2713, -inf
    %2716 = vmax.xlane.f32.xlu0 %v2715
    %v2717 = vpop.xlane.xlu0 %2716
    %v2718 = vsub.f32 %v2713, %v2717
    %v2719 = vmul.f32 %v2718, 1.442695
    %v2720 = vpow.pop %v2719
    %v2721 = vsel %vm2714, %v2720, 0.0
    %2722 = vadd.xlane.f32.xlu0 %v2721
    %v2723 = vpop.xlane.xlu0 %2722
    %v2724 = vrcp.pop %v2723
    %v2725 = vmul.f32 %v2723, %v2724
    %v2726 = vsub.f32 1.0, %v2725
    %v2727 = vmul.f32 %v2724, %v2726
    %v2728 = vadd.f32 %v2724, %v2727
    %vm2729 = vweird.f32 %v2723
    %vm2730 = vweird.f32 %v2724
    %vm2731 = vmor %vm2729, %vm2730
    %v2732 = vsel %vm2731, %v2724, %v2728
    %v2733 = vand.u32 2147483647, %v2723
    %vm2734 = vcmp.eq.f32.partialorder %v2733, 8.507059e+37
    %v2735 = vand.u32 %v2723, 2147483648
    %v2736 = vor.u32 1.1754944e-38, %v2735
    %v2737 = vsel %vm2734, %v2736, %v2732
    %v2738 = vmul.f32 %v2720, %v2737
    %2739 = vst.msk [vmem:[#allocation13] sm:$0x3] %vm2714, %v2738
    // Predicated region
    $region106: #{forward.1} parent=1 // pred_check
      _
    $region107: #{forward.1} parent=1 // pred_check_branch
      %2741 = sbr.rel (0) target = $region109
    $region108: #{forward.1} parent=1 // pred_region
      %2743 = vsyncadd [#allocation4], 0
      %s2745 = sshll.u32 [#allocation13], 4
      %s2746 = int_to_ptr.vmem [resolvable:$true] %s2745
      %s2747 = sshll.u32 %s20, 4
      %s2748 = int_to_ptr.hbm [resolvable:$true] %s2747
      %2750 = dma.vmem_to_hbm [thread:$0]  %s2746, 32, %s2748, [#allocation4]
    $region109: #{forward.1} parent=1 // pred_fallthru
      _
    // Predicated region
    $region110: #{forward.1} parent=1 // pred_check
      _
    $region111: #{forward.1} parent=1 // pred_check_branch
      %2752 = sbr.rel (0) target = $region113
    $region112: #{forward.1} parent=1 // pred_region
      %2754 = dma.done [#allocation4], 32
    $region113: #{forward.1} parent=1 // pred_fallthru
      _
    %2755 = vsyncpa [#allocation3], 1
    %2756 = vsyncpa [#allocation6], 1
    %2757 = vsyncpa [#allocation9], 1
    %2758 = vsyncpa [#allocation12], 1
    %2759 = vsyncpa [#allocation4], 1

</llo_original>
